<compile_context>
chip_gen: v5e
topology: v5e:2x2
jax: 0.10.0
libtpu: 0.0.40
codegen_flags: <defaults>
</compile_context>

<pallas_src>
import jax
import jax.numpy as jnp
from jax import lax
from jax.experimental import pallas as pl
from jax.experimental.pallas import tpu as pltpu


# ---------------------------------------------------------------------------
# Kernel
# ---------------------------------------------------------------------------
def _make_kernel(T, Bp, H, Hp, D1, D2, D3):
    """T: timesteps, Bp: sublane-padded batch (mult of 8), H: real hidden (64),
    Hp: lane-padded hidden (128), D1/D2/D3: real MLP hidden widths (128/64/32)."""

    def kernel(x_ref, wih_ref, whh_ref, bgi_ref, bhn_ref,
               w1_ref, b1_ref, w2_ref, b2_ref, w3_ref, b3_ref, w4_ref, b4_ref,
               out_ref, gi_scr):
        # (1) Hoisted input projection for ALL timesteps in one MXU matmul (off the serial
        #     path). r/z biases (b_ih + b_hh) and the n-gate b_ih are folded into bgi.
        gi_scr[...] = jnp.dot(x_ref[...], wih_ref[...],
                              preferred_element_type=jnp.float32) + bgi_ref[...]

        # Hoisted broadcast of the n-gate recurrent bias (the only bias left in the loop).
        bhn = jnp.broadcast_to(bhn_ref[...], (Bp, Hp))

        h = jnp.zeros((Bp, Hp), jnp.float32)

        # (2) Serial recurrence, fully unrolled (T static & small) so the scheduler can
        #     interleave step t+1's recurrent matmul with step t's fused head matmuls.
        for t in range(T):
            r0 = t * Bp

            # Recurrent matmul: bf16 operands (f32 accumulate), contracting only over the
            # H real lanes of h (padded lanes are provably zero, see _pack_params note).
            gh = jnp.dot(h[:, :H].astype(jnp.bfloat16), whh_ref[...],
                         preferred_element_type=jnp.float32)            # (Bp, 3*Hp)
            gi = gi_scr[pl.ds(r0, Bp), :]                                # (Bp, 3*Hp)

            # Each gate occupies its own 128-lane block -> whole-vreg slices.
            r = jax.nn.sigmoid(gi[:, 0:Hp] + gh[:, 0:Hp])
            zg = jax.nn.sigmoid(gi[:, Hp:2 * Hp] + gh[:, Hp:2 * Hp])
            n = jnp.tanh(gi[:, 2 * Hp:3 * Hp] + r * (gh[:, 2 * Hp:3 * Hp] + bhn))
            h = (1.0 - zg) * n + zg * h

            # (3) Fused MLP head on h_t: independent of later steps, so its MXU work hides
            #     under neighbouring steps' EUP/VPU gate math. Contraction dims use only the
            #     real activation lanes (padded lanes are exact zeros). Store is lane-dense.
            a = jnp.maximum(
                jnp.dot(h[:, :H].astype(jnp.bfloat16), w1_ref[...],
                        preferred_element_type=jnp.float32) + b1_ref[...], 0.0)
            a = jnp.maximum(
                jnp.dot(a[:, :D1].astype(jnp.bfloat16), w2_ref[...],
                        preferred_element_type=jnp.float32) + b2_ref[...], 0.0)
            a = jnp.maximum(
                jnp.dot(a[:, :D2].astype(jnp.bfloat16), w3_ref[...],
                        preferred_element_type=jnp.float32) + b3_ref[...], 0.0)
            out_ref[pl.ds(r0, Bp), :] = (
                jnp.dot(a[:, :D3].astype(jnp.bfloat16), w4_ref[...],
                        preferred_element_type=jnp.float32) + b4_ref[...])

    return kernel


# ---------------------------------------------------------------------------
# Wrapper: parameter packing (lane/sublane alignment) + pallas_call
# ---------------------------------------------------------------------------
def _pad(a, shape):
    """Zero-pad a 2D array up to `shape` (top-left corner holds the data)."""
    out = jnp.zeros(shape, jnp.float32)
    return out.at[tuple(slice(0, s) for s in a.shape)].set(a.astype(jnp.float32))


def _r128(n):
    return -(-n // 128) * 128


def _pack_params(p, Hp=128, Op=128, weight_dtype=jnp.bfloat16):
    """Repack torch-layout ((in,out) transposed) params into lane-aligned blocks.

    Weights are bf16 (matmul operands); biases stay f32 (added to f32 accumulators).
    Contraction dims are NOT zero-row padded (fewer weight rows pushed per serial step).
    Padded lanes of all biases / weight columns are exactly 0, which is what keeps the
    padded lanes of h at exactly 0 throughout the recurrence — do not change that.
    """
    H = p["whh"].shape[0]
    Cin = p["wih"].shape[0]
    D1, D2, D3 = p["w1"].shape[1], p["w2"].shape[1], p["w3"].shape[1]
    wdt = weight_dtype

    # Gate-split & lane-pad the GRU weights: each gate in its own 128-lane block.
    wih_p = jnp.concatenate(
        [_pad(p["wih"][:, g * H:(g + 1) * H], (Cin, Hp)) for g in range(3)], axis=1)
    whh_p = jnp.concatenate(
        [_pad(p["whh"][:, g * H:(g + 1) * H], (H, Hp)) for g in range(3)], axis=1)

    bih, bhh = p["bih"], p["bhh"]
    bgi = jnp.concatenate([
        _pad(bih[:, 0:H] + bhh[:, 0:H], (1, Hp)),
        _pad(bih[:, H:2 * H] + bhh[:, H:2 * H], (1, Hp)),
        _pad(bih[:, 2 * H:3 * H], (1, Hp)),
    ], axis=1)
    bhn = _pad(bhh[:, 2 * H:3 * H], (1, Hp))

    return dict(
        wih=wih_p.astype(wdt), whh=whh_p.astype(wdt), bgi=bgi, bhn=bhn,
        w1=_pad(p["w1"], (H, _r128(D1))).astype(wdt),  b1=_pad(p["b1"], (1, _r128(D1))),
        w2=_pad(p["w2"], (D1, _r128(D2))).astype(wdt), b2=_pad(p["b2"], (1, _r128(D2))),
        w3=_pad(p["w3"], (D2, _r128(D3))).astype(wdt), b3=_pad(p["b3"], (1, _r128(D3))),
        w4=_pad(p["w4"], (D3, Op)).astype(wdt),        b4=_pad(p["b4"], (1, Op)),
    )


def gru_decoder(z, params):
    """z: (B, T, Cin) batch-first, matches nn.GRU(batch_first=True)."""
    B, T, Cin = z.shape
    H = params["whh"].shape[0]
    D1, D2, D3 = params["w1"].shape[1], params["w2"].shape[1], params["w3"].shape[1]
    Cout = params["w4"].shape[1]
    Hp, Op = 128, 128                       # lane-padded hidden / output widths
    Bp = max(8, -(-B // 8) * 8)             # sublane-padded batch (multiple of 8)

    packed = _pack_params(params, Hp=Hp, Op=Op)

    # Layout plumbing in the wrapper: time-major, batch padded, flattened to a 2D slab.
    # Input is cast to bf16 (matmul LHS); accumulation stays f32 in the kernel.
    x = jnp.transpose(z.astype(jnp.float32), (1, 0, 2))          # (T, B, Cin)
    x = jnp.zeros((T, Bp, Cin), jnp.float32).at[:, :B, :].set(x)
    x2 = x.reshape(T * Bp, Cin).astype(jnp.bfloat16)

    out2d = pl.pallas_call(
        _make_kernel(T, Bp, H, Hp, D1, D2, D3),
        out_shape=jax.ShapeDtypeStruct((T * Bp, Op), jnp.float32),
        in_specs=[pl.BlockSpec(memory_space=pltpu.MemorySpace.VMEM)] * 13,
        out_specs=pl.BlockSpec(memory_space=pltpu.MemorySpace.VMEM),
        scratch_shapes=[
            pltpu.VMEM((T * Bp, 3 * Hp), jnp.float32),   # precomputed input gates Gi
        ],
    )(x2,
      packed["wih"], packed["whh"], packed["bgi"], packed["bhn"],
      packed["w1"], packed["b1"], packed["w2"], packed["b2"],
      packed["w3"], packed["b3"], packed["w4"], packed["b4"])

    out = out2d.reshape(T, Bp, Op)[:, :B, :Cout]         # drop batch / lane padding
    out = jnp.transpose(out, (1, 0, 2))                  # (B, T, Cout)
    if T == 1:
        out = out[:, 0, :]                               # gru_out.squeeze(1) drops axis iff T == 1
    return out


# ---------------------------------------------------------------------------
# Pure-JAX reference (unpadded, f32, PyTorch GRU gate equations)
# ---------------------------------------------------------------------------
def reference(z, p):
    H = p["whh"].shape[0]

    def step(h, x_t):
        gi = x_t @ p["wih"] + p["bih"]
        gh = h @ p["whh"] + p["bhh"]
        r = jax.nn.sigmoid(gi[:, 0:H] + gh[:, 0:H])
        zg = jax.nn.sigmoid(gi[:, H:2 * H] + gh[:, H:2 * H])
        n = jnp.tanh(gi[:, 2 * H:3 * H] + r * gh[:, 2 * H:3 * H])
        h_new = (1.0 - zg) * n + zg * h
        return h_new, h_new

    B, T, _ = z.shape
    h0 = jnp.zeros((B, H), jnp.float32)
    _, hs = lax.scan(step, h0, jnp.transpose(z, (1, 0, 2)))
    hs = jnp.transpose(hs, (1, 0, 2))  # (B, T, H)
    a = jnp.maximum(hs @ p["w1"] + p["b1"], 0.0)
    a = jnp.maximum(a @ p["w2"] + p["b2"], 0.0)
    a = jnp.maximum(a @ p["w3"] + p["b3"], 0.0)
    out = a @ p["w4"] + p["b4"]
    if T == 1:
        out = out[:, 0, :]
    return out


if __name__ == "__main__":
    # Small shapes consistent with the module's forward.
    B, T, Cin, H, Cout = 2, 8, 16, 64, 8

    key = jax.random.PRNGKey(0)
    ks = jax.random.split(key, 13)

    def u(k, shape, fan_in):
        s = 1.0 / float(fan_in) ** 0.5
        return jax.random.uniform(k, shape, jnp.float32, -s, s)

    # Deterministic synthetic parameters (shapes follow nn.GRU / nn.Linear, pre-transposed).
    params = dict(
        wih=u(ks[0], (Cin, 3 * H), H),   # torch weight_ih_l0 (3H, Cin), transposed
        whh=u(ks[1], (H, 3 * H), H),     # torch weight_hh_l0 (3H, H), transposed
        bih=u(ks[2], (1, 3 * H), H),
        bhh=u(ks[3], (1, 3 * H), H),
        w1=u(ks[4], (H, 128), H),        # Linear(hidden_gru, 128)
        b1=u(ks[5], (1, 128), H),
        w2=u(ks[6], (128, 64), 128),     # Linear(128, 64)
        b2=u(ks[7], (1, 64), 128),
        w3=u(ks[8], (64, 32), 64),       # Linear(64, 32)
        b3=u(ks[9], (1, 32), 64),
        w4=u(ks[10], (32, Cout), 32),    # Linear(32, out_channels)
        b4=u(ks[11], (1, Cout), 32),
    )

    z = jax.random.normal(ks[12], (B, T, Cin), jnp.float32)

    out = jax.block_until_ready(gru_decoder(z, params))
    ref = reference(z, params)

    assert out.shape == (B, T, Cout), out.shape
    # Tolerance loosened vs. the all-f32 version: bf16 matmul operands (f32 accumulation)
    # add ~1e-3-level rounding over the 8-step recurrence + 4-layer head.
    max_err = float(jnp.max(jnp.abs(out - ref)))
    assert max_err < 5e-2, f"max abs err {max_err}"
    print("KERNEL_OK")
</pallas_src>

<mosaic_0001>
module attributes {stable_mosaic.version = 11 : i64} {
  func.func @kernel(%arg0: memref<64x16xbf16, #tpu.memory_space<vmem>>, %arg1: memref<16x384xbf16, #tpu.memory_space<vmem>>, %arg2: memref<64x384xbf16, #tpu.memory_space<vmem>>, %arg3: memref<1x384xf32, #tpu.memory_space<vmem>>, %arg4: memref<1x128xf32, #tpu.memory_space<vmem>>, %arg5: memref<64x128xbf16, #tpu.memory_space<vmem>>, %arg6: memref<1x128xf32, #tpu.memory_space<vmem>>, %arg7: memref<128x128xbf16, #tpu.memory_space<vmem>>, %arg8: memref<1x128xf32, #tpu.memory_space<vmem>>, %arg9: memref<64x128xbf16, #tpu.memory_space<vmem>>, %arg10: memref<1x128xf32, #tpu.memory_space<vmem>>, %arg11: memref<32x128xbf16, #tpu.memory_space<vmem>>, %arg12: memref<1x128xf32, #tpu.memory_space<vmem>>, %arg13: memref<64x128xf32, #tpu.memory_space<vmem>>, %arg14: memref<64x384xf32, #tpu.memory_space<vmem>>) attributes {dimension_semantics = [], scalar_prefetch = 0 : i64, scratch_operands = 1 : i64, tpu.core_type = #tpu.core_type<tc>} {
    %c0 = arith.constant 0 : index
    %c0_0 = arith.constant 0 : index
    %0 = vector.load %arg0[%c0, %c0_0] : memref<64x16xbf16, #tpu.memory_space<vmem>>, vector<64x16xbf16>
    %c0_1 = arith.constant 0 : index
    %c0_2 = arith.constant 0 : index
    %1 = vector.load %arg1[%c0_1, %c0_2] : memref<16x384xbf16, #tpu.memory_space<vmem>>, vector<16x384xbf16>
    %cst = arith.constant dense<0.000000e+00> : vector<64x384xf32>
    %2 = tpu.matmul %0, %1, %cst {dimension_numbers = #tpu.dot_dimension_numbers<[1], [0], [0], [1], [0, 0, 1, 1], [], []>} : vector<64x16xbf16>, vector<16x384xbf16>, vector<64x384xf32> -> vector<64x384xf32>
    %c0_3 = arith.constant 0 : index
    %c0_4 = arith.constant 0 : index
    %3 = vector.load %arg3[%c0_3, %c0_4] : memref<1x384xf32, #tpu.memory_space<vmem>>, vector<1x384xf32>
    %4 = vector.broadcast %3 : vector<1x384xf32> to vector<64x384xf32>
    %5 = arith.addf %2, %4 : vector<64x384xf32>
    %c0_5 = arith.constant 0 : index
    %c0_6 = arith.constant 0 : index
    %6 = vector.load %arg14[%c0_5, %c0_6] : memref<64x384xf32, #tpu.memory_space<vmem>>, vector<64x384xf32>
    tpu.vector_store %arg14[%c0_5, %c0_6], %5 {strides = array<i32>} : memref<64x384xf32, #tpu.memory_space<vmem>>, vector<64x384xf32>,
    %c0_7 = arith.constant 0 : index
    %c0_8 = arith.constant 0 : index
    %7 = vector.load %arg4[%c0_7, %c0_8] : memref<1x128xf32, #tpu.memory_space<vmem>>, vector<1x128xf32>
    %8 = vector.shape_cast %7 : vector<1x128xf32> to vector<1x128xf32>
    %9 = vector.broadcast %8 : vector<1x128xf32> to vector<8x128xf32>
    %cst_9 = arith.constant 0.000000e+00 : f32
    %10 = vector.broadcast %cst_9 : f32 to vector<8x128xf32>
    %11 = vector.extract_strided_slice %10 {offsets = [0, 0], sizes = [8, 64], strides = [1, 1]} : vector<8x128xf32> to vector<8x64xf32>
    %12 = arith.truncf %11 : vector<8x64xf32> to vector<8x64xbf16>
    %c0_10 = arith.constant 0 : index
    %c0_11 = arith.constant 0 : index
    %13 = vector.load %arg2[%c0_10, %c0_11] : memref<64x384xbf16, #tpu.memory_space<vmem>>, vector<64x384xbf16>
    %cst_12 = arith.constant dense<0.000000e+00> : vector<8x384xf32>
    %14 = tpu.matmul %12, %13, %cst_12 {dimension_numbers = #tpu.dot_dimension_numbers<[1], [0], [0], [1], [0, 0, 1, 1], [], []>} : vector<8x64xbf16>, vector<64x384xbf16>, vector<8x384xf32> -> vector<8x384xf32>
    %c0_13 = arith.constant 0 : index
    %c0_14 = arith.constant 0 : index
    %15 = vector.load %arg14[%c0_13, %c0_14] : memref<64x384xf32, #tpu.memory_space<vmem>>, vector<8x384xf32>
    %16 = vector.extract_strided_slice %15 {offsets = [0, 0], sizes = [8, 128], strides = [1, 1]} : vector<8x384xf32> to vector<8x128xf32>
    %17 = vector.extract_strided_slice %14 {offsets = [0, 0], sizes = [8, 128], strides = [1, 1]} : vector<8x384xf32> to vector<8x128xf32>
    %18 = arith.addf %16, %17 : vector<8x128xf32>
    %19 = arith.negf %18 : vector<8x128xf32>
    %20 = math.exp %19 : vector<8x128xf32>
    %cst_15 = arith.constant 1.000000e+00 : f32
    %21 = vector.broadcast %cst_15 : f32 to vector<8x128xf32>
    %22 = arith.addf %21, %20 : vector<8x128xf32>
    %23 = arith.divf %21, %22 : vector<8x128xf32>
    %24 = vector.extract_strided_slice %15 {offsets = [0, 128], sizes = [8, 128], strides = [1, 1]} : vector<8x384xf32> to vector<8x128xf32>
    %25 = vector.extract_strided_slice %14 {offsets = [0, 128], sizes = [8, 128], strides = [1, 1]} : vector<8x384xf32> to vector<8x128xf32>
    %26 = arith.addf %24, %25 : vector<8x128xf32>
    %27 = arith.negf %26 : vector<8x128xf32>
    %28 = math.exp %27 : vector<8x128xf32>
    %cst_16 = arith.constant 1.000000e+00 : f32
    %29 = vector.broadcast %cst_16 : f32 to vector<8x128xf32>
    %30 = arith.addf %29, %28 : vector<8x128xf32>
    %31 = arith.divf %29, %30 : vector<8x128xf32>
    %32 = vector.extract_strided_slice %15 {offsets = [0, 256], sizes = [8, 128], strides = [1, 1]} : vector<8x384xf32> to vector<8x128xf32>
    %33 = vector.extract_strided_slice %14 {offsets = [0, 256], sizes = [8, 128], strides = [1, 1]} : vector<8x384xf32> to vector<8x128xf32>
    %34 = arith.addf %33, %9 : vector<8x128xf32>
    %35 = arith.mulf %23, %34 : vector<8x128xf32>
    %36 = arith.addf %32, %35 : vector<8x128xf32>
    %37 = math.tanh %36 : vector<8x128xf32>
    %cst_17 = arith.constant 1.000000e+00 : f32
    %38 = vector.broadcast %cst_17 : f32 to vector<8x128xf32>
    %39 = arith.subf %38, %31 : vector<8x128xf32>
    %40 = arith.mulf %39, %37 : vector<8x128xf32>
    %41 = arith.mulf %31, %10 : vector<8x128xf32>
    %42 = arith.addf %40, %41 : vector<8x128xf32>
    %43 = vector.extract_strided_slice %42 {offsets = [0, 0], sizes = [8, 64], strides = [1, 1]} : vector<8x128xf32> to vector<8x64xf32>
    %44 = arith.truncf %43 : vector<8x64xf32> to vector<8x64xbf16>
    %c0_18 = arith.constant 0 : index
    %c0_19 = arith.constant 0 : index
    %45 = vector.load %arg5[%c0_18, %c0_19] : memref<64x128xbf16, #tpu.memory_space<vmem>>, vector<64x128xbf16>
    %cst_20 = arith.constant dense<0.000000e+00> : vector<8x128xf32>
    %46 = tpu.matmul %44, %45, %cst_20 {dimension_numbers = #tpu.dot_dimension_numbers<[1], [0], [0], [1], [0, 0, 1, 1], [], []>} : vector<8x64xbf16>, vector<64x128xbf16>, vector<8x128xf32> -> vector<8x128xf32>
    %c0_21 = arith.constant 0 : index
    %c0_22 = arith.constant 0 : index
    %47 = vector.load %arg6[%c0_21, %c0_22] : memref<1x128xf32, #tpu.memory_space<vmem>>, vector<1x128xf32>
    %48 = vector.broadcast %47 : vector<1x128xf32> to vector<8x128xf32>
    %49 = arith.addf %46, %48 : vector<8x128xf32>
    %cst_23 = arith.constant 0.000000e+00 : f32
    %50 = vector.broadcast %cst_23 : f32 to vector<8x128xf32>
    %51 = arith.maximumf %49, %50 : vector<8x128xf32>
    %52 = arith.truncf %51 : vector<8x128xf32> to vector<8x128xbf16>
    %c0_24 = arith.constant 0 : index
    %c0_25 = arith.constant 0 : index
    %53 = vector.load %arg7[%c0_24, %c0_25] : memref<128x128xbf16, #tpu.memory_space<vmem>>, vector<128x128xbf16>
    %cst_26 = arith.constant dense<0.000000e+00> : vector<8x128xf32>
    %54 = tpu.matmul %52, %53, %cst_26 {dimension_numbers = #tpu.dot_dimension_numbers<[1], [0], [0], [1], [0, 0, 1, 1], [], []>} : vector<8x128xbf16>, vector<128x128xbf16>, vector<8x128xf32> -> vector<8x128xf32>
    %c0_27 = arith.constant 0 : index
    %c0_28 = arith.constant 0 : index
    %55 = vector.load %arg8[%c0_27, %c0_28] : memref<1x128xf32, #tpu.memory_space<vmem>>, vector<1x128xf32>
    %56 = vector.broadcast %55 : vector<1x128xf32> to vector<8x128xf32>
    %57 = arith.addf %54, %56 : vector<8x128xf32>
    %cst_29 = arith.constant 0.000000e+00 : f32
    %58 = vector.broadcast %cst_29 : f32 to vector<8x128xf32>
    %59 = arith.maximumf %57, %58 : vector<8x128xf32>
    %60 = vector.extract_strided_slice %59 {offsets = [0, 0], sizes = [8, 64], strides = [1, 1]} : vector<8x128xf32> to vector<8x64xf32>
    %61 = arith.truncf %60 : vector<8x64xf32> to vector<8x64xbf16>
    %c0_30 = arith.constant 0 : index
    %c0_31 = arith.constant 0 : index
    %62 = vector.load %arg9[%c0_30, %c0_31] : memref<64x128xbf16, #tpu.memory_space<vmem>>, vector<64x128xbf16>
    %cst_32 = arith.constant dense<0.000000e+00> : vector<8x128xf32>
    %63 = tpu.matmul %61, %62, %cst_32 {dimension_numbers = #tpu.dot_dimension_numbers<[1], [0], [0], [1], [0, 0, 1, 1], [], []>} : vector<8x64xbf16>, vector<64x128xbf16>, vector<8x128xf32> -> vector<8x128xf32>
    %c0_33 = arith.constant 0 : index
    %c0_34 = arith.constant 0 : index
    %64 = vector.load %arg10[%c0_33, %c0_34] : memref<1x128xf32, #tpu.memory_space<vmem>>, vector<1x128xf32>
    %65 = vector.broadcast %64 : vector<1x128xf32> to vector<8x128xf32>
    %66 = arith.addf %63, %65 : vector<8x128xf32>
    %cst_35 = arith.constant 0.000000e+00 : f32
    %67 = vector.broadcast %cst_35 : f32 to vector<8x128xf32>
    %68 = arith.maximumf %66, %67 : vector<8x128xf32>
    %69 = vector.extract_strided_slice %68 {offsets = [0, 0], sizes = [8, 32], strides = [1, 1]} : vector<8x128xf32> to vector<8x32xf32>
    %70 = arith.truncf %69 : vector<8x32xf32> to vector<8x32xbf16>
    %c0_36 = arith.constant 0 : index
    %c0_37 = arith.constant 0 : index
    %71 = vector.load %arg11[%c0_36, %c0_37] : memref<32x128xbf16, #tpu.memory_space<vmem>>, vector<32x128xbf16>
    %cst_38 = arith.constant dense<0.000000e+00> : vector<8x128xf32>
    %72 = tpu.matmul %70, %71, %cst_38 {dimension_numbers = #tpu.dot_dimension_numbers<[1], [0], [0], [1], [0, 0, 1, 1], [], []>} : vector<8x32xbf16>, vector<32x128xbf16>, vector<8x128xf32> -> vector<8x128xf32>
    %c0_39 = arith.constant 0 : index
    %c0_40 = arith.constant 0 : index
    %73 = vector.load %arg12[%c0_39, %c0_40] : memref<1x128xf32, #tpu.memory_space<vmem>>, vector<1x128xf32>
    %74 = vector.broadcast %73 : vector<1x128xf32> to vector<8x128xf32>
    %75 = arith.addf %72, %74 : vector<8x128xf32>
    %c0_41 = arith.constant 0 : index
    %c0_42 = arith.constant 0 : index
    %76 = vector.load %arg13[%c0_41, %c0_42] : memref<64x128xf32, #tpu.memory_space<vmem>>, vector<8x128xf32>
    tpu.vector_store %arg13[%c0_41, %c0_42], %75 {strides = array<i32>} : memref<64x128xf32, #tpu.memory_space<vmem>>, vector<8x128xf32>,
    %77 = vector.extract_strided_slice %42 {offsets = [0, 0], sizes = [8, 64], strides = [1, 1]} : vector<8x128xf32> to vector<8x64xf32>
    %78 = arith.truncf %77 : vector<8x64xf32> to vector<8x64xbf16>
    %c0_43 = arith.constant 0 : index
    %c0_44 = arith.constant 0 : index
    %79 = vector.load %arg2[%c0_43, %c0_44] : memref<64x384xbf16, #tpu.memory_space<vmem>>, vector<64x384xbf16>
    %cst_45 = arith.constant dense<0.000000e+00> : vector<8x384xf32>
    %80 = tpu.matmul %78, %79, %cst_45 {dimension_numbers = #tpu.dot_dimension_numbers<[1], [0], [0], [1], [0, 0, 1, 1], [], []>} : vector<8x64xbf16>, vector<64x384xbf16>, vector<8x384xf32> -> vector<8x384xf32>
    %c8 = arith.constant 8 : index
    %c0_46 = arith.constant 0 : index
    %81 = vector.load %arg14[%c8, %c0_46] : memref<64x384xf32, #tpu.memory_space<vmem>>, vector<8x384xf32>
    %82 = vector.extract_strided_slice %81 {offsets = [0, 0], sizes = [8, 128], strides = [1, 1]} : vector<8x384xf32> to vector<8x128xf32>
    %83 = vector.extract_strided_slice %80 {offsets = [0, 0], sizes = [8, 128], strides = [1, 1]} : vector<8x384xf32> to vector<8x128xf32>
    %84 = arith.addf %82, %83 : vector<8x128xf32>
    %85 = arith.negf %84 : vector<8x128xf32>
    %86 = math.exp %85 : vector<8x128xf32>
    %cst_47 = arith.constant 1.000000e+00 : f32
    %87 = vector.broadcast %cst_47 : f32 to vector<8x128xf32>
    %88 = arith.addf %87, %86 : vector<8x128xf32>
    %89 = arith.divf %87, %88 : vector<8x128xf32>
    %90 = vector.extract_strided_slice %81 {offsets = [0, 128], sizes = [8, 128], strides = [1, 1]} : vector<8x384xf32> to vector<8x128xf32>
    %91 = vector.extract_strided_slice %80 {offsets = [0, 128], sizes = [8, 128], strides = [1, 1]} : vector<8x384xf32> to vector<8x128xf32>
    %92 = arith.addf %90, %91 : vector<8x128xf32>
    %93 = arith.negf %92 : vector<8x128xf32>
    %94 = math.exp %93 : vector<8x128xf32>
    %cst_48 = arith.constant 1.000000e+00 : f32
    %95 = vector.broadcast %cst_48 : f32 to vector<8x128xf32>
    %96 = arith.addf %95, %94 : vector<8x128xf32>
    %97 = arith.divf %95, %96 : vector<8x128xf32>
    %98 = vector.extract_strided_slice %81 {offsets = [0, 256], sizes = [8, 128], strides = [1, 1]} : vector<8x384xf32> to vector<8x128xf32>
    %99 = vector.extract_strided_slice %80 {offsets = [0, 256], sizes = [8, 128], strides = [1, 1]} : vector<8x384xf32> to vector<8x128xf32>
    %100 = arith.addf %99, %9 : vector<8x128xf32>
    %101 = arith.mulf %89, %100 : vector<8x128xf32>
    %102 = arith.addf %98, %101 : vector<8x128xf32>
    %103 = math.tanh %102 : vector<8x128xf32>
    %cst_49 = arith.constant 1.000000e+00 : f32
    %104 = vector.broadcast %cst_49 : f32 to vector<8x128xf32>
    %105 = arith.subf %104, %97 : vector<8x128xf32>
    %106 = arith.mulf %105, %103 : vector<8x128xf32>
    %107 = arith.mulf %97, %42 : vector<8x128xf32>
    %108 = arith.addf %106, %107 : vector<8x128xf32>
    %109 = vector.extract_strided_slice %108 {offsets = [0, 0], sizes = [8, 64], strides = [1, 1]} : vector<8x128xf32> to vector<8x64xf32>
    %110 = arith.truncf %109 : vector<8x64xf32> to vector<8x64xbf16>
    %c0_50 = arith.constant 0 : index
    %c0_51 = arith.constant 0 : index
    %111 = vector.load %arg5[%c0_50, %c0_51] : memref<64x128xbf16, #tpu.memory_space<vmem>>, vector<64x128xbf16>
    %cst_52 = arith.constant dense<0.000000e+00> : vector<8x128xf32>
    %112 = tpu.matmul %110, %111, %cst_52 {dimension_numbers = #tpu.dot_dimension_numbers<[1], [0], [0], [1], [0, 0, 1, 1], [], []>} : vector<8x64xbf16>, vector<64x128xbf16>, vector<8x128xf32> -> vector<8x128xf32>
    %c0_53 = arith.constant 0 : index
    %c0_54 = arith.constant 0 : index
    %113 = vector.load %arg6[%c0_53, %c0_54] : memref<1x128xf32, #tpu.memory_space<vmem>>, vector<1x128xf32>
    %114 = vector.broadcast %113 : vector<1x128xf32> to vector<8x128xf32>
    %115 = arith.addf %112, %114 : vector<8x128xf32>
    %cst_55 = arith.constant 0.000000e+00 : f32
    %116 = vector.broadcast %cst_55 : f32 to vector<8x128xf32>
    %117 = arith.maximumf %115, %116 : vector<8x128xf32>
    %118 = arith.truncf %117 : vector<8x128xf32> to vector<8x128xbf16>
    %c0_56 = arith.constant 0 : index
    %c0_57 = arith.constant 0 : index
    %119 = vector.load %arg7[%c0_56, %c0_57] : memref<128x128xbf16, #tpu.memory_space<vmem>>, vector<128x128xbf16>
    %cst_58 = arith.constant dense<0.000000e+00> : vector<8x128xf32>
    %120 = tpu.matmul %118, %119, %cst_58 {dimension_numbers = #tpu.dot_dimension_numbers<[1], [0], [0], [1], [0, 0, 1, 1], [], []>} : vector<8x128xbf16>, vector<128x128xbf16>, vector<8x128xf32> -> vector<8x128xf32>
    %c0_59 = arith.constant 0 : index
    %c0_60 = arith.constant 0 : index
    %121 = vector.load %arg8[%c0_59, %c0_60] : memref<1x128xf32, #tpu.memory_space<vmem>>, vector<1x128xf32>
    %122 = vector.broadcast %121 : vector<1x128xf32> to vector<8x128xf32>
    %123 = arith.addf %120, %122 : vector<8x128xf32>
    %cst_61 = arith.constant 0.000000e+00 : f32
    %124 = vector.broadcast %cst_61 : f32 to vector<8x128xf32>
    %125 = arith.maximumf %123, %124 : vector<8x128xf32>
    %126 = vector.extract_strided_slice %125 {offsets = [0, 0], sizes = [8, 64], strides = [1, 1]} : vector<8x128xf32> to vector<8x64xf32>
    %127 = arith.truncf %126 : vector<8x64xf32> to vector<8x64xbf16>
    %c0_62 = arith.constant 0 : index
    %c0_63 = arith.constant 0 : index
    %128 = vector.load %arg9[%c0_62, %c0_63] : memref<64x128xbf16, #tpu.memory_space<vmem>>, vector<64x128xbf16>
    %cst_64 = arith.constant dense<0.000000e+00> : vector<8x128xf32>
    %129 = tpu.matmul %127, %128, %cst_64 {dimension_numbers = #tpu.dot_dimension_numbers<[1], [0], [0], [1], [0, 0, 1, 1], [], []>} : vector<8x64xbf16>, vector<64x128xbf16>, vector<8x128xf32> -> vector<8x128xf32>
    %c0_65 = arith.constant 0 : index
    %c0_66 = arith.constant 0 : index
    %130 = vector.load %arg10[%c0_65, %c0_66] : memref<1x128xf32, #tpu.memory_space<vmem>>, vector<1x128xf32>
    %131 = vector.broadcast %130 : vector<1x128xf32> to vector<8x128xf32>
    %132 = arith.addf %129, %131 : vector<8x128xf32>
    %cst_67 = arith.constant 0.000000e+00 : f32
    %133 = vector.broadcast %cst_67 : f32 to vector<8x128xf32>
    %134 = arith.maximumf %132, %133 : vector<8x128xf32>
    %135 = vector.extract_strided_slice %134 {offsets = [0, 0], sizes = [8, 32], strides = [1, 1]} : vector<8x128xf32> to vector<8x32xf32>
    %136 = arith.truncf %135 : vector<8x32xf32> to vector<8x32xbf16>
    %c0_68 = arith.constant 0 : index
    %c0_69 = arith.constant 0 : index
    %137 = vector.load %arg11[%c0_68, %c0_69] : memref<32x128xbf16, #tpu.memory_space<vmem>>, vector<32x128xbf16>
    %cst_70 = arith.constant dense<0.000000e+00> : vector<8x128xf32>
    %138 = tpu.matmul %136, %137, %cst_70 {dimension_numbers = #tpu.dot_dimension_numbers<[1], [0], [0], [1], [0, 0, 1, 1], [], []>} : vector<8x32xbf16>, vector<32x128xbf16>, vector<8x128xf32> -> vector<8x128xf32>
    %c0_71 = arith.constant 0 : index
    %c0_72 = arith.constant 0 : index
    %139 = vector.load %arg12[%c0_71, %c0_72] : memref<1x128xf32, #tpu.memory_space<vmem>>, vector<1x128xf32>
    %140 = vector.broadcast %139 : vector<1x128xf32> to vector<8x128xf32>
    %141 = arith.addf %138, %140 : vector<8x128xf32>
    %c8_73 = arith.constant 8 : index
    %c0_74 = arith.constant 0 : index
    %142 = vector.load %arg13[%c8_73, %c0_74] : memref<64x128xf32, #tpu.memory_space<vmem>>, vector<8x128xf32>
    tpu.vector_store %arg13[%c8_73, %c0_74], %141 {strides = array<i32>} : memref<64x128xf32, #tpu.memory_space<vmem>>, vector<8x128xf32>,
    %143 = vector.extract_strided_slice %108 {offsets = [0, 0], sizes = [8, 64], strides = [1, 1]} : vector<8x128xf32> to vector<8x64xf32>
    %144 = arith.truncf %143 : vector<8x64xf32> to vector<8x64xbf16>
    %c0_75 = arith.constant 0 : index
    %c0_76 = arith.constant 0 : index
    %145 = vector.load %arg2[%c0_75, %c0_76] : memref<64x384xbf16, #tpu.memory_space<vmem>>, vector<64x384xbf16>
    %cst_77 = arith.constant dense<0.000000e+00> : vector<8x384xf32>
    %146 = tpu.matmul %144, %145, %cst_77 {dimension_numbers = #tpu.dot_dimension_numbers<[1], [0], [0], [1], [0, 0, 1, 1], [], []>} : vector<8x64xbf16>, vector<64x384xbf16>, vector<8x384xf32> -> vector<8x384xf32>
    %c16 = arith.constant 16 : index
    %c0_78 = arith.constant 0 : index
    %147 = vector.load %arg14[%c16, %c0_78] : memref<64x384xf32, #tpu.memory_space<vmem>>, vector<8x384xf32>
    %148 = vector.extract_strided_slice %147 {offsets = [0, 0], sizes = [8, 128], strides = [1, 1]} : vector<8x384xf32> to vector<8x128xf32>
    %149 = vector.extract_strided_slice %146 {offsets = [0, 0], sizes = [8, 128], strides = [1, 1]} : vector<8x384xf32> to vector<8x128xf32>
    %150 = arith.addf %148, %149 : vector<8x128xf32>
    %151 = arith.negf %150 : vector<8x128xf32>
    %152 = math.exp %151 : vector<8x128xf32>
    %cst_79 = arith.constant 1.000000e+00 : f32
    %153 = vector.broadcast %cst_79 : f32 to vector<8x128xf32>
    %154 = arith.addf %153, %152 : vector<8x128xf32>
    %155 = arith.divf %153, %154 : vector<8x128xf32>
    %156 = vector.extract_strided_slice %147 {offsets = [0, 128], sizes = [8, 128], strides = [1, 1]} : vector<8x384xf32> to vector<8x128xf32>
    %157 = vector.extract_strided_slice %146 {offsets = [0, 128], sizes = [8, 128], strides = [1, 1]} : vector<8x384xf32> to vector<8x128xf32>
    %158 = arith.addf %156, %157 : vector<8x128xf32>
    %159 = arith.negf %158 : vector<8x128xf32>
    %160 = math.exp %159 : vector<8x128xf32>
    %cst_80 = arith.constant 1.000000e+00 : f32
    %161 = vector.broadcast %cst_80 : f32 to vector<8x128xf32>
    %162 = arith.addf %161, %160 : vector<8x128xf32>
    %163 = arith.divf %161, %162 : vector<8x128xf32>
    %164 = vector.extract_strided_slice %147 {offsets = [0, 256], sizes = [8, 128], strides = [1, 1]} : vector<8x384xf32> to vector<8x128xf32>
    %165 = vector.extract_strided_slice %146 {offsets = [0, 256], sizes = [8, 128], strides = [1, 1]} : vector<8x384xf32> to vector<8x128xf32>
    %166 = arith.addf %165, %9 : vector<8x128xf32>
    %167 = arith.mulf %155, %166 : vector<8x128xf32>
    %168 = arith.addf %164, %167 : vector<8x128xf32>
    %169 = math.tanh %168 : vector<8x128xf32>
    %cst_81 = arith.constant 1.000000e+00 : f32
    %170 = vector.broadcast %cst_81 : f32 to vector<8x128xf32>
    %171 = arith.subf %170, %163 : vector<8x128xf32>
    %172 = arith.mulf %171, %169 : vector<8x128xf32>
    %173 = arith.mulf %163, %108 : vector<8x128xf32>
    %174 = arith.addf %172, %173 : vector<8x128xf32>
    %175 = vector.extract_strided_slice %174 {offsets = [0, 0], sizes = [8, 64], strides = [1, 1]} : vector<8x128xf32> to vector<8x64xf32>
    %176 = arith.truncf %175 : vector<8x64xf32> to vector<8x64xbf16>
    %c0_82 = arith.constant 0 : index
    %c0_83 = arith.constant 0 : index
    %177 = vector.load %arg5[%c0_82, %c0_83] : memref<64x128xbf16, #tpu.memory_space<vmem>>, vector<64x128xbf16>
    %cst_84 = arith.constant dense<0.000000e+00> : vector<8x128xf32>
    %178 = tpu.matmul %176, %177, %cst_84 {dimension_numbers = #tpu.dot_dimension_numbers<[1], [0], [0], [1], [0, 0, 1, 1], [], []>} : vector<8x64xbf16>, vector<64x128xbf16>, vector<8x128xf32> -> vector<8x128xf32>
    %c0_85 = arith.constant 0 : index
    %c0_86 = arith.constant 0 : index
    %179 = vector.load %arg6[%c0_85, %c0_86] : memref<1x128xf32, #tpu.memory_space<vmem>>, vector<1x128xf32>
    %180 = vector.broadcast %179 : vector<1x128xf32> to vector<8x128xf32>
    %181 = arith.addf %178, %180 : vector<8x128xf32>
    %cst_87 = arith.constant 0.000000e+00 : f32
    %182 = vector.broadcast %cst_87 : f32 to vector<8x128xf32>
    %183 = arith.maximumf %181, %182 : vector<8x128xf32>
    %184 = arith.truncf %183 : vector<8x128xf32> to vector<8x128xbf16>
    %c0_88 = arith.constant 0 : index
    %c0_89 = arith.constant 0 : index
    %185 = vector.load %arg7[%c0_88, %c0_89] : memref<128x128xbf16, #tpu.memory_space<vmem>>, vector<128x128xbf16>
    %cst_90 = arith.constant dense<0.000000e+00> : vector<8x128xf32>
    %186 = tpu.matmul %184, %185, %cst_90 {dimension_numbers = #tpu.dot_dimension_numbers<[1], [0], [0], [1], [0, 0, 1, 1], [], []>} : vector<8x128xbf16>, vector<128x128xbf16>, vector<8x128xf32> -> vector<8x128xf32>
    %c0_91 = arith.constant 0 : index
    %c0_92 = arith.constant 0 : index
    %187 = vector.load %arg8[%c0_91, %c0_92] : memref<1x128xf32, #tpu.memory_space<vmem>>, vector<1x128xf32>
    %188 = vector.broadcast %187 : vector<1x128xf32> to vector<8x128xf32>
    %189 = arith.addf %186, %188 : vector<8x128xf32>
    %cst_93 = arith.constant 0.000000e+00 : f32
    %190 = vector.broadcast %cst_93 : f32 to vector<8x128xf32>
    %191 = arith.maximumf %189, %190 : vector<8x128xf32>
    %192 = vector.extract_strided_slice %191 {offsets = [0, 0], sizes = [8, 64], strides = [1, 1]} : vector<8x128xf32> to vector<8x64xf32>
    %193 = arith.truncf %192 : vector<8x64xf32> to vector<8x64xbf16>
    %c0_94 = arith.constant 0 : index
    %c0_95 = arith.constant 0 : index
    %194 = vector.load %arg9[%c0_94, %c0_95] : memref<64x128xbf16, #tpu.memory_space<vmem>>, vector<64x128xbf16>
    %cst_96 = arith.constant dense<0.000000e+00> : vector<8x128xf32>
    %195 = tpu.matmul %193, %194, %cst_96 {dimension_numbers = #tpu.dot_dimension_numbers<[1], [0], [0], [1], [0, 0, 1, 1], [], []>} : vector<8x64xbf16>, vector<64x128xbf16>, vector<8x128xf32> -> vector<8x128xf32>
    %c0_97 = arith.constant 0 : index
    %c0_98 = arith.constant 0 : index
    %196 = vector.load %arg10[%c0_97, %c0_98] : memref<1x128xf32, #tpu.memory_space<vmem>>, vector<1x128xf32>
    %197 = vector.broadcast %196 : vector<1x128xf32> to vector<8x128xf32>
    %198 = arith.addf %195, %197 : vector<8x128xf32>
    %cst_99 = arith.constant 0.000000e+00 : f32
    %199 = vector.broadcast %cst_99 : f32 to vector<8x128xf32>
    %200 = arith.maximumf %198, %199 : vector<8x128xf32>
    %201 = vector.extract_strided_slice %200 {offsets = [0, 0], sizes = [8, 32], strides = [1, 1]} : vector<8x128xf32> to vector<8x32xf32>
    %202 = arith.truncf %201 : vector<8x32xf32> to vector<8x32xbf16>
    %c0_100 = arith.constant 0 : index
    %c0_101 = arith.constant 0 : index
    %203 = vector.load %arg11[%c0_100, %c0_101] : memref<32x128xbf16, #tpu.memory_space<vmem>>, vector<32x128xbf16>
    %cst_102 = arith.constant dense<0.000000e+00> : vector<8x128xf32>
    %204 = tpu.matmul %202, %203, %cst_102 {dimension_numbers = #tpu.dot_dimension_numbers<[1], [0], [0], [1], [0, 0, 1, 1], [], []>} : vector<8x32xbf16>, vector<32x128xbf16>, vector<8x128xf32> -> vector<8x128xf32>
    %c0_103 = arith.constant 0 : index
    %c0_104 = arith.constant 0 : index
    %205 = vector.load %arg12[%c0_103, %c0_104] : memref<1x128xf32, #tpu.memory_space<vmem>>, vector<1x128xf32>
    %206 = vector.broadcast %205 : vector<1x128xf32> to vector<8x128xf32>
    %207 = arith.addf %204, %206 : vector<8x128xf32>
    %c16_105 = arith.constant 16 : index
    %c0_106 = arith.constant 0 : index
    %208 = vector.load %arg13[%c16_105, %c0_106] : memref<64x128xf32, #tpu.memory_space<vmem>>, vector<8x128xf32>
    tpu.vector_store %arg13[%c16_105, %c0_106], %207 {strides = array<i32>} : memref<64x128xf32, #tpu.memory_space<vmem>>, vector<8x128xf32>,
    %209 = vector.extract_strided_slice %174 {offsets = [0, 0], sizes = [8, 64], strides = [1, 1]} : vector<8x128xf32> to vector<8x64xf32>
    %210 = arith.truncf %209 : vector<8x64xf32> to vector<8x64xbf16>
    %c0_107 = arith.constant 0 : index
    %c0_108 = arith.constant 0 : index
    %211 = vector.load %arg2[%c0_107, %c0_108] : memref<64x384xbf16, #tpu.memory_space<vmem>>, vector<64x384xbf16>
    %cst_109 = arith.constant dense<0.000000e+00> : vector<8x384xf32>
    %212 = tpu.matmul %210, %211, %cst_109 {dimension_numbers = #tpu.dot_dimension_numbers<[1], [0], [0], [1], [0, 0, 1, 1], [], []>} : vector<8x64xbf16>, vector<64x384xbf16>, vector<8x384xf32> -> vector<8x384xf32>
    %c24 = arith.constant 24 : index
    %c0_110 = arith.constant 0 : index
    %213 = vector.load %arg14[%c24, %c0_110] : memref<64x384xf32, #tpu.memory_space<vmem>>, vector<8x384xf32>
    %214 = vector.extract_strided_slice %213 {offsets = [0, 0], sizes = [8, 128], strides = [1, 1]} : vector<8x384xf32> to vector<8x128xf32>
    %215 = vector.extract_strided_slice %212 {offsets = [0, 0], sizes = [8, 128], strides = [1, 1]} : vector<8x384xf32> to vector<8x128xf32>
    %216 = arith.addf %214, %215 : vector<8x128xf32>
    %217 = arith.negf %216 : vector<8x128xf32>
    %218 = math.exp %217 : vector<8x128xf32>
    %cst_111 = arith.constant 1.000000e+00 : f32
    %219 = vector.broadcast %cst_111 : f32 to vector<8x128xf32>
    %220 = arith.addf %219, %218 : vector<8x128xf32>
    %221 = arith.divf %219, %220 : vector<8x128xf32>
    %222 = vector.extract_strided_slice %213 {offsets = [0, 128], sizes = [8, 128], strides = [1, 1]} : vector<8x384xf32> to vector<8x128xf32>
    %223 = vector.extract_strided_slice %212 {offsets = [0, 128], sizes = [8, 128], strides = [1, 1]} : vector<8x384xf32> to vector<8x128xf32>
    %224 = arith.addf %222, %223 : vector<8x128xf32>
    %225 = arith.negf %224 : vector<8x128xf32>
    %226 = math.exp %225 : vector<8x128xf32>
    %cst_112 = arith.constant 1.000000e+00 : f32
    %227 = vector.broadcast %cst_112 : f32 to vector<8x128xf32>
    %228 = arith.addf %227, %226 : vector<8x128xf32>
    %229 = arith.divf %227, %228 : vector<8x128xf32>
    %230 = vector.extract_strided_slice %213 {offsets = [0, 256], sizes = [8, 128], strides = [1, 1]} : vector<8x384xf32> to vector<8x128xf32>
    %231 = vector.extract_strided_slice %212 {offsets = [0, 256], sizes = [8, 128], strides = [1, 1]} : vector<8x384xf32> to vector<8x128xf32>
    %232 = arith.addf %231, %9 : vector<8x128xf32>
    %233 = arith.mulf %221, %232 : vector<8x128xf32>
    %234 = arith.addf %230, %233 : vector<8x128xf32>
    %235 = math.tanh %234 : vector<8x128xf32>
    %cst_113 = arith.constant 1.000000e+00 : f32
    %236 = vector.broadcast %cst_113 : f32 to vector<8x128xf32>
    %237 = arith.subf %236, %229 : vector<8x128xf32>
    %238 = arith.mulf %237, %235 : vector<8x128xf32>
    %239 = arith.mulf %229, %174 : vector<8x128xf32>
    %240 = arith.addf %238, %239 : vector<8x128xf32>
    %241 = vector.extract_strided_slice %240 {offsets = [0, 0], sizes = [8, 64], strides = [1, 1]} : vector<8x128xf32> to vector<8x64xf32>
    %242 = arith.truncf %241 : vector<8x64xf32> to vector<8x64xbf16>
    %c0_114 = arith.constant 0 : index
    %c0_115 = arith.constant 0 : index
    %243 = vector.load %arg5[%c0_114, %c0_115] : memref<64x128xbf16, #tpu.memory_space<vmem>>, vector<64x128xbf16>
    %cst_116 = arith.constant dense<0.000000e+00> : vector<8x128xf32>
    %244 = tpu.matmul %242, %243, %cst_116 {dimension_numbers = #tpu.dot_dimension_numbers<[1], [0], [0], [1], [0, 0, 1, 1], [], []>} : vector<8x64xbf16>, vector<64x128xbf16>, vector<8x128xf32> -> vector<8x128xf32>
    %c0_117 = arith.constant 0 : index
    %c0_118 = arith.constant 0 : index
    %245 = vector.load %arg6[%c0_117, %c0_118] : memref<1x128xf32, #tpu.memory_space<vmem>>, vector<1x128xf32>
    %246 = vector.broadcast %245 : vector<1x128xf32> to vector<8x128xf32>
    %247 = arith.addf %244, %246 : vector<8x128xf32>
    %cst_119 = arith.constant 0.000000e+00 : f32
    %248 = vector.broadcast %cst_119 : f32 to vector<8x128xf32>
    %249 = arith.maximumf %247, %248 : vector<8x128xf32>
    %250 = arith.truncf %249 : vector<8x128xf32> to vector<8x128xbf16>
    %c0_120 = arith.constant 0 : index
    %c0_121 = arith.constant 0 : index
    %251 = vector.load %arg7[%c0_120, %c0_121] : memref<128x128xbf16, #tpu.memory_space<vmem>>, vector<128x128xbf16>
    %cst_122 = arith.constant dense<0.000000e+00> : vector<8x128xf32>
    %252 = tpu.matmul %250, %251, %cst_122 {dimension_numbers = #tpu.dot_dimension_numbers<[1], [0], [0], [1], [0, 0, 1, 1], [], []>} : vector<8x128xbf16>, vector<128x128xbf16>, vector<8x128xf32> -> vector<8x128xf32>
    %c0_123 = arith.constant 0 : index
    %c0_124 = arith.constant 0 : index
    %253 = vector.load %arg8[%c0_123, %c0_124] : memref<1x128xf32, #tpu.memory_space<vmem>>, vector<1x128xf32>
    %254 = vector.broadcast %253 : vector<1x128xf32> to vector<8x128xf32>
    %255 = arith.addf %252, %254 : vector<8x128xf32>
    %cst_125 = arith.constant 0.000000e+00 : f32
    %256 = vector.broadcast %cst_125 : f32 to vector<8x128xf32>
    %257 = arith.maximumf %255, %256 : vector<8x128xf32>
    %258 = vector.extract_strided_slice %257 {offsets = [0, 0], sizes = [8, 64], strides = [1, 1]} : vector<8x128xf32> to vector<8x64xf32>
    %259 = arith.truncf %258 : vector<8x64xf32> to vector<8x64xbf16>
    %c0_126 = arith.constant 0 : index
    %c0_127 = arith.constant 0 : index
    %260 = vector.load %arg9[%c0_126, %c0_127] : memref<64x128xbf16, #tpu.memory_space<vmem>>, vector<64x128xbf16>
    %cst_128 = arith.constant dense<0.000000e+00> : vector<8x128xf32>
    %261 = tpu.matmul %259, %260, %cst_128 {dimension_numbers = #tpu.dot_dimension_numbers<[1], [0], [0], [1], [0, 0, 1, 1], [], []>} : vector<8x64xbf16>, vector<64x128xbf16>, vector<8x128xf32> -> vector<8x128xf32>
    %c0_129 = arith.constant 0 : index
    %c0_130 = arith.constant 0 : index
    %262 = vector.load %arg10[%c0_129, %c0_130] : memref<1x128xf32, #tpu.memory_space<vmem>>, vector<1x128xf32>
    %263 = vector.broadcast %262 : vector<1x128xf32> to vector<8x128xf32>
    %264 = arith.addf %261, %263 : vector<8x128xf32>
    %cst_131 = arith.constant 0.000000e+00 : f32
    %265 = vector.broadcast %cst_131 : f32 to vector<8x128xf32>
    %266 = arith.maximumf %264, %265 : vector<8x128xf32>
    %267 = vector.extract_strided_slice %266 {offsets = [0, 0], sizes = [8, 32], strides = [1, 1]} : vector<8x128xf32> to vector<8x32xf32>
    %268 = arith.truncf %267 : vector<8x32xf32> to vector<8x32xbf16>
    %c0_132 = arith.constant 0 : index
    %c0_133 = arith.constant 0 : index
    %269 = vector.load %arg11[%c0_132, %c0_133] : memref<32x128xbf16, #tpu.memory_space<vmem>>, vector<32x128xbf16>
    %cst_134 = arith.constant dense<0.000000e+00> : vector<8x128xf32>
    %270 = tpu.matmul %268, %269, %cst_134 {dimension_numbers = #tpu.dot_dimension_numbers<[1], [0], [0], [1], [0, 0, 1, 1], [], []>} : vector<8x32xbf16>, vector<32x128xbf16>, vector<8x128xf32> -> vector<8x128xf32>
    %c0_135 = arith.constant 0 : index
    %c0_136 = arith.constant 0 : index
    %271 = vector.load %arg12[%c0_135, %c0_136] : memref<1x128xf32, #tpu.memory_space<vmem>>, vector<1x128xf32>
    %272 = vector.broadcast %271 : vector<1x128xf32> to vector<8x128xf32>
    %273 = arith.addf %270, %272 : vector<8x128xf32>
    %c24_137 = arith.constant 24 : index
    %c0_138 = arith.constant 0 : index
    %274 = vector.load %arg13[%c24_137, %c0_138] : memref<64x128xf32, #tpu.memory_space<vmem>>, vector<8x128xf32>
    tpu.vector_store %arg13[%c24_137, %c0_138], %273 {strides = array<i32>} : memref<64x128xf32, #tpu.memory_space<vmem>>, vector<8x128xf32>,
    %275 = vector.extract_strided_slice %240 {offsets = [0, 0], sizes = [8, 64], strides = [1, 1]} : vector<8x128xf32> to vector<8x64xf32>
    %276 = arith.truncf %275 : vector<8x64xf32> to vector<8x64xbf16>
    %c0_139 = arith.constant 0 : index
    %c0_140 = arith.constant 0 : index
    %277 = vector.load %arg2[%c0_139, %c0_140] : memref<64x384xbf16, #tpu.memory_space<vmem>>, vector<64x384xbf16>
    %cst_141 = arith.constant dense<0.000000e+00> : vector<8x384xf32>
    %278 = tpu.matmul %276, %277, %cst_141 {dimension_numbers = #tpu.dot_dimension_numbers<[1], [0], [0], [1], [0, 0, 1, 1], [], []>} : vector<8x64xbf16>, vector<64x384xbf16>, vector<8x384xf32> -> vector<8x384xf32>
    %c32 = arith.constant 32 : index
    %c0_142 = arith.constant 0 : index
    %279 = vector.load %arg14[%c32, %c0_142] : memref<64x384xf32, #tpu.memory_space<vmem>>, vector<8x384xf32>
    %280 = vector.extract_strided_slice %279 {offsets = [0, 0], sizes = [8, 128], strides = [1, 1]} : vector<8x384xf32> to vector<8x128xf32>
    %281 = vector.extract_strided_slice %278 {offsets = [0, 0], sizes = [8, 128], strides = [1, 1]} : vector<8x384xf32> to vector<8x128xf32>
    %282 = arith.addf %280, %281 : vector<8x128xf32>
    %283 = arith.negf %282 : vector<8x128xf32>
    %284 = math.exp %283 : vector<8x128xf32>
    %cst_143 = arith.constant 1.000000e+00 : f32
    %285 = vector.broadcast %cst_143 : f32 to vector<8x128xf32>
    %286 = arith.addf %285, %284 : vector<8x128xf32>
    %287 = arith.divf %285, %286 : vector<8x128xf32>
    %288 = vector.extract_strided_slice %279 {offsets = [0, 128], sizes = [8, 128], strides = [1, 1]} : vector<8x384xf32> to vector<8x128xf32>
    %289 = vector.extract_strided_slice %278 {offsets = [0, 128], sizes = [8, 128], strides = [1, 1]} : vector<8x384xf32> to vector<8x128xf32>
    %290 = arith.addf %288, %289 : vector<8x128xf32>
    %291 = arith.negf %290 : vector<8x128xf32>
    %292 = math.exp %291 : vector<8x128xf32>
    %cst_144 = arith.constant 1.000000e+00 : f32
    %293 = vector.broadcast %cst_144 : f32 to vector<8x128xf32>
    %294 = arith.addf %293, %292 : vector<8x128xf32>
    %295 = arith.divf %293, %294 : vector<8x128xf32>
    %296 = vector.extract_strided_slice %279 {offsets = [0, 256], sizes = [8, 128], strides = [1, 1]} : vector<8x384xf32> to vector<8x128xf32>
    %297 = vector.extract_strided_slice %278 {offsets = [0, 256], sizes = [8, 128], strides = [1, 1]} : vector<8x384xf32> to vector<8x128xf32>
    %298 = arith.addf %297, %9 : vector<8x128xf32>
    %299 = arith.mulf %287, %298 : vector<8x128xf32>
    %300 = arith.addf %296, %299 : vector<8x128xf32>
    %301 = math.tanh %300 : vector<8x128xf32>
    %cst_145 = arith.constant 1.000000e+00 : f32
    %302 = vector.broadcast %cst_145 : f32 to vector<8x128xf32>
    %303 = arith.subf %302, %295 : vector<8x128xf32>
    %304 = arith.mulf %303, %301 : vector<8x128xf32>
    %305 = arith.mulf %295, %240 : vector<8x128xf32>
    %306 = arith.addf %304, %305 : vector<8x128xf32>
    %307 = vector.extract_strided_slice %306 {offsets = [0, 0], sizes = [8, 64], strides = [1, 1]} : vector<8x128xf32> to vector<8x64xf32>
    %308 = arith.truncf %307 : vector<8x64xf32> to vector<8x64xbf16>
    %c0_146 = arith.constant 0 : index
    %c0_147 = arith.constant 0 : index
    %309 = vector.load %arg5[%c0_146, %c0_147] : memref<64x128xbf16, #tpu.memory_space<vmem>>, vector<64x128xbf16>
    %cst_148 = arith.constant dense<0.000000e+00> : vector<8x128xf32>
    %310 = tpu.matmul %308, %309, %cst_148 {dimension_numbers = #tpu.dot_dimension_numbers<[1], [0], [0], [1], [0, 0, 1, 1], [], []>} : vector<8x64xbf16>, vector<64x128xbf16>, vector<8x128xf32> -> vector<8x128xf32>
    %c0_149 = arith.constant 0 : index
    %c0_150 = arith.constant 0 : index
    %311 = vector.load %arg6[%c0_149, %c0_150] : memref<1x128xf32, #tpu.memory_space<vmem>>, vector<1x128xf32>
    %312 = vector.broadcast %311 : vector<1x128xf32> to vector<8x128xf32>
    %313 = arith.addf %310, %312 : vector<8x128xf32>
    %cst_151 = arith.constant 0.000000e+00 : f32
    %314 = vector.broadcast %cst_151 : f32 to vector<8x128xf32>
    %315 = arith.maximumf %313, %314 : vector<8x128xf32>
    %316 = arith.truncf %315 : vector<8x128xf32> to vector<8x128xbf16>
    %c0_152 = arith.constant 0 : index
    %c0_153 = arith.constant 0 : index
    %317 = vector.load %arg7[%c0_152, %c0_153] : memref<128x128xbf16, #tpu.memory_space<vmem>>, vector<128x128xbf16>
    %cst_154 = arith.constant dense<0.000000e+00> : vector<8x128xf32>
    %318 = tpu.matmul %316, %317, %cst_154 {dimension_numbers = #tpu.dot_dimension_numbers<[1], [0], [0], [1], [0, 0, 1, 1], [], []>} : vector<8x128xbf16>, vector<128x128xbf16>, vector<8x128xf32> -> vector<8x128xf32>
    %c0_155 = arith.constant 0 : index
    %c0_156 = arith.constant 0 : index
    %319 = vector.load %arg8[%c0_155, %c0_156] : memref<1x128xf32, #tpu.memory_space<vmem>>, vector<1x128xf32>
    %320 = vector.broadcast %319 : vector<1x128xf32> to vector<8x128xf32>
    %321 = arith.addf %318, %320 : vector<8x128xf32>
    %cst_157 = arith.constant 0.000000e+00 : f32
    %322 = vector.broadcast %cst_157 : f32 to vector<8x128xf32>
    %323 = arith.maximumf %321, %322 : vector<8x128xf32>
    %324 = vector.extract_strided_slice %323 {offsets = [0, 0], sizes = [8, 64], strides = [1, 1]} : vector<8x128xf32> to vector<8x64xf32>
    %325 = arith.truncf %324 : vector<8x64xf32> to vector<8x64xbf16>
    %c0_158 = arith.constant 0 : index
    %c0_159 = arith.constant 0 : index
    %326 = vector.load %arg9[%c0_158, %c0_159] : memref<64x128xbf16, #tpu.memory_space<vmem>>, vector<64x128xbf16>
    %cst_160 = arith.constant dense<0.000000e+00> : vector<8x128xf32>
    %327 = tpu.matmul %325, %326, %cst_160 {dimension_numbers = #tpu.dot_dimension_numbers<[1], [0], [0], [1], [0, 0, 1, 1], [], []>} : vector<8x64xbf16>, vector<64x128xbf16>, vector<8x128xf32> -> vector<8x128xf32>
    %c0_161 = arith.constant 0 : index
    %c0_162 = arith.constant 0 : index
    %328 = vector.load %arg10[%c0_161, %c0_162] : memref<1x128xf32, #tpu.memory_space<vmem>>, vector<1x128xf32>
    %329 = vector.broadcast %328 : vector<1x128xf32> to vector<8x128xf32>
    %330 = arith.addf %327, %329 : vector<8x128xf32>
    %cst_163 = arith.constant 0.000000e+00 : f32
    %331 = vector.broadcast %cst_163 : f32 to vector<8x128xf32>
    %332 = arith.maximumf %330, %331 : vector<8x128xf32>
    %333 = vector.extract_strided_slice %332 {offsets = [0, 0], sizes = [8, 32], strides = [1, 1]} : vector<8x128xf32> to vector<8x32xf32>
    %334 = arith.truncf %333 : vector<8x32xf32> to vector<8x32xbf16>
    %c0_164 = arith.constant 0 : index
    %c0_165 = arith.constant 0 : index
    %335 = vector.load %arg11[%c0_164, %c0_165] : memref<32x128xbf16, #tpu.memory_space<vmem>>, vector<32x128xbf16>
    %cst_166 = arith.constant dense<0.000000e+00> : vector<8x128xf32>
    %336 = tpu.matmul %334, %335, %cst_166 {dimension_numbers = #tpu.dot_dimension_numbers<[1], [0], [0], [1], [0, 0, 1, 1], [], []>} : vector<8x32xbf16>, vector<32x128xbf16>, vector<8x128xf32> -> vector<8x128xf32>
    %c0_167 = arith.constant 0 : index
    %c0_168 = arith.constant 0 : index
    %337 = vector.load %arg12[%c0_167, %c0_168] : memref<1x128xf32, #tpu.memory_space<vmem>>, vector<1x128xf32>
    %338 = vector.broadcast %337 : vector<1x128xf32> to vector<8x128xf32>
    %339 = arith.addf %336, %338 : vector<8x128xf32>
    %c32_169 = arith.constant 32 : index
    %c0_170 = arith.constant 0 : index
    %340 = vector.load %arg13[%c32_169, %c0_170] : memref<64x128xf32, #tpu.memory_space<vmem>>, vector<8x128xf32>
    tpu.vector_store %arg13[%c32_169, %c0_170], %339 {strides = array<i32>} : memref<64x128xf32, #tpu.memory_space<vmem>>, vector<8x128xf32>,
    %341 = vector.extract_strided_slice %306 {offsets = [0, 0], sizes = [8, 64], strides = [1, 1]} : vector<8x128xf32> to vector<8x64xf32>
    %342 = arith.truncf %341 : vector<8x64xf32> to vector<8x64xbf16>
    %c0_171 = arith.constant 0 : index
    %c0_172 = arith.constant 0 : index
    %343 = vector.load %arg2[%c0_171, %c0_172] : memref<64x384xbf16, #tpu.memory_space<vmem>>, vector<64x384xbf16>
    %cst_173 = arith.constant dense<0.000000e+00> : vector<8x384xf32>
    %344 = tpu.matmul %342, %343, %cst_173 {dimension_numbers = #tpu.dot_dimension_numbers<[1], [0], [0], [1], [0, 0, 1, 1], [], []>} : vector<8x64xbf16>, vector<64x384xbf16>, vector<8x384xf32> -> vector<8x384xf32>
    %c40 = arith.constant 40 : index
    %c0_174 = arith.constant 0 : index
    %345 = vector.load %arg14[%c40, %c0_174] : memref<64x384xf32, #tpu.memory_space<vmem>>, vector<8x384xf32>
    %346 = vector.extract_strided_slice %345 {offsets = [0, 0], sizes = [8, 128], strides = [1, 1]} : vector<8x384xf32> to vector<8x128xf32>
    %347 = vector.extract_strided_slice %344 {offsets = [0, 0], sizes = [8, 128], strides = [1, 1]} : vector<8x384xf32> to vector<8x128xf32>
    %348 = arith.addf %346, %347 : vector<8x128xf32>
    %349 = arith.negf %348 : vector<8x128xf32>
    %350 = math.exp %349 : vector<8x128xf32>
    %cst_175 = arith.constant 1.000000e+00 : f32
    %351 = vector.broadcast %cst_175 : f32 to vector<8x128xf32>
    %352 = arith.addf %351, %350 : vector<8x128xf32>
    %353 = arith.divf %351, %352 : vector<8x128xf32>
    %354 = vector.extract_strided_slice %345 {offsets = [0, 128], sizes = [8, 128], strides = [1, 1]} : vector<8x384xf32> to vector<8x128xf32>
    %355 = vector.extract_strided_slice %344 {offsets = [0, 128], sizes = [8, 128], strides = [1, 1]} : vector<8x384xf32> to vector<8x128xf32>
    %356 = arith.addf %354, %355 : vector<8x128xf32>
    %357 = arith.negf %356 : vector<8x128xf32>
    %358 = math.exp %357 : vector<8x128xf32>
    %cst_176 = arith.constant 1.000000e+00 : f32
    %359 = vector.broadcast %cst_176 : f32 to vector<8x128xf32>
    %360 = arith.addf %359, %358 : vector<8x128xf32>
    %361 = arith.divf %359, %360 : vector<8x128xf32>
    %362 = vector.extract_strided_slice %345 {offsets = [0, 256], sizes = [8, 128], strides = [1, 1]} : vector<8x384xf32> to vector<8x128xf32>
    %363 = vector.extract_strided_slice %344 {offsets = [0, 256], sizes = [8, 128], strides = [1, 1]} : vector<8x384xf32> to vector<8x128xf32>
    %364 = arith.addf %363, %9 : vector<8x128xf32>
    %365 = arith.mulf %353, %364 : vector<8x128xf32>
    %366 = arith.addf %362, %365 : vector<8x128xf32>
    %367 = math.tanh %366 : vector<8x128xf32>
    %cst_177 = arith.constant 1.000000e+00 : f32
    %368 = vector.broadcast %cst_177 : f32 to vector<8x128xf32>
    %369 = arith.subf %368, %361 : vector<8x128xf32>
    %370 = arith.mulf %369, %367 : vector<8x128xf32>
    %371 = arith.mulf %361, %306 : vector<8x128xf32>
    %372 = arith.addf %370, %371 : vector<8x128xf32>
    %373 = vector.extract_strided_slice %372 {offsets = [0, 0], sizes = [8, 64], strides = [1, 1]} : vector<8x128xf32> to vector<8x64xf32>
    %374 = arith.truncf %373 : vector<8x64xf32> to vector<8x64xbf16>
    %c0_178 = arith.constant 0 : index
    %c0_179 = arith.constant 0 : index
    %375 = vector.load %arg5[%c0_178, %c0_179] : memref<64x128xbf16, #tpu.memory_space<vmem>>, vector<64x128xbf16>
    %cst_180 = arith.constant dense<0.000000e+00> : vector<8x128xf32>
    %376 = tpu.matmul %374, %375, %cst_180 {dimension_numbers = #tpu.dot_dimension_numbers<[1], [0], [0], [1], [0, 0, 1, 1], [], []>} : vector<8x64xbf16>, vector<64x128xbf16>, vector<8x128xf32> -> vector<8x128xf32>
    %c0_181 = arith.constant 0 : index
    %c0_182 = arith.constant 0 : index
    %377 = vector.load %arg6[%c0_181, %c0_182] : memref<1x128xf32, #tpu.memory_space<vmem>>, vector<1x128xf32>
    %378 = vector.broadcast %377 : vector<1x128xf32> to vector<8x128xf32>
    %379 = arith.addf %376, %378 : vector<8x128xf32>
    %cst_183 = arith.constant 0.000000e+00 : f32
    %380 = vector.broadcast %cst_183 : f32 to vector<8x128xf32>
    %381 = arith.maximumf %379, %380 : vector<8x128xf32>
    %382 = arith.truncf %381 : vector<8x128xf32> to vector<8x128xbf16>
    %c0_184 = arith.constant 0 : index
    %c0_185 = arith.constant 0 : index
    %383 = vector.load %arg7[%c0_184, %c0_185] : memref<128x128xbf16, #tpu.memory_space<vmem>>, vector<128x128xbf16>
    %cst_186 = arith.constant dense<0.000000e+00> : vector<8x128xf32>
    %384 = tpu.matmul %382, %383, %cst_186 {dimension_numbers = #tpu.dot_dimension_numbers<[1], [0], [0], [1], [0, 0, 1, 1], [], []>} : vector<8x128xbf16>, vector<128x128xbf16>, vector<8x128xf32> -> vector<8x128xf32>
    %c0_187 = arith.constant 0 : index
    %c0_188 = arith.constant 0 : index
    %385 = vector.load %arg8[%c0_187, %c0_188] : memref<1x128xf32, #tpu.memory_space<vmem>>, vector<1x128xf32>
    %386 = vector.broadcast %385 : vector<1x128xf32> to vector<8x128xf32>
    %387 = arith.addf %384, %386 : vector<8x128xf32>
    %cst_189 = arith.constant 0.000000e+00 : f32
    %388 = vector.broadcast %cst_189 : f32 to vector<8x128xf32>
    %389 = arith.maximumf %387, %388 : vector<8x128xf32>
    %390 = vector.extract_strided_slice %389 {offsets = [0, 0], sizes = [8, 64], strides = [1, 1]} : vector<8x128xf32> to vector<8x64xf32>
    %391 = arith.truncf %390 : vector<8x64xf32> to vector<8x64xbf16>
    %c0_190 = arith.constant 0 : index
    %c0_191 = arith.constant 0 : index
    %392 = vector.load %arg9[%c0_190, %c0_191] : memref<64x128xbf16, #tpu.memory_space<vmem>>, vector<64x128xbf16>
    %cst_192 = arith.constant dense<0.000000e+00> : vector<8x128xf32>
    %393 = tpu.matmul %391, %392, %cst_192 {dimension_numbers = #tpu.dot_dimension_numbers<[1], [0], [0], [1], [0, 0, 1, 1], [], []>} : vector<8x64xbf16>, vector<64x128xbf16>, vector<8x128xf32> -> vector<8x128xf32>
    %c0_193 = arith.constant 0 : index
    %c0_194 = arith.constant 0 : index
    %394 = vector.load %arg10[%c0_193, %c0_194] : memref<1x128xf32, #tpu.memory_space<vmem>>, vector<1x128xf32>
    %395 = vector.broadcast %394 : vector<1x128xf32> to vector<8x128xf32>
    %396 = arith.addf %393, %395 : vector<8x128xf32>
    %cst_195 = arith.constant 0.000000e+00 : f32
    %397 = vector.broadcast %cst_195 : f32 to vector<8x128xf32>
    %398 = arith.maximumf %396, %397 : vector<8x128xf32>
    %399 = vector.extract_strided_slice %398 {offsets = [0, 0], sizes = [8, 32], strides = [1, 1]} : vector<8x128xf32> to vector<8x32xf32>
    %400 = arith.truncf %399 : vector<8x32xf32> to vector<8x32xbf16>
    %c0_196 = arith.constant 0 : index
    %c0_197 = arith.constant 0 : index
    %401 = vector.load %arg11[%c0_196, %c0_197] : memref<32x128xbf16, #tpu.memory_space<vmem>>, vector<32x128xbf16>
    %cst_198 = arith.constant dense<0.000000e+00> : vector<8x128xf32>
    %402 = tpu.matmul %400, %401, %cst_198 {dimension_numbers = #tpu.dot_dimension_numbers<[1], [0], [0], [1], [0, 0, 1, 1], [], []>} : vector<8x32xbf16>, vector<32x128xbf16>, vector<8x128xf32> -> vector<8x128xf32>
    %c0_199 = arith.constant 0 : index
    %c0_200 = arith.constant 0 : index
    %403 = vector.load %arg12[%c0_199, %c0_200] : memref<1x128xf32, #tpu.memory_space<vmem>>, vector<1x128xf32>
    %404 = vector.broadcast %403 : vector<1x128xf32> to vector<8x128xf32>
    %405 = arith.addf %402, %404 : vector<8x128xf32>
    %c40_201 = arith.constant 40 : index
    %c0_202 = arith.constant 0 : index
    %406 = vector.load %arg13[%c40_201, %c0_202] : memref<64x128xf32, #tpu.memory_space<vmem>>, vector<8x128xf32>
    tpu.vector_store %arg13[%c40_201, %c0_202], %405 {strides = array<i32>} : memref<64x128xf32, #tpu.memory_space<vmem>>, vector<8x128xf32>,
    %407 = vector.extract_strided_slice %372 {offsets = [0, 0], sizes = [8, 64], strides = [1, 1]} : vector<8x128xf32> to vector<8x64xf32>
    %408 = arith.truncf %407 : vector<8x64xf32> to vector<8x64xbf16>
    %c0_203 = arith.constant 0 : index
    %c0_204 = arith.constant 0 : index
    %409 = vector.load %arg2[%c0_203, %c0_204] : memref<64x384xbf16, #tpu.memory_space<vmem>>, vector<64x384xbf16>
    %cst_205 = arith.constant dense<0.000000e+00> : vector<8x384xf32>
    %410 = tpu.matmul %408, %409, %cst_205 {dimension_numbers = #tpu.dot_dimension_numbers<[1], [0], [0], [1], [0, 0, 1, 1], [], []>} : vector<8x64xbf16>, vector<64x384xbf16>, vector<8x384xf32> -> vector<8x384xf32>
    %c48 = arith.constant 48 : index
    %c0_206 = arith.constant 0 : index
    %411 = vector.load %arg14[%c48, %c0_206] : memref<64x384xf32, #tpu.memory_space<vmem>>, vector<8x384xf32>
    %412 = vector.extract_strided_slice %411 {offsets = [0, 0], sizes = [8, 128], strides = [1, 1]} : vector<8x384xf32> to vector<8x128xf32>
    %413 = vector.extract_strided_slice %410 {offsets = [0, 0], sizes = [8, 128], strides = [1, 1]} : vector<8x384xf32> to vector<8x128xf32>
    %414 = arith.addf %412, %413 : vector<8x128xf32>
    %415 = arith.negf %414 : vector<8x128xf32>
    %416 = math.exp %415 : vector<8x128xf32>
    %cst_207 = arith.constant 1.000000e+00 : f32
    %417 = vector.broadcast %cst_207 : f32 to vector<8x128xf32>
    %418 = arith.addf %417, %416 : vector<8x128xf32>
    %419 = arith.divf %417, %418 : vector<8x128xf32>
    %420 = vector.extract_strided_slice %411 {offsets = [0, 128], sizes = [8, 128], strides = [1, 1]} : vector<8x384xf32> to vector<8x128xf32>
    %421 = vector.extract_strided_slice %410 {offsets = [0, 128], sizes = [8, 128], strides = [1, 1]} : vector<8x384xf32> to vector<8x128xf32>
    %422 = arith.addf %420, %421 : vector<8x128xf32>
    %423 = arith.negf %422 : vector<8x128xf32>
    %424 = math.exp %423 : vector<8x128xf32>
    %cst_208 = arith.constant 1.000000e+00 : f32
    %425 = vector.broadcast %cst_208 : f32 to vector<8x128xf32>
    %426 = arith.addf %425, %424 : vector<8x128xf32>
    %427 = arith.divf %425, %426 : vector<8x128xf32>
    %428 = vector.extract_strided_slice %411 {offsets = [0, 256], sizes = [8, 128], strides = [1, 1]} : vector<8x384xf32> to vector<8x128xf32>
    %429 = vector.extract_strided_slice %410 {offsets = [0, 256], sizes = [8, 128], strides = [1, 1]} : vector<8x384xf32> to vector<8x128xf32>
    %430 = arith.addf %429, %9 : vector<8x128xf32>
    %431 = arith.mulf %419, %430 : vector<8x128xf32>
    %432 = arith.addf %428, %431 : vector<8x128xf32>
    %433 = math.tanh %432 : vector<8x128xf32>
    %cst_209 = arith.constant 1.000000e+00 : f32
    %434 = vector.broadcast %cst_209 : f32 to vector<8x128xf32>
    %435 = arith.subf %434, %427 : vector<8x128xf32>
    %436 = arith.mulf %435, %433 : vector<8x128xf32>
    %437 = arith.mulf %427, %372 : vector<8x128xf32>
    %438 = arith.addf %436, %437 : vector<8x128xf32>
    %439 = vector.extract_strided_slice %438 {offsets = [0, 0], sizes = [8, 64], strides = [1, 1]} : vector<8x128xf32> to vector<8x64xf32>
    %440 = arith.truncf %439 : vector<8x64xf32> to vector<8x64xbf16>
    %c0_210 = arith.constant 0 : index
    %c0_211 = arith.constant 0 : index
    %441 = vector.load %arg5[%c0_210, %c0_211] : memref<64x128xbf16, #tpu.memory_space<vmem>>, vector<64x128xbf16>
    %cst_212 = arith.constant dense<0.000000e+00> : vector<8x128xf32>
    %442 = tpu.matmul %440, %441, %cst_212 {dimension_numbers = #tpu.dot_dimension_numbers<[1], [0], [0], [1], [0, 0, 1, 1], [], []>} : vector<8x64xbf16>, vector<64x128xbf16>, vector<8x128xf32> -> vector<8x128xf32>
    %c0_213 = arith.constant 0 : index
    %c0_214 = arith.constant 0 : index
    %443 = vector.load %arg6[%c0_213, %c0_214] : memref<1x128xf32, #tpu.memory_space<vmem>>, vector<1x128xf32>
    %444 = vector.broadcast %443 : vector<1x128xf32> to vector<8x128xf32>
    %445 = arith.addf %442, %444 : vector<8x128xf32>
    %cst_215 = arith.constant 0.000000e+00 : f32
    %446 = vector.broadcast %cst_215 : f32 to vector<8x128xf32>
    %447 = arith.maximumf %445, %446 : vector<8x128xf32>
    %448 = arith.truncf %447 : vector<8x128xf32> to vector<8x128xbf16>
    %c0_216 = arith.constant 0 : index
    %c0_217 = arith.constant 0 : index
    %449 = vector.load %arg7[%c0_216, %c0_217] : memref<128x128xbf16, #tpu.memory_space<vmem>>, vector<128x128xbf16>
    %cst_218 = arith.constant dense<0.000000e+00> : vector<8x128xf32>
    %450 = tpu.matmul %448, %449, %cst_218 {dimension_numbers = #tpu.dot_dimension_numbers<[1], [0], [0], [1], [0, 0, 1, 1], [], []>} : vector<8x128xbf16>, vector<128x128xbf16>, vector<8x128xf32> -> vector<8x128xf32>
    %c0_219 = arith.constant 0 : index
    %c0_220 = arith.constant 0 : index
    %451 = vector.load %arg8[%c0_219, %c0_220] : memref<1x128xf32, #tpu.memory_space<vmem>>, vector<1x128xf32>
    %452 = vector.broadcast %451 : vector<1x128xf32> to vector<8x128xf32>
    %453 = arith.addf %450, %452 : vector<8x128xf32>
    %cst_221 = arith.constant 0.000000e+00 : f32
    %454 = vector.broadcast %cst_221 : f32 to vector<8x128xf32>
    %455 = arith.maximumf %453, %454 : vector<8x128xf32>
    %456 = vector.extract_strided_slice %455 {offsets = [0, 0], sizes = [8, 64], strides = [1, 1]} : vector<8x128xf32> to vector<8x64xf32>
    %457 = arith.truncf %456 : vector<8x64xf32> to vector<8x64xbf16>
    %c0_222 = arith.constant 0 : index
    %c0_223 = arith.constant 0 : index
    %458 = vector.load %arg9[%c0_222, %c0_223] : memref<64x128xbf16, #tpu.memory_space<vmem>>, vector<64x128xbf16>
    %cst_224 = arith.constant dense<0.000000e+00> : vector<8x128xf32>
    %459 = tpu.matmul %457, %458, %cst_224 {dimension_numbers = #tpu.dot_dimension_numbers<[1], [0], [0], [1], [0, 0, 1, 1], [], []>} : vector<8x64xbf16>, vector<64x128xbf16>, vector<8x128xf32> -> vector<8x128xf32>
    %c0_225 = arith.constant 0 : index
    %c0_226 = arith.constant 0 : index
    %460 = vector.load %arg10[%c0_225, %c0_226] : memref<1x128xf32, #tpu.memory_space<vmem>>, vector<1x128xf32>
    %461 = vector.broadcast %460 : vector<1x128xf32> to vector<8x128xf32>
    %462 = arith.addf %459, %461 : vector<8x128xf32>
    %cst_227 = arith.constant 0.000000e+00 : f32
    %463 = vector.broadcast %cst_227 : f32 to vector<8x128xf32>
    %464 = arith.maximumf %462, %463 : vector<8x128xf32>
    %465 = vector.extract_strided_slice %464 {offsets = [0, 0], sizes = [8, 32], strides = [1, 1]} : vector<8x128xf32> to vector<8x32xf32>
    %466 = arith.truncf %465 : vector<8x32xf32> to vector<8x32xbf16>
    %c0_228 = arith.constant 0 : index
    %c0_229 = arith.constant 0 : index
    %467 = vector.load %arg11[%c0_228, %c0_229] : memref<32x128xbf16, #tpu.memory_space<vmem>>, vector<32x128xbf16>
    %cst_230 = arith.constant dense<0.000000e+00> : vector<8x128xf32>
    %468 = tpu.matmul %466, %467, %cst_230 {dimension_numbers = #tpu.dot_dimension_numbers<[1], [0], [0], [1], [0, 0, 1, 1], [], []>} : vector<8x32xbf16>, vector<32x128xbf16>, vector<8x128xf32> -> vector<8x128xf32>
    %c0_231 = arith.constant 0 : index
    %c0_232 = arith.constant 0 : index
    %469 = vector.load %arg12[%c0_231, %c0_232] : memref<1x128xf32, #tpu.memory_space<vmem>>, vector<1x128xf32>
    %470 = vector.broadcast %469 : vector<1x128xf32> to vector<8x128xf32>
    %471 = arith.addf %468, %470 : vector<8x128xf32>
    %c48_233 = arith.constant 48 : index
    %c0_234 = arith.constant 0 : index
    %472 = vector.load %arg13[%c48_233, %c0_234] : memref<64x128xf32, #tpu.memory_space<vmem>>, vector<8x128xf32>
    tpu.vector_store %arg13[%c48_233, %c0_234], %471 {strides = array<i32>} : memref<64x128xf32, #tpu.memory_space<vmem>>, vector<8x128xf32>,
    %473 = vector.extract_strided_slice %438 {offsets = [0, 0], sizes = [8, 64], strides = [1, 1]} : vector<8x128xf32> to vector<8x64xf32>
    %474 = arith.truncf %473 : vector<8x64xf32> to vector<8x64xbf16>
    %c0_235 = arith.constant 0 : index
    %c0_236 = arith.constant 0 : index
    %475 = vector.load %arg2[%c0_235, %c0_236] : memref<64x384xbf16, #tpu.memory_space<vmem>>, vector<64x384xbf16>
    %cst_237 = arith.constant dense<0.000000e+00> : vector<8x384xf32>
    %476 = tpu.matmul %474, %475, %cst_237 {dimension_numbers = #tpu.dot_dimension_numbers<[1], [0], [0], [1], [0, 0, 1, 1], [], []>} : vector<8x64xbf16>, vector<64x384xbf16>, vector<8x384xf32> -> vector<8x384xf32>
    %c56 = arith.constant 56 : index
    %c0_238 = arith.constant 0 : index
    %477 = vector.load %arg14[%c56, %c0_238] : memref<64x384xf32, #tpu.memory_space<vmem>>, vector<8x384xf32>
    %478 = vector.extract_strided_slice %477 {offsets = [0, 0], sizes = [8, 128], strides = [1, 1]} : vector<8x384xf32> to vector<8x128xf32>
    %479 = vector.extract_strided_slice %476 {offsets = [0, 0], sizes = [8, 128], strides = [1, 1]} : vector<8x384xf32> to vector<8x128xf32>
    %480 = arith.addf %478, %479 : vector<8x128xf32>
    %481 = arith.negf %480 : vector<8x128xf32>
    %482 = math.exp %481 : vector<8x128xf32>
    %cst_239 = arith.constant 1.000000e+00 : f32
    %483 = vector.broadcast %cst_239 : f32 to vector<8x128xf32>
    %484 = arith.addf %483, %482 : vector<8x128xf32>
    %485 = arith.divf %483, %484 : vector<8x128xf32>
    %486 = vector.extract_strided_slice %477 {offsets = [0, 128], sizes = [8, 128], strides = [1, 1]} : vector<8x384xf32> to vector<8x128xf32>
    %487 = vector.extract_strided_slice %476 {offsets = [0, 128], sizes = [8, 128], strides = [1, 1]} : vector<8x384xf32> to vector<8x128xf32>
    %488 = arith.addf %486, %487 : vector<8x128xf32>
    %489 = arith.negf %488 : vector<8x128xf32>
    %490 = math.exp %489 : vector<8x128xf32>
    %cst_240 = arith.constant 1.000000e+00 : f32
    %491 = vector.broadcast %cst_240 : f32 to vector<8x128xf32>
    %492 = arith.addf %491, %490 : vector<8x128xf32>
    %493 = arith.divf %491, %492 : vector<8x128xf32>
    %494 = vector.extract_strided_slice %477 {offsets = [0, 256], sizes = [8, 128], strides = [1, 1]} : vector<8x384xf32> to vector<8x128xf32>
    %495 = vector.extract_strided_slice %476 {offsets = [0, 256], sizes = [8, 128], strides = [1, 1]} : vector<8x384xf32> to vector<8x128xf32>
    %496 = arith.addf %495, %9 : vector<8x128xf32>
    %497 = arith.mulf %485, %496 : vector<8x128xf32>
    %498 = arith.addf %494, %497 : vector<8x128xf32>
    %499 = math.tanh %498 : vector<8x128xf32>
    %cst_241 = arith.constant 1.000000e+00 : f32
    %500 = vector.broadcast %cst_241 : f32 to vector<8x128xf32>
    %501 = arith.subf %500, %493 : vector<8x128xf32>
    %502 = arith.mulf %501, %499 : vector<8x128xf32>
    %503 = arith.mulf %493, %438 : vector<8x128xf32>
    %504 = arith.addf %502, %503 : vector<8x128xf32>
    %505 = vector.extract_strided_slice %504 {offsets = [0, 0], sizes = [8, 64], strides = [1, 1]} : vector<8x128xf32> to vector<8x64xf32>
    %506 = arith.truncf %505 : vector<8x64xf32> to vector<8x64xbf16>
    %c0_242 = arith.constant 0 : index
    %c0_243 = arith.constant 0 : index
    %507 = vector.load %arg5[%c0_242, %c0_243] : memref<64x128xbf16, #tpu.memory_space<vmem>>, vector<64x128xbf16>
    %cst_244 = arith.constant dense<0.000000e+00> : vector<8x128xf32>
    %508 = tpu.matmul %506, %507, %cst_244 {dimension_numbers = #tpu.dot_dimension_numbers<[1], [0], [0], [1], [0, 0, 1, 1], [], []>} : vector<8x64xbf16>, vector<64x128xbf16>, vector<8x128xf32> -> vector<8x128xf32>
    %c0_245 = arith.constant 0 : index
    %c0_246 = arith.constant 0 : index
    %509 = vector.load %arg6[%c0_245, %c0_246] : memref<1x128xf32, #tpu.memory_space<vmem>>, vector<1x128xf32>
    %510 = vector.broadcast %509 : vector<1x128xf32> to vector<8x128xf32>
    %511 = arith.addf %508, %510 : vector<8x128xf32>
    %cst_247 = arith.constant 0.000000e+00 : f32
    %512 = vector.broadcast %cst_247 : f32 to vector<8x128xf32>
    %513 = arith.maximumf %511, %512 : vector<8x128xf32>
    %514 = arith.truncf %513 : vector<8x128xf32> to vector<8x128xbf16>
    %c0_248 = arith.constant 0 : index
    %c0_249 = arith.constant 0 : index
    %515 = vector.load %arg7[%c0_248, %c0_249] : memref<128x128xbf16, #tpu.memory_space<vmem>>, vector<128x128xbf16>
    %cst_250 = arith.constant dense<0.000000e+00> : vector<8x128xf32>
    %516 = tpu.matmul %514, %515, %cst_250 {dimension_numbers = #tpu.dot_dimension_numbers<[1], [0], [0], [1], [0, 0, 1, 1], [], []>} : vector<8x128xbf16>, vector<128x128xbf16>, vector<8x128xf32> -> vector<8x128xf32>
    %c0_251 = arith.constant 0 : index
    %c0_252 = arith.constant 0 : index
    %517 = vector.load %arg8[%c0_251, %c0_252] : memref<1x128xf32, #tpu.memory_space<vmem>>, vector<1x128xf32>
    %518 = vector.broadcast %517 : vector<1x128xf32> to vector<8x128xf32>
    %519 = arith.addf %516, %518 : vector<8x128xf32>
    %cst_253 = arith.constant 0.000000e+00 : f32
    %520 = vector.broadcast %cst_253 : f32 to vector<8x128xf32>
    %521 = arith.maximumf %519, %520 : vector<8x128xf32>
    %522 = vector.extract_strided_slice %521 {offsets = [0, 0], sizes = [8, 64], strides = [1, 1]} : vector<8x128xf32> to vector<8x64xf32>
    %523 = arith.truncf %522 : vector<8x64xf32> to vector<8x64xbf16>
    %c0_254 = arith.constant 0 : index
    %c0_255 = arith.constant 0 : index
    %524 = vector.load %arg9[%c0_254, %c0_255] : memref<64x128xbf16, #tpu.memory_space<vmem>>, vector<64x128xbf16>
    %cst_256 = arith.constant dense<0.000000e+00> : vector<8x128xf32>
    %525 = tpu.matmul %523, %524, %cst_256 {dimension_numbers = #tpu.dot_dimension_numbers<[1], [0], [0], [1], [0, 0, 1, 1], [], []>} : vector<8x64xbf16>, vector<64x128xbf16>, vector<8x128xf32> -> vector<8x128xf32>
    %c0_257 = arith.constant 0 : index
    %c0_258 = arith.constant 0 : index
    %526 = vector.load %arg10[%c0_257, %c0_258] : memref<1x128xf32, #tpu.memory_space<vmem>>, vector<1x128xf32>
    %527 = vector.broadcast %526 : vector<1x128xf32> to vector<8x128xf32>
    %528 = arith.addf %525, %527 : vector<8x128xf32>
    %cst_259 = arith.constant 0.000000e+00 : f32
    %529 = vector.broadcast %cst_259 : f32 to vector<8x128xf32>
    %530 = arith.maximumf %528, %529 : vector<8x128xf32>
    %531 = vector.extract_strided_slice %530 {offsets = [0, 0], sizes = [8, 32], strides = [1, 1]} : vector<8x128xf32> to vector<8x32xf32>
    %532 = arith.truncf %531 : vector<8x32xf32> to vector<8x32xbf16>
    %c0_260 = arith.constant 0 : index
    %c0_261 = arith.constant 0 : index
    %533 = vector.load %arg11[%c0_260, %c0_261] : memref<32x128xbf16, #tpu.memory_space<vmem>>, vector<32x128xbf16>
    %cst_262 = arith.constant dense<0.000000e+00> : vector<8x128xf32>
    %534 = tpu.matmul %532, %533, %cst_262 {dimension_numbers = #tpu.dot_dimension_numbers<[1], [0], [0], [1], [0, 0, 1, 1], [], []>} : vector<8x32xbf16>, vector<32x128xbf16>, vector<8x128xf32> -> vector<8x128xf32>
    %c0_263 = arith.constant 0 : index
    %c0_264 = arith.constant 0 : index
    %535 = vector.load %arg12[%c0_263, %c0_264] : memref<1x128xf32, #tpu.memory_space<vmem>>, vector<1x128xf32>
    %536 = vector.broadcast %535 : vector<1x128xf32> to vector<8x128xf32>
    %537 = arith.addf %534, %536 : vector<8x128xf32>
    %c56_265 = arith.constant 56 : index
    %c0_266 = arith.constant 0 : index
    %538 = vector.load %arg13[%c56_265, %c0_266] : memref<64x128xf32, #tpu.memory_space<vmem>>, vector<8x128xf32>
    tpu.vector_store %arg13[%c56_265, %c0_266], %537 {strides = array<i32>} : memref<64x128xf32, #tpu.memory_space<vmem>>, vector<8x128xf32>,
    return
  }
}

</mosaic_0001>

<llo_original>
// kernel: tpu_custom_call.1
$region0: #{tpu_custom_call.1}
  #allocation0 [shape = 'u32[]', space=smem, size = 0x4, offset = 0x4, fixed_abs, tag = 'smem constant byte address 0x4 - core index']
  #allocation1 [shape = 'u32[72,128]{1,0:T(1,128)}', space=vmem, size = 0x9000, scoped, tag = 'internal scratch']
  #allocation2 [shape = 'f32[64,384]{1,0:T(8,128)}', space=vmem, size = 0x18000, scoped, tag = 'scratch operand']
  %s0 = inlined_call_operand.vmem [shape: bf16[64,16], index: 0, kind: input, shape index: {}]
  %s1 = inlined_call_operand.hbm [shape: bf16[16,384], index: 1, kind: input, shape index: {}]
  %s2 = inlined_call_operand.hbm [shape: bf16[64,384], index: 2, kind: input, shape index: {}]
  %s3 = inlined_call_operand.hbm [shape: f32[1,384], index: 3, kind: input, shape index: {}]
  %s4 = inlined_call_operand.hbm [shape: f32[1,128], index: 4, kind: input, shape index: {}]
  %s5 = inlined_call_operand.vmem [shape: bf16[64,128], index: 5, kind: input, shape index: {}]
  %s6 = inlined_call_operand.hbm [shape: f32[1,128], index: 6, kind: input, shape index: {}]
  %s7 = inlined_call_operand.hbm [shape: bf16[128,128], index: 7, kind: input, shape index: {}]
  %s8 = inlined_call_operand.hbm [shape: f32[1,128], index: 8, kind: input, shape index: {}]
  %s9 = inlined_call_operand.hbm [shape: bf16[64,128], index: 9, kind: input, shape index: {}]
  %s10 = inlined_call_operand.vmem [shape: f32[1,128], index: 10, kind: input, shape index: {}]
  %s11 = inlined_call_operand.vmem [shape: bf16[32,128], index: 11, kind: input, shape index: {}]
  %s12 = inlined_call_operand.vmem [shape: f32[1,128], index: 12, kind: input, shape index: {}]
  %s13 = inlined_call_operand.hbm [shape: f32[64,128], index: 13, kind: output, shape index: {}]
  %s14 = sld [smem:[#allocation0]]
  $region94: #{tpu_custom_call.1} parent=0
    _
  %s16 = ssub.s32 1, %s14
  %s17 = scalar_select 0, %s16, %s14
  $region1: #{tpu_custom_call.1} parent=0
    #allocation3 [shape = 'u8[12288]{0}', space=vmem, size = 0x3000, scoped, tag = 'input window, operand 1, single buffered']
    #allocation4 [shape = 's32[1]{0}', space=sflag, size = 0x4, scoped, tag = 'scoped memory for tpu_custom_call.1']
    #allocation5 [shape = 's32[1]{0}', space=sflag, size = 0x4, scoped, tag = 'scoped memory for tpu_custom_call.1']
    #allocation6 [shape = 'u8[49152]{0}', space=vmem, size = 0xc000, scoped, tag = 'input window, operand 2, single buffered']
    #allocation7 [shape = 's32[1]{0}', space=sflag, size = 0x4, scoped, tag = 'scoped memory for tpu_custom_call.1']
    #allocation8 [shape = 'u8[1536]{0}', space=vmem, size = 0x800, scoped, tag = 'input window, operand 3, single buffered']
    #allocation9 [shape = 'u8[512]{0}', space=vmem, size = 0x400, scoped, tag = 'input window, operand 4, single buffered']
    #allocation10 [shape = 's32[1]{0}', space=sflag, size = 0x4, scoped, tag = 'scoped memory for tpu_custom_call.1']
    #allocation11 [shape = 'u8[512]{0}', space=vmem, size = 0x400, scoped, tag = 'input window, operand 6, single buffered']
    #allocation12 [shape = 'u8[32768]{0}', space=vmem, size = 0x8000, scoped, tag = 'input window, operand 7, single buffered']
    #allocation13 [shape = 's32[1]{0}', space=sflag, size = 0x4, scoped, tag = 'scoped memory for tpu_custom_call.1']
    #allocation14 [shape = 'u8[512]{0}', space=vmem, size = 0x400, scoped, tag = 'input window, operand 8, single buffered']
    #allocation15 [shape = 'u8[16384]{0}', space=vmem, size = 0x4000, scoped, tag = 'input window, operand 9, single buffered']
    #allocation16 [shape = 's32[1]{0}', space=sflag, size = 0x4, scoped, tag = 'scoped memory for tpu_custom_call.1']
    #allocation17 [shape = 'u8[32768]{0}', space=vmem, size = 0x8000, scoped, tag = 'output window, operand 0, single buffered']
    %18 = vsyncpa [#allocation4], 0
    %19 = vsyncpa [#allocation7], 0
    %20 = vsyncpa [#allocation10], 0
    %21 = vsyncpa [#allocation13], 0
    %22 = vsyncpa [#allocation16], 0
    %23 = vsyncpa [#allocation5], 0
    // Predicated region
    $region2: #{tpu_custom_call.1} parent=1 // pred_check
      _
    $region3: #{tpu_custom_call.1} parent=1 // pred_check_branch
      %25 = sbr.rel (0) target = $region5
    $region4: #{tpu_custom_call.1} parent=1 // pred_region
      _
    $region5: #{tpu_custom_call.1} parent=1 // pred_fallthru
      _
    // Predicated region
    $region6: #{tpu_custom_call.1} parent=1 // pred_check
      _
    $region7: #{tpu_custom_call.1} parent=1 // pred_check_branch
      %27 = sbr.rel (0) target = $region9
    $region8: #{tpu_custom_call.1} parent=1 // pred_region
      %29 = vsyncadd [#allocation4], 0
      %s30 = sshll.u32 %s1, 4
      %s31 = int_to_ptr.hbm [resolvable:$true] %s30
      %s32 = sshll.u32 [#allocation3], 4
      %s33 = int_to_ptr.vmem [resolvable:$true] %s32
      %38 = dma.hbm_to_vmem [thread:$0]  %s31, 384, %s33, [#allocation4], 192, 192, 12
    $region9: #{tpu_custom_call.1} parent=1 // pred_fallthru
      _
    // Predicated region
    $region10: #{tpu_custom_call.1} parent=1 // pred_check
      _
    $region11: #{tpu_custom_call.1} parent=1 // pred_check_branch
      %40 = sbr.rel (0) target = $region13
    $region12: #{tpu_custom_call.1} parent=1 // pred_region
      %42 = vsyncadd [#allocation7], 0
      %s43 = sshll.u32 %s2, 4
      %s44 = int_to_ptr.hbm [resolvable:$true] %s43
      %s45 = sshll.u32 [#allocation6], 4
      %s46 = int_to_ptr.vmem [resolvable:$true] %s45
      %51 = dma.hbm_to_vmem [thread:$0]  %s44, 1536, %s46, [#allocation7], 192, 192, 12
    $region13: #{tpu_custom_call.1} parent=1 // pred_fallthru
      _
    // Predicated region
    $region14: #{tpu_custom_call.1} parent=1 // pred_check
      _
    $region15: #{tpu_custom_call.1} parent=1 // pred_check_branch
      %53 = sbr.rel (0) target = $region17
    $region16: #{tpu_custom_call.1} parent=1 // pred_region
      %55 = vsyncadd [#allocation7], 0
      %s57 = sshll.u32 %s3, 4
      %s58 = int_to_ptr.hbm [resolvable:$true] %s57
      %s59 = sshll.u32 [#allocation8], 4
      %s60 = int_to_ptr.vmem [resolvable:$true] %s59
      %62 = dma.hbm_to_vmem [thread:$0]  %s58, 48, %s60, [#allocation7]
    $region17: #{tpu_custom_call.1} parent=1 // pred_fallthru
      _
    // Predicated region
    $region18: #{tpu_custom_call.1} parent=1 // pred_check
      _
    $region19: #{tpu_custom_call.1} parent=1 // pred_check_branch
      %64 = sbr.rel (0) target = $region21
    $region20: #{tpu_custom_call.1} parent=1 // pred_region
      %66 = vsyncadd [#allocation10], 0
      %s68 = sshll.u32 %s4, 4
      %s69 = int_to_ptr.hbm [resolvable:$true] %s68
      %s70 = sshll.u32 [#allocation9], 4
      %s71 = int_to_ptr.vmem [resolvable:$true] %s70
      %73 = dma.hbm_to_vmem [thread:$0]  %s69, 16, %s71, [#allocation10]
    $region21: #{tpu_custom_call.1} parent=1 // pred_fallthru
      _
    // Predicated region
    $region22: #{tpu_custom_call.1} parent=1 // pred_check
      _
    $region23: #{tpu_custom_call.1} parent=1 // pred_check_branch
      %75 = sbr.rel (0) target = $region25
    $region24: #{tpu_custom_call.1} parent=1 // pred_region
      _
    $region25: #{tpu_custom_call.1} parent=1 // pred_fallthru
      _
    // Predicated region
    $region26: #{tpu_custom_call.1} parent=1 // pred_check
      _
    $region27: #{tpu_custom_call.1} parent=1 // pred_check_branch
      %77 = sbr.rel (0) target = $region29
    $region28: #{tpu_custom_call.1} parent=1 // pred_region
      %79 = vsyncadd [#allocation10], 0
      %s81 = sshll.u32 %s6, 4
      %s82 = int_to_ptr.hbm [resolvable:$true] %s81
      %s83 = sshll.u32 [#allocation11], 4
      %s84 = int_to_ptr.vmem [resolvable:$true] %s83
      %86 = dma.hbm_to_vmem [thread:$0]  %s82, 16, %s84, [#allocation10]
    $region29: #{tpu_custom_call.1} parent=1 // pred_fallthru
      _
    // Predicated region
    $region30: #{tpu_custom_call.1} parent=1 // pred_check
      _
    $region31: #{tpu_custom_call.1} parent=1 // pred_check_branch
      %88 = sbr.rel (0) target = $region33
    $region32: #{tpu_custom_call.1} parent=1 // pred_region
      %90 = vsyncadd [#allocation13], 0
      %s91 = sshll.u32 %s7, 4
      %s92 = int_to_ptr.hbm [resolvable:$true] %s91
      %s93 = sshll.u32 [#allocation12], 4
      %s94 = int_to_ptr.vmem [resolvable:$true] %s93
      %99 = dma.hbm_to_vmem [thread:$0]  %s92, 1024, %s94, [#allocation13], 64, 64, 4
    $region33: #{tpu_custom_call.1} parent=1 // pred_fallthru
      _
    // Predicated region
    $region34: #{tpu_custom_call.1} parent=1 // pred_check
      _
    $region35: #{tpu_custom_call.1} parent=1 // pred_check_branch
      %101 = sbr.rel (0) target = $region37
    $region36: #{tpu_custom_call.1} parent=1 // pred_region
      %103 = vsyncadd [#allocation13], 0
      %s105 = sshll.u32 %s8, 4
      %s106 = int_to_ptr.hbm [resolvable:$true] %s105
      %s107 = sshll.u32 [#allocation14], 4
      %s108 = int_to_ptr.vmem [resolvable:$true] %s107
      %110 = dma.hbm_to_vmem [thread:$0]  %s106, 16, %s108, [#allocation13]
    $region37: #{tpu_custom_call.1} parent=1 // pred_fallthru
      _
    // Predicated region
    $region38: #{tpu_custom_call.1} parent=1 // pred_check
      _
    $region39: #{tpu_custom_call.1} parent=1 // pred_check_branch
      %112 = sbr.rel (0) target = $region41
    $region40: #{tpu_custom_call.1} parent=1 // pred_region
      %114 = vsyncadd [#allocation16], 0
      %s115 = sshll.u32 %s9, 4
      %s116 = int_to_ptr.hbm [resolvable:$true] %s115
      %s117 = sshll.u32 [#allocation15], 4
      %s118 = int_to_ptr.vmem [resolvable:$true] %s117
      %123 = dma.hbm_to_vmem [thread:$0]  %s116, 512, %s118, [#allocation16], 64, 64, 4
    $region41: #{tpu_custom_call.1} parent=1 // pred_fallthru
      _
    // Predicated region
    $region42: #{tpu_custom_call.1} parent=1 // pred_check
      _
    $region43: #{tpu_custom_call.1} parent=1 // pred_check_branch
      %125 = sbr.rel (0) target = $region45
    $region44: #{tpu_custom_call.1} parent=1 // pred_region
      _
    $region45: #{tpu_custom_call.1} parent=1 // pred_fallthru
      _
    // Predicated region
    $region46: #{tpu_custom_call.1} parent=1 // pred_check
      _
    $region47: #{tpu_custom_call.1} parent=1 // pred_check_branch
      %127 = sbr.rel (0) target = $region49
    $region48: #{tpu_custom_call.1} parent=1 // pred_region
      _
    $region49: #{tpu_custom_call.1} parent=1 // pred_fallthru
      _
    // Predicated region
    $region50: #{tpu_custom_call.1} parent=1 // pred_check
      _
    $region51: #{tpu_custom_call.1} parent=1 // pred_check_branch
      %129 = sbr.rel (0) target = $region53
    $region52: #{tpu_custom_call.1} parent=1 // pred_region
      _
    $region53: #{tpu_custom_call.1} parent=1 // pred_fallthru
      _
    // Predicated region
    $region54: #{tpu_custom_call.1} parent=1 // pred_check
      _
    $region55: #{tpu_custom_call.1} parent=1 // pred_check_branch
      %131 = sbr.rel (0) target = $region57
    $region56: #{tpu_custom_call.1} parent=1 // pred_region
      %133 = dma.done [#allocation4], 384
    $region57: #{tpu_custom_call.1} parent=1 // pred_fallthru
      _
    // Predicated region
    $region58: #{tpu_custom_call.1} parent=1 // pred_check
      _
    $region59: #{tpu_custom_call.1} parent=1 // pred_check_branch
      %135 = sbr.rel (0) target = $region61
    $region60: #{tpu_custom_call.1} parent=1 // pred_region
      %137 = dma.done [#allocation7], 1536
    $region61: #{tpu_custom_call.1} parent=1 // pred_fallthru
      _
    // Predicated region
    $region62: #{tpu_custom_call.1} parent=1 // pred_check
      _
    $region63: #{tpu_custom_call.1} parent=1 // pred_check_branch
      %139 = sbr.rel (0) target = $region65
    $region64: #{tpu_custom_call.1} parent=1 // pred_region
      %141 = dma.done [#allocation7], 48
    $region65: #{tpu_custom_call.1} parent=1 // pred_fallthru
      _
    // Predicated region
    $region66: #{tpu_custom_call.1} parent=1 // pred_check
      _
    $region67: #{tpu_custom_call.1} parent=1 // pred_check_branch
      %143 = sbr.rel (0) target = $region69
    $region68: #{tpu_custom_call.1} parent=1 // pred_region
      %145 = dma.done [#allocation10], 16
    $region69: #{tpu_custom_call.1} parent=1 // pred_fallthru
      _
    // Predicated region
    $region70: #{tpu_custom_call.1} parent=1 // pred_check
      _
    $region71: #{tpu_custom_call.1} parent=1 // pred_check_branch
      %147 = sbr.rel (0) target = $region73
    $region72: #{tpu_custom_call.1} parent=1 // pred_region
      %149 = dma.done [#allocation10], 16
    $region73: #{tpu_custom_call.1} parent=1 // pred_fallthru
      _
    // Predicated region
    $region74: #{tpu_custom_call.1} parent=1 // pred_check
      _
    $region75: #{tpu_custom_call.1} parent=1 // pred_check_branch
      %151 = sbr.rel (0) target = $region77
    $region76: #{tpu_custom_call.1} parent=1 // pred_region
      %153 = dma.done [#allocation13], 1024
    $region77: #{tpu_custom_call.1} parent=1 // pred_fallthru
      _
    // Predicated region
    $region78: #{tpu_custom_call.1} parent=1 // pred_check
      _
    $region79: #{tpu_custom_call.1} parent=1 // pred_check_branch
      %155 = sbr.rel (0) target = $region81
    $region80: #{tpu_custom_call.1} parent=1 // pred_region
      %157 = dma.done [#allocation13], 16
    $region81: #{tpu_custom_call.1} parent=1 // pred_fallthru
      _
    // Predicated region
    $region82: #{tpu_custom_call.1} parent=1 // pred_check
      _
    $region83: #{tpu_custom_call.1} parent=1 // pred_check_branch
      %159 = sbr.rel (0) target = $region85
    $region84: #{tpu_custom_call.1} parent=1 // pred_region
      %161 = dma.done [#allocation16], 512
    $region85: #{tpu_custom_call.1} parent=1 // pred_fallthru
      _
    %v163 = vld [vmem:[%s0] sm:$0xf]
    %v164 = vld [vmem:[%s0 + $0x4] sm:$0xf]
    %v165 = vld [vmem:[%s0 + $0x8] sm:$0xf]
    %v166 = vld [vmem:[%s0 + $0xc] sm:$0xf]
    %v167 = vld [vmem:[%s0 + $0x10] sm:$0xf]
    %v168 = vld [vmem:[%s0 + $0x14] sm:$0xf]
    %v169 = vld [vmem:[%s0 + $0x18] sm:$0xf]
    %v170 = vld [vmem:[%s0 + $0x1c] sm:$0xf]
    %v171 = vld [vmem:[#allocation3] sm:$0xff]
    %v172 = vld [vmem:[#allocation3 + $0x8] sm:$0xf]
    %v173 = vld [vmem:[#allocation3 + $0xc] sm:$0xff]
    %v174 = vld [vmem:[#allocation3 + $0x14] sm:$0xf]
    %v175 = vld [vmem:[#allocation8] sm:$0x7]
    %v177 = vperm.slane %v175, 0
    %v178 = vperm.slane %v175, 1
    %v179 = vperm.slane %v175, 2
    %v191 = vunpack.c.l.b16 %v163
    %v192 = vunpack.c.l.b16 %v164
    %v193 = vunpack.c.l.b16 %v165
    %v194 = vunpack.c.l.b16 %v166
    %v195 = vunpack.c.l.b16 %v167
    %v196 = vunpack.c.l.b16 %v168
    %v197 = vunpack.c.l.b16 %v169
    %v198 = vunpack.c.l.b16 %v170
    %v199 = vpack.c.b16 %v192, %v191
    %v200 = vpack.c.b16 %v194, %v193
    %v201 = vpack.c.b16 %v196, %v195
    %v202 = vpack.c.b16 %v198, %v197
    %v207 = vunpack.c.l.b16 %v171
    %v208 = vunpack.c.h.b16 %v171
    %v209 = vunpack.c.l.b16 %v172
    %v210 = vunpack.c.l.b16 %v173
    %v211 = vunpack.c.h.b16 %v173
    %v212 = vunpack.c.l.b16 %v174
    %v213 = vpack.c.b16 %v210, %v207
    %v214 = vpack.c.b16 %v211, %v208
    %v215 = vpack.c.b16 %v212, %v209
    %vm219 = vcmask 130048
    %v221 = vsel %vm219, %v199, 0
    %v224 = vsel %vm219, %v200, 0
    %v227 = vsel %vm219, %v201, 0
    %v230 = vsel %vm219, %v202, 0
    %232 = vmatpush.bf16.msra.mxu0 0
    %233 = vmatpush.bf16.msra.mxu0 0
    %234 = vmatpush.bf16.msra.mxu0 0
    %235 = vmatpush.bf16.msra.mxu0 0
    %236 = vmatpush.bf16.msra.mxu0 0
    %237 = vmatpush.bf16.msra.mxu0 0
    %238 = vmatpush.bf16.msra.mxu0 0
    %239 = vmatpush.bf16.msra.mxu0 %v213
    %240 = vmatmul.bf16.gmra.mxu0 %v221
    %v241 = vpop.f32.mrf.mxu0
    %v242 = vadd.f32 %v177, %v241
    %v243 = vpop.f32.mrf.mxu0
    %v244 = vadd.f32 %v177, %v243
    %245 = vmatmul.bf16.gmra.mxu0 %v224
    %v246 = vpop.f32.mrf.mxu0
    %v247 = vadd.f32 %v177, %v246
    %v248 = vpop.f32.mrf.mxu0
    %v249 = vadd.f32 %v177, %v248
    %250 = vmatmul.bf16.gmra.mxu0 %v227
    %v251 = vpop.f32.mrf.mxu0
    %v252 = vadd.f32 %v177, %v251
    %v253 = vpop.f32.mrf.mxu0
    %v254 = vadd.f32 %v177, %v253
    %255 = vmatmul.bf16.gmra.mxu0 %v230
    %v256 = vpop.f32.mrf.mxu0
    %v257 = vadd.f32 %v177, %v256
    %v258 = vpop.f32.mrf.mxu0
    %v259 = vadd.f32 %v177, %v258
    %260 = vdwg.mxu0
    %261 = vmatpush.bf16.msra.mxu0 0
    %262 = vmatpush.bf16.msra.mxu0 0
    %263 = vmatpush.bf16.msra.mxu0 0
    %264 = vmatpush.bf16.msra.mxu0 0
    %265 = vmatpush.bf16.msra.mxu0 0
    %266 = vmatpush.bf16.msra.mxu0 0
    %267 = vmatpush.bf16.msra.mxu0 0
    %268 = vmatpush.bf16.msra.mxu0 %v214
    %269 = vmatmul.bf16.gmra.mxu0 %v221
    %v270 = vpop.f32.mrf.mxu0
    %v271 = vadd.f32 %v178, %v270
    %v272 = vpop.f32.mrf.mxu0
    %v273 = vadd.f32 %v178, %v272
    %274 = vmatmul.bf16.gmra.mxu0 %v224
    %v275 = vpop.f32.mrf.mxu0
    %v276 = vadd.f32 %v178, %v275
    %v277 = vpop.f32.mrf.mxu0
    %v278 = vadd.f32 %v178, %v277
    %279 = vmatmul.bf16.gmra.mxu0 %v227
    %v280 = vpop.f32.mrf.mxu0
    %v281 = vadd.f32 %v178, %v280
    %v282 = vpop.f32.mrf.mxu0
    %v283 = vadd.f32 %v178, %v282
    %284 = vmatmul.bf16.gmra.mxu0 %v230
    %v285 = vpop.f32.mrf.mxu0
    %v286 = vadd.f32 %v178, %v285
    %v287 = vpop.f32.mrf.mxu0
    %v288 = vadd.f32 %v178, %v287
    %289 = vdwg.mxu0
    %290 = vmatpush.bf16.msra.mxu0 0
    %291 = vmatpush.bf16.msra.mxu0 0
    %292 = vmatpush.bf16.msra.mxu0 0
    %293 = vmatpush.bf16.msra.mxu0 0
    %294 = vmatpush.bf16.msra.mxu0 0
    %295 = vmatpush.bf16.msra.mxu0 0
    %296 = vmatpush.bf16.msra.mxu0 0
    %297 = vmatpush.bf16.msra.mxu0 %v215
    %298 = vmatmul.bf16.gmra.mxu0 %v221
    %v299 = vpop.f32.mrf.mxu0
    %v300 = vadd.f32 %v179, %v299
    %v301 = vpop.f32.mrf.mxu0
    %v302 = vadd.f32 %v179, %v301
    %303 = vmatmul.bf16.gmra.mxu0 %v224
    %v304 = vpop.f32.mrf.mxu0
    %v305 = vadd.f32 %v179, %v304
    %v306 = vpop.f32.mrf.mxu0
    %v307 = vadd.f32 %v179, %v306
    %308 = vmatmul.bf16.gmra.mxu0 %v227
    %v309 = vpop.f32.mrf.mxu0
    %v310 = vadd.f32 %v179, %v309
    %v311 = vpop.f32.mrf.mxu0
    %v312 = vadd.f32 %v179, %v311
    %313 = vmatmul.bf16.gmra.mxu0 %v230
    %v314 = vpop.f32.mrf.mxu0
    %v315 = vadd.f32 %v179, %v314
    %v316 = vpop.f32.mrf.mxu0
    %v317 = vadd.f32 %v179, %v316
    %318 = vdwg.mxu0
    %319 = vst [vmem:[#allocation2] sm:$0xff] %v242
    %320 = vst [vmem:[#allocation2 + $0x8] sm:$0xff] %v271
    %321 = vst [vmem:[#allocation2 + $0x10] sm:$0xff] %v300
    %322 = vst [vmem:[#allocation2 + $0x18] sm:$0xff] %v244
    %323 = vst [vmem:[#allocation2 + $0x20] sm:$0xff] %v273
    %324 = vst [vmem:[#allocation2 + $0x28] sm:$0xff] %v302
    %325 = vst [vmem:[#allocation2 + $0x30] sm:$0xff] %v247
    %326 = vst [vmem:[#allocation2 + $0x38] sm:$0xff] %v276
    %327 = vst [vmem:[#allocation2 + $0x40] sm:$0xff] %v305
    %328 = vst [vmem:[#allocation2 + $0x48] sm:$0xff] %v249
    %329 = vst [vmem:[#allocation2 + $0x50] sm:$0xff] %v278
    %330 = vst [vmem:[#allocation2 + $0x58] sm:$0xff] %v307
    %331 = vst [vmem:[#allocation2 + $0x60] sm:$0xff] %v252
    %332 = vst [vmem:[#allocation2 + $0x68] sm:$0xff] %v281
    %333 = vst [vmem:[#allocation2 + $0x70] sm:$0xff] %v310
    %334 = vst [vmem:[#allocation2 + $0x78] sm:$0xff] %v254
    %335 = vst [vmem:[#allocation2 + $0x80] sm:$0xff] %v283
    %336 = vst [vmem:[#allocation2 + $0x88] sm:$0xff] %v312
    %337 = vst [vmem:[#allocation2 + $0x90] sm:$0xff] %v257
    %338 = vst [vmem:[#allocation2 + $0x98] sm:$0xff] %v286
    %339 = vst [vmem:[#allocation2 + $0xa0] sm:$0xff] %v315
    %340 = vst [vmem:[#allocation2 + $0xa8] sm:$0xff] %v259
    %341 = vst [vmem:[#allocation2 + $0xb0] sm:$0xff] %v288
    %342 = vst [vmem:[#allocation2 + $0xb8] sm:$0xff] %v317
    %v343 = vld [vmem:[#allocation9] sm:$0x1]
    %v345 = vperm.slane %v343, 0
    %v347 = vld [vmem:[#allocation6] sm:$0xff]
    %v348 = vld [vmem:[#allocation6 + $0x8] sm:$0xf]
    %v349 = vld [vmem:[#allocation6 + $0xc] sm:$0xff]
    %v350 = vld [vmem:[#allocation6 + $0x14] sm:$0xf]
    %v351 = vld [vmem:[#allocation6 + $0x18] sm:$0xff]
    %v352 = vld [vmem:[#allocation6 + $0x20] sm:$0xf]
    %v353 = vld [vmem:[#allocation6 + $0x24] sm:$0xff]
    %v354 = vld [vmem:[#allocation6 + $0x2c] sm:$0xf]
    %v355 = vld [vmem:[#allocation6 + $0x30] sm:$0xff]
    %v356 = vld [vmem:[#allocation6 + $0x38] sm:$0xf]
    %v357 = vld [vmem:[#allocation6 + $0x3c] sm:$0xff]
    %v358 = vld [vmem:[#allocation6 + $0x44] sm:$0xf]
    %v359 = vld [vmem:[#allocation6 + $0x48] sm:$0xff]
    %v360 = vld [vmem:[#allocation6 + $0x50] sm:$0xf]
    %v361 = vld [vmem:[#allocation6 + $0x54] sm:$0xff]
    %v362 = vld [vmem:[#allocation6 + $0x5c] sm:$0xf]
    %v379 = vunpack.c.l.b16 %v347
    %v380 = vunpack.c.h.b16 %v347
    %v381 = vunpack.c.l.b16 %v348
    %v382 = vunpack.c.l.b16 %v349
    %v383 = vunpack.c.h.b16 %v349
    %v384 = vunpack.c.l.b16 %v350
    %v385 = vunpack.c.l.b16 %v351
    %v386 = vunpack.c.h.b16 %v351
    %v387 = vunpack.c.l.b16 %v352
    %v388 = vunpack.c.l.b16 %v353
    %v389 = vunpack.c.h.b16 %v353
    %v390 = vunpack.c.l.b16 %v354
    %v391 = vunpack.c.l.b16 %v355
    %v392 = vunpack.c.h.b16 %v355
    %v393 = vunpack.c.l.b16 %v356
    %v394 = vunpack.c.l.b16 %v357
    %v395 = vunpack.c.h.b16 %v357
    %v396 = vunpack.c.l.b16 %v358
    %v397 = vunpack.c.l.b16 %v359
    %v398 = vunpack.c.h.b16 %v359
    %v399 = vunpack.c.l.b16 %v360
    %v400 = vunpack.c.l.b16 %v361
    %v401 = vunpack.c.h.b16 %v361
    %v402 = vunpack.c.l.b16 %v362
    %v403 = vpack.c.b16 %v382, %v379
    %v404 = vpack.c.b16 %v383, %v380
    %v405 = vpack.c.b16 %v384, %v381
    %v406 = vpack.c.b16 %v388, %v385
    %v407 = vpack.c.b16 %v389, %v386
    %v408 = vpack.c.b16 %v390, %v387
    %v409 = vpack.c.b16 %v394, %v391
    %v410 = vpack.c.b16 %v395, %v392
    %v411 = vpack.c.b16 %v396, %v393
    %v412 = vpack.c.b16 %v400, %v397
    %v413 = vpack.c.b16 %v401, %v398
    %v414 = vpack.c.b16 %v402, %v399
    %vm427 = vcmask 523264
    %v429 = vsel %vm427, 0, 0
    %431 = vmatpush.bf16.msra.mxu0 0
    %432 = vmatpush.bf16.msra.mxu0 0
    %433 = vmatpush.bf16.msra.mxu0 0
    %434 = vmatpush.bf16.msra.mxu0 0
    %435 = vmatpush.bf16.msra.mxu0 %v412
    %436 = vmatpush.bf16.msra.mxu0 %v409
    %437 = vmatpush.bf16.msra.mxu0 %v406
    %438 = vmatpush.bf16.msra.mxu0 %v403
    %439 = vmatmul.bf16.gmra.mxu0 %v429
    %v440 = vpop.f32.mrf.mxu0
    %v441 = vadd.f32 0.0, %v440
    %v442 = vpop.f32.mrf.mxu0
    %443 = vdwg.mxu0
    %444 = vmatpush.bf16.msra.mxu0 0
    %445 = vmatpush.bf16.msra.mxu0 0
    %446 = vmatpush.bf16.msra.mxu0 0
    %447 = vmatpush.bf16.msra.mxu0 0
    %448 = vmatpush.bf16.msra.mxu0 %v413
    %449 = vmatpush.bf16.msra.mxu0 %v410
    %450 = vmatpush.bf16.msra.mxu0 %v407
    %451 = vmatpush.bf16.msra.mxu0 %v404
    %452 = vmatmul.bf16.gmra.mxu0 %v429
    %v453 = vpop.f32.mrf.mxu0
    %v454 = vadd.f32 0.0, %v453
    %v455 = vpop.f32.mrf.mxu0
    %456 = vdwg.mxu0
    %457 = vmatpush.bf16.msra.mxu0 0
    %458 = vmatpush.bf16.msra.mxu0 0
    %459 = vmatpush.bf16.msra.mxu0 0
    %460 = vmatpush.bf16.msra.mxu0 0
    %461 = vmatpush.bf16.msra.mxu0 %v414
    %462 = vmatpush.bf16.msra.mxu0 %v411
    %463 = vmatpush.bf16.msra.mxu0 %v408
    %464 = vmatpush.bf16.msra.mxu0 %v405
    %465 = vmatmul.bf16.gmra.mxu0 %v429
    %v466 = vpop.f32.mrf.mxu0
    %v467 = vadd.f32 0.0, %v466
    %v468 = vpop.f32.mrf.mxu0
    %469 = vdwg.mxu0
    %v470 = vld [vmem:[#allocation2] sm:$0xff]
    %v471 = vld [vmem:[#allocation2 + $0x8] sm:$0xff]
    %v472 = vld [vmem:[#allocation2 + $0x10] sm:$0xff]
    %v473 = vadd.f32 %v470, %v441
    %v474 = vxor.u32 %v473, 2147483648
    %v475 = vmul.f32 %v474, 1.442695
    %v476 = vpow.pop %v475
    %v477 = vadd.f32 %v476, 1.0
    %v478 = vrcp.pop %v477
    %v479 = vmul.f32 %v477, %v478
    %v480 = vsub.f32 1.0, %v479
    %v481 = vmul.f32 %v478, %v480
    %v482 = vadd.f32 %v478, %v481
    %vm483 = vweird.f32 %v477
    %vm484 = vweird.f32 %v478
    %vm485 = vmor %vm483, %vm484
    %v486 = vsel %vm485, %v478, %v482
    %v487 = vand.u32 2147483647, %v477
    %vm488 = vcmp.eq.f32.partialorder %v487, 8.507059e+37
    %v489 = vand.u32 %v477, 2147483648
    %v490 = vor.u32 1.1754944e-38, %v489
    %v491 = vsel %vm488, %v490, %v486
    %v492 = vmul.f32 1.0, %v491
    %v493 = vadd.f32 %v471, %v454
    %v494 = vxor.u32 %v493, 2147483648
    %v495 = vmul.f32 %v494, 1.442695
    %v496 = vpow.pop %v495
    %v497 = vadd.f32 %v496, 1.0
    %v498 = vrcp.pop %v497
    %v499 = vmul.f32 %v497, %v498
    %v500 = vsub.f32 1.0, %v499
    %v501 = vmul.f32 %v498, %v500
    %v502 = vadd.f32 %v498, %v501
    %vm503 = vweird.f32 %v497
    %vm504 = vweird.f32 %v498
    %vm505 = vmor %vm503, %vm504
    %v506 = vsel %vm505, %v498, %v502
    %v507 = vand.u32 2147483647, %v497
    %vm508 = vcmp.eq.f32.partialorder %v507, 8.507059e+37
    %v509 = vand.u32 %v497, 2147483648
    %v510 = vor.u32 1.1754944e-38, %v509
    %v511 = vsel %vm508, %v510, %v506
    %v512 = vmul.f32 1.0, %v511
    %v513 = vadd.f32 %v467, %v345
    %v514 = vmul.f32 %v492, %v513
    %v515 = vadd.f32 %v472, %v514
    %v516 = vtanh.pop %v515
    %v517 = vsub.f32 1.0, %v512
    %v518 = vmul.f32 %v517, %v516
    %v519 = vmul.f32 %v512, 0.0
    %v520 = vadd.f32 %v518, %v519
    %v521 = vpack.c.bf16 %v520, %v520
    %v522 = vld [vmem:[%s5] sm:$0xf]
    %v523 = vld [vmem:[%s5 + $0x4] sm:$0xf]
    %v524 = vld [vmem:[%s5 + $0x8] sm:$0xf]
    %v525 = vld [vmem:[%s5 + $0xc] sm:$0xf]
    %v526 = vld [vmem:[%s5 + $0x10] sm:$0xf]
    %v527 = vld [vmem:[%s5 + $0x14] sm:$0xf]
    %v528 = vld [vmem:[%s5 + $0x18] sm:$0xf]
    %v529 = vld [vmem:[%s5 + $0x1c] sm:$0xf]
    %v530 = vld [vmem:[#allocation11] sm:$0x1]
    %v532 = vperm.slane %v530, 0
    %v542 = vunpack.c.l.b16 %v522
    %v543 = vunpack.c.l.b16 %v523
    %v544 = vunpack.c.l.b16 %v524
    %v545 = vunpack.c.l.b16 %v525
    %v546 = vunpack.c.l.b16 %v526
    %v547 = vunpack.c.l.b16 %v527
    %v548 = vunpack.c.l.b16 %v528
    %v549 = vunpack.c.l.b16 %v529
    %v550 = vpack.c.b16 %v543, %v542
    %v551 = vpack.c.b16 %v545, %v544
    %v552 = vpack.c.b16 %v547, %v546
    %v553 = vpack.c.b16 %v549, %v548
    %v559 = vsel %vm427, %v521, 0
    %561 = vmatpush.bf16.msra.mxu0 0
    %562 = vmatpush.bf16.msra.mxu0 0
    %563 = vmatpush.bf16.msra.mxu0 0
    %564 = vmatpush.bf16.msra.mxu0 0
    %565 = vmatpush.bf16.msra.mxu0 %v553
    %566 = vmatpush.bf16.msra.mxu0 %v552
    %567 = vmatpush.bf16.msra.mxu0 %v551
    %568 = vmatpush.bf16.msra.mxu0 %v550
    %569 = vmatmul.bf16.gmra.mxu0 %v559
    %v570 = vpop.f32.mrf.mxu0
    %v571 = vadd.f32 %v532, %v570
    %v572 = vpop.f32.mrf.mxu0
    %573 = vdwg.mxu0
    %v574 = vmax.f32 %v571, 0.0
    %v575 = vpack.c.bf16 %v574, %v574
    %v576 = vld [vmem:[#allocation12] sm:$0xf]
    %v577 = vld [vmem:[#allocation12 + $0x4] sm:$0xf]
    %v578 = vld [vmem:[#allocation12 + $0x8] sm:$0xf]
    %v579 = vld [vmem:[#allocation12 + $0xc] sm:$0xf]
    %v580 = vld [vmem:[#allocation12 + $0x10] sm:$0xf]
    %v581 = vld [vmem:[#allocation12 + $0x14] sm:$0xf]
    %v582 = vld [vmem:[#allocation12 + $0x18] sm:$0xf]
    %v583 = vld [vmem:[#allocation12 + $0x1c] sm:$0xf]
    %v584 = vld [vmem:[#allocation12 + $0x20] sm:$0xf]
    %v585 = vld [vmem:[#allocation12 + $0x24] sm:$0xf]
    %v586 = vld [vmem:[#allocation12 + $0x28] sm:$0xf]
    %v587 = vld [vmem:[#allocation12 + $0x2c] sm:$0xf]
    %v588 = vld [vmem:[#allocation12 + $0x30] sm:$0xf]
    %v589 = vld [vmem:[#allocation12 + $0x34] sm:$0xf]
    %v590 = vld [vmem:[#allocation12 + $0x38] sm:$0xf]
    %v591 = vld [vmem:[#allocation12 + $0x3c] sm:$0xf]
    %v592 = vld [vmem:[#allocation14] sm:$0x1]
    %v594 = vperm.slane %v592, 0
    %v612 = vunpack.c.l.b16 %v576
    %v613 = vunpack.c.l.b16 %v577
    %v614 = vunpack.c.l.b16 %v578
    %v615 = vunpack.c.l.b16 %v579
    %v616 = vunpack.c.l.b16 %v580
    %v617 = vunpack.c.l.b16 %v581
    %v618 = vunpack.c.l.b16 %v582
    %v619 = vunpack.c.l.b16 %v583
    %v620 = vunpack.c.l.b16 %v584
    %v621 = vunpack.c.l.b16 %v585
    %v622 = vunpack.c.l.b16 %v586
    %v623 = vunpack.c.l.b16 %v587
    %v624 = vunpack.c.l.b16 %v588
    %v625 = vunpack.c.l.b16 %v589
    %v626 = vunpack.c.l.b16 %v590
    %v627 = vunpack.c.l.b16 %v591
    %v628 = vpack.c.b16 %v613, %v612
    %v629 = vpack.c.b16 %v615, %v614
    %v630 = vpack.c.b16 %v617, %v616
    %v631 = vpack.c.b16 %v619, %v618
    %v632 = vpack.c.b16 %v621, %v620
    %v633 = vpack.c.b16 %v623, %v622
    %v634 = vpack.c.b16 %v625, %v624
    %v635 = vpack.c.b16 %v627, %v626
    %644 = vmatpush.bf16.msra.mxu0 %v635
    %645 = vmatpush.bf16.msra.mxu0 %v634
    %646 = vmatpush.bf16.msra.mxu0 %v633
    %647 = vmatpush.bf16.msra.mxu0 %v632
    %648 = vmatpush.bf16.msra.mxu0 %v631
    %649 = vmatpush.bf16.msra.mxu0 %v630
    %650 = vmatpush.bf16.msra.mxu0 %v629
    %651 = vmatpush.bf16.msra.mxu0 %v628
    %652 = vmatmul.bf16.gmra.mxu0 %v575
    %v653 = vpop.f32.mrf.mxu0
    %v654 = vadd.f32 %v594, %v653
    %v655 = vpop.f32.mrf.mxu0
    %656 = vdwg.mxu0
    %v657 = vmax.f32 %v654, 0.0
    %v658 = vpack.c.bf16 %v657, %v657
    %v659 = vld [vmem:[#allocation15] sm:$0xf]
    %v660 = vld [vmem:[#allocation15 + $0x4] sm:$0xf]
    %v661 = vld [vmem:[#allocation15 + $0x8] sm:$0xf]
    %v662 = vld [vmem:[#allocation15 + $0xc] sm:$0xf]
    %v663 = vld [vmem:[#allocation15 + $0x10] sm:$0xf]
    %v664 = vld [vmem:[#allocation15 + $0x14] sm:$0xf]
    %v665 = vld [vmem:[#allocation15 + $0x18] sm:$0xf]
    %v666 = vld [vmem:[#allocation15 + $0x1c] sm:$0xf]
    %v667 = vld [vmem:[%s10] sm:$0x1]
    %v669 = vperm.slane %v667, 0
    %v679 = vunpack.c.l.b16 %v659
    %v680 = vunpack.c.l.b16 %v660
    %v681 = vunpack.c.l.b16 %v661
    %v682 = vunpack.c.l.b16 %v662
    %v683 = vunpack.c.l.b16 %v663
    %v684 = vunpack.c.l.b16 %v664
    %v685 = vunpack.c.l.b16 %v665
    %v686 = vunpack.c.l.b16 %v666
    %v687 = vpack.c.b16 %v680, %v679
    %v688 = vpack.c.b16 %v682, %v681
    %v689 = vpack.c.b16 %v684, %v683
    %v690 = vpack.c.b16 %v686, %v685
    %v696 = vsel %vm427, %v658, 0
    %698 = vmatpush.bf16.msra.mxu0 0
    %699 = vmatpush.bf16.msra.mxu0 0
    %700 = vmatpush.bf16.msra.mxu0 0
    %701 = vmatpush.bf16.msra.mxu0 0
    %702 = vmatpush.bf16.msra.mxu0 %v690
    %703 = vmatpush.bf16.msra.mxu0 %v689
    %704 = vmatpush.bf16.msra.mxu0 %v688
    %705 = vmatpush.bf16.msra.mxu0 %v687
    %706 = vmatmul.bf16.gmra.mxu0 %v696
    %v707 = vpop.f32.mrf.mxu0
    %v708 = vadd.f32 %v669, %v707
    %v709 = vpop.f32.mrf.mxu0
    %710 = vdwg.mxu0
    %v711 = vmax.f32 %v708, 0.0
    %v712 = vpack.c.bf16 %v711, %v711
    %v713 = vld [vmem:[%s11] sm:$0xf]
    %v714 = vld [vmem:[%s11 + $0x4] sm:$0xf]
    %v715 = vld [vmem:[%s11 + $0x8] sm:$0xf]
    %v716 = vld [vmem:[%s11 + $0xc] sm:$0xf]
    %v717 = vld [vmem:[%s12] sm:$0x1]
    %v719 = vperm.slane %v717, 0
    %v725 = vunpack.c.l.b16 %v713
    %v726 = vunpack.c.l.b16 %v714
    %v727 = vunpack.c.l.b16 %v715
    %v728 = vunpack.c.l.b16 %v716
    %v729 = vpack.c.b16 %v726, %v725
    %v730 = vpack.c.b16 %v728, %v727
    %vm733 = vcmask 261120
    %v735 = vsel %vm733, %v712, 0
    %737 = vmatpush.bf16.msra.mxu0 0
    %738 = vmatpush.bf16.msra.mxu0 0
    %739 = vmatpush.bf16.msra.mxu0 0
    %740 = vmatpush.bf16.msra.mxu0 0
    %741 = vmatpush.bf16.msra.mxu0 0
    %742 = vmatpush.bf16.msra.mxu0 0
    %743 = vmatpush.bf16.msra.mxu0 %v730
    %744 = vmatpush.bf16.msra.mxu0 %v729
    %745 = vmatmul.bf16.gmra.mxu0 %v735
    %v746 = vpop.f32.mrf.mxu0
    %v747 = vadd.f32 %v719, %v746
    %v748 = vpop.f32.mrf.mxu0
    %749 = vdwg.mxu0
    %750 = vst [vmem:[#allocation17] sm:$0xff] %v747
    %v751 = vld [vmem:[#allocation6] sm:$0xff]
    %v752 = vld [vmem:[#allocation6 + $0x8] sm:$0xf]
    %v753 = vld [vmem:[#allocation6 + $0xc] sm:$0xff]
    %v754 = vld [vmem:[#allocation6 + $0x14] sm:$0xf]
    %v755 = vld [vmem:[#allocation6 + $0x18] sm:$0xff]
    %v756 = vld [vmem:[#allocation6 + $0x20] sm:$0xf]
    %v757 = vld [vmem:[#allocation6 + $0x24] sm:$0xff]
    %v758 = vld [vmem:[#allocation6 + $0x2c] sm:$0xf]
    %v759 = vld [vmem:[#allocation6 + $0x30] sm:$0xff]
    %v760 = vld [vmem:[#allocation6 + $0x38] sm:$0xf]
    %v761 = vld [vmem:[#allocation6 + $0x3c] sm:$0xff]
    %v762 = vld [vmem:[#allocation6 + $0x44] sm:$0xf]
    %v763 = vld [vmem:[#allocation6 + $0x48] sm:$0xff]
    %v764 = vld [vmem:[#allocation6 + $0x50] sm:$0xf]
    %v765 = vld [vmem:[#allocation6 + $0x54] sm:$0xff]
    %v766 = vld [vmem:[#allocation6 + $0x5c] sm:$0xf]
    %v783 = vunpack.c.l.b16 %v751
    %v784 = vunpack.c.h.b16 %v751
    %v785 = vunpack.c.l.b16 %v752
    %v786 = vunpack.c.l.b16 %v753
    %v787 = vunpack.c.h.b16 %v753
    %v788 = vunpack.c.l.b16 %v754
    %v789 = vunpack.c.l.b16 %v755
    %v790 = vunpack.c.h.b16 %v755
    %v791 = vunpack.c.l.b16 %v756
    %v792 = vunpack.c.l.b16 %v757
    %v793 = vunpack.c.h.b16 %v757
    %v794 = vunpack.c.l.b16 %v758
    %v795 = vunpack.c.l.b16 %v759
    %v796 = vunpack.c.h.b16 %v759
    %v797 = vunpack.c.l.b16 %v760
    %v798 = vunpack.c.l.b16 %v761
    %v799 = vunpack.c.h.b16 %v761
    %v800 = vunpack.c.l.b16 %v762
    %v801 = vunpack.c.l.b16 %v763
    %v802 = vunpack.c.h.b16 %v763
    %v803 = vunpack.c.l.b16 %v764
    %v804 = vunpack.c.l.b16 %v765
    %v805 = vunpack.c.h.b16 %v765
    %v806 = vunpack.c.l.b16 %v766
    %v807 = vpack.c.b16 %v786, %v783
    %v808 = vpack.c.b16 %v787, %v784
    %v809 = vpack.c.b16 %v788, %v785
    %v810 = vpack.c.b16 %v792, %v789
    %v811 = vpack.c.b16 %v793, %v790
    %v812 = vpack.c.b16 %v794, %v791
    %v813 = vpack.c.b16 %v798, %v795
    %v814 = vpack.c.b16 %v799, %v796
    %v815 = vpack.c.b16 %v800, %v797
    %v816 = vpack.c.b16 %v804, %v801
    %v817 = vpack.c.b16 %v805, %v802
    %v818 = vpack.c.b16 %v806, %v803
    %831 = vmatpush.bf16.msra.mxu0 0
    %832 = vmatpush.bf16.msra.mxu0 0
    %833 = vmatpush.bf16.msra.mxu0 0
    %834 = vmatpush.bf16.msra.mxu0 0
    %835 = vmatpush.bf16.msra.mxu0 %v816
    %836 = vmatpush.bf16.msra.mxu0 %v813
    %837 = vmatpush.bf16.msra.mxu0 %v810
    %838 = vmatpush.bf16.msra.mxu0 %v807
    %839 = vmatmul.bf16.gmra.mxu0 %v559
    %v840 = vpop.f32.mrf.mxu0
    %v841 = vadd.f32 0.0, %v840
    %v842 = vpop.f32.mrf.mxu0
    %843 = vdwg.mxu0
    %844 = vmatpush.bf16.msra.mxu0 0
    %845 = vmatpush.bf16.msra.mxu0 0
    %846 = vmatpush.bf16.msra.mxu0 0
    %847 = vmatpush.bf16.msra.mxu0 0
    %848 = vmatpush.bf16.msra.mxu0 %v817
    %849 = vmatpush.bf16.msra.mxu0 %v814
    %850 = vmatpush.bf16.msra.mxu0 %v811
    %851 = vmatpush.bf16.msra.mxu0 %v808
    %852 = vmatmul.bf16.gmra.mxu0 %v559
    %v853 = vpop.f32.mrf.mxu0
    %v854 = vadd.f32 0.0, %v853
    %v855 = vpop.f32.mrf.mxu0
    %856 = vdwg.mxu0
    %857 = vmatpush.bf16.msra.mxu0 0
    %858 = vmatpush.bf16.msra.mxu0 0
    %859 = vmatpush.bf16.msra.mxu0 0
    %860 = vmatpush.bf16.msra.mxu0 0
    %861 = vmatpush.bf16.msra.mxu0 %v818
    %862 = vmatpush.bf16.msra.mxu0 %v815
    %863 = vmatpush.bf16.msra.mxu0 %v812
    %864 = vmatpush.bf16.msra.mxu0 %v809
    %865 = vmatmul.bf16.gmra.mxu0 %v559
    %v866 = vpop.f32.mrf.mxu0
    %v867 = vadd.f32 0.0, %v866
    %v868 = vpop.f32.mrf.mxu0
    %869 = vdwg.mxu0
    %v870 = vld [vmem:[#allocation2 + $0x18] sm:$0xff]
    %v871 = vld [vmem:[#allocation2 + $0x20] sm:$0xff]
    %v872 = vld [vmem:[#allocation2 + $0x28] sm:$0xff]
    %v873 = vadd.f32 %v870, %v841
    %v874 = vxor.u32 %v873, 2147483648
    %v875 = vmul.f32 %v874, 1.442695
    %v876 = vpow.pop %v875
    %v877 = vadd.f32 %v876, 1.0
    %v878 = vrcp.pop %v877
    %v879 = vmul.f32 %v877, %v878
    %v880 = vsub.f32 1.0, %v879
    %v881 = vmul.f32 %v878, %v880
    %v882 = vadd.f32 %v878, %v881
    %vm883 = vweird.f32 %v877
    %vm884 = vweird.f32 %v878
    %vm885 = vmor %vm883, %vm884
    %v886 = vsel %vm885, %v878, %v882
    %v887 = vand.u32 2147483647, %v877
    %vm888 = vcmp.eq.f32.partialorder %v887, 8.507059e+37
    %v889 = vand.u32 %v877, 2147483648
    %v890 = vor.u32 1.1754944e-38, %v889
    %v891 = vsel %vm888, %v890, %v886
    %v892 = vmul.f32 1.0, %v891
    %v893 = vadd.f32 %v871, %v854
    %v894 = vxor.u32 %v893, 2147483648
    %v895 = vmul.f32 %v894, 1.442695
    %v896 = vpow.pop %v895
    %v897 = vadd.f32 %v896, 1.0
    %v898 = vrcp.pop %v897
    %v899 = vmul.f32 %v897, %v898
    %v900 = vsub.f32 1.0, %v899
    %v901 = vmul.f32 %v898, %v900
    %v902 = vadd.f32 %v898, %v901
    %vm903 = vweird.f32 %v897
    %vm904 = vweird.f32 %v898
    %vm905 = vmor %vm903, %vm904
    %v906 = vsel %vm905, %v898, %v902
    %v907 = vand.u32 2147483647, %v897
    %vm908 = vcmp.eq.f32.partialorder %v907, 8.507059e+37
    %v909 = vand.u32 %v897, 2147483648
    %v910 = vor.u32 1.1754944e-38, %v909
    %v911 = vsel %vm908, %v910, %v906
    %v912 = vmul.f32 1.0, %v911
    %v913 = vadd.f32 %v867, %v345
    %v914 = vmul.f32 %v892, %v913
    %v915 = vadd.f32 %v872, %v914
    %v916 = vtanh.pop %v915
    %v917 = vsub.f32 1.0, %v912
    %v918 = vmul.f32 %v917, %v916
    %v919 = vmul.f32 %v912, %v520
    %v920 = vadd.f32 %v918, %v919
    %v921 = vpack.c.bf16 %v920, %v920
    %v922 = vld [vmem:[%s5] sm:$0xf]
    %v923 = vld [vmem:[%s5 + $0x4] sm:$0xf]
    %v924 = vld [vmem:[%s5 + $0x8] sm:$0xf]
    %v925 = vld [vmem:[%s5 + $0xc] sm:$0xf]
    %v926 = vld [vmem:[%s5 + $0x10] sm:$0xf]
    %v927 = vld [vmem:[%s5 + $0x14] sm:$0xf]
    %v928 = vld [vmem:[%s5 + $0x18] sm:$0xf]
    %v929 = vld [vmem:[%s5 + $0x1c] sm:$0xf]
    %v930 = vld [vmem:[#allocation11] sm:$0x1]
    %v932 = vperm.slane %v930, 0
    %v942 = vunpack.c.l.b16 %v922
    %v943 = vunpack.c.l.b16 %v923
    %v944 = vunpack.c.l.b16 %v924
    %v945 = vunpack.c.l.b16 %v925
    %v946 = vunpack.c.l.b16 %v926
    %v947 = vunpack.c.l.b16 %v927
    %v948 = vunpack.c.l.b16 %v928
    %v949 = vunpack.c.l.b16 %v929
    %v950 = vpack.c.b16 %v943, %v942
    %v951 = vpack.c.b16 %v945, %v944
    %v952 = vpack.c.b16 %v947, %v946
    %v953 = vpack.c.b16 %v949, %v948
    %v959 = vsel %vm427, %v921, 0
    %961 = vmatpush.bf16.msra.mxu0 0
    %962 = vmatpush.bf16.msra.mxu0 0
    %963 = vmatpush.bf16.msra.mxu0 0
    %964 = vmatpush.bf16.msra.mxu0 0
    %965 = vmatpush.bf16.msra.mxu0 %v953
    %966 = vmatpush.bf16.msra.mxu0 %v952
    %967 = vmatpush.bf16.msra.mxu0 %v951
    %968 = vmatpush.bf16.msra.mxu0 %v950
    %969 = vmatmul.bf16.gmra.mxu0 %v959
    %v970 = vpop.f32.mrf.mxu0
    %v971 = vadd.f32 %v932, %v970
    %v972 = vpop.f32.mrf.mxu0
    %973 = vdwg.mxu0
    %v974 = vmax.f32 %v971, 0.0
    %v975 = vpack.c.bf16 %v974, %v974
    %v976 = vld [vmem:[#allocation12] sm:$0xf]
    %v977 = vld [vmem:[#allocation12 + $0x4] sm:$0xf]
    %v978 = vld [vmem:[#allocation12 + $0x8] sm:$0xf]
    %v979 = vld [vmem:[#allocation12 + $0xc] sm:$0xf]
    %v980 = vld [vmem:[#allocation12 + $0x10] sm:$0xf]
    %v981 = vld [vmem:[#allocation12 + $0x14] sm:$0xf]
    %v982 = vld [vmem:[#allocation12 + $0x18] sm:$0xf]
    %v983 = vld [vmem:[#allocation12 + $0x1c] sm:$0xf]
    %v984 = vld [vmem:[#allocation12 + $0x20] sm:$0xf]
    %v985 = vld [vmem:[#allocation12 + $0x24] sm:$0xf]
    %v986 = vld [vmem:[#allocation12 + $0x28] sm:$0xf]
    %v987 = vld [vmem:[#allocation12 + $0x2c] sm:$0xf]
    %v988 = vld [vmem:[#allocation12 + $0x30] sm:$0xf]
    %v989 = vld [vmem:[#allocation12 + $0x34] sm:$0xf]
    %v990 = vld [vmem:[#allocation12 + $0x38] sm:$0xf]
    %v991 = vld [vmem:[#allocation12 + $0x3c] sm:$0xf]
    %v992 = vld [vmem:[#allocation14] sm:$0x1]
    %v994 = vperm.slane %v992, 0
    %v1012 = vunpack.c.l.b16 %v976
    %v1013 = vunpack.c.l.b16 %v977
    %v1014 = vunpack.c.l.b16 %v978
    %v1015 = vunpack.c.l.b16 %v979
    %v1016 = vunpack.c.l.b16 %v980
    %v1017 = vunpack.c.l.b16 %v981
    %v1018 = vunpack.c.l.b16 %v982
    %v1019 = vunpack.c.l.b16 %v983
    %v1020 = vunpack.c.l.b16 %v984
    %v1021 = vunpack.c.l.b16 %v985
    %v1022 = vunpack.c.l.b16 %v986
    %v1023 = vunpack.c.l.b16 %v987
    %v1024 = vunpack.c.l.b16 %v988
    %v1025 = vunpack.c.l.b16 %v989
    %v1026 = vunpack.c.l.b16 %v990
    %v1027 = vunpack.c.l.b16 %v991
    %v1028 = vpack.c.b16 %v1013, %v1012
    %v1029 = vpack.c.b16 %v1015, %v1014
    %v1030 = vpack.c.b16 %v1017, %v1016
    %v1031 = vpack.c.b16 %v1019, %v1018
    %v1032 = vpack.c.b16 %v1021, %v1020
    %v1033 = vpack.c.b16 %v1023, %v1022
    %v1034 = vpack.c.b16 %v1025, %v1024
    %v1035 = vpack.c.b16 %v1027, %v1026
    %1044 = vmatpush.bf16.msra.mxu0 %v1035
    %1045 = vmatpush.bf16.msra.mxu0 %v1034
    %1046 = vmatpush.bf16.msra.mxu0 %v1033
    %1047 = vmatpush.bf16.msra.mxu0 %v1032
    %1048 = vmatpush.bf16.msra.mxu0 %v1031
    %1049 = vmatpush.bf16.msra.mxu0 %v1030
    %1050 = vmatpush.bf16.msra.mxu0 %v1029
    %1051 = vmatpush.bf16.msra.mxu0 %v1028
    %1052 = vmatmul.bf16.gmra.mxu0 %v975
    %v1053 = vpop.f32.mrf.mxu0
    %v1054 = vadd.f32 %v994, %v1053
    %v1055 = vpop.f32.mrf.mxu0
    %1056 = vdwg.mxu0
    %v1057 = vmax.f32 %v1054, 0.0
    %v1058 = vpack.c.bf16 %v1057, %v1057
    %v1059 = vld [vmem:[#allocation15] sm:$0xf]
    %v1060 = vld [vmem:[#allocation15 + $0x4] sm:$0xf]
    %v1061 = vld [vmem:[#allocation15 + $0x8] sm:$0xf]
    %v1062 = vld [vmem:[#allocation15 + $0xc] sm:$0xf]
    %v1063 = vld [vmem:[#allocation15 + $0x10] sm:$0xf]
    %v1064 = vld [vmem:[#allocation15 + $0x14] sm:$0xf]
    %v1065 = vld [vmem:[#allocation15 + $0x18] sm:$0xf]
    %v1066 = vld [vmem:[#allocation15 + $0x1c] sm:$0xf]
    %v1067 = vld [vmem:[%s10] sm:$0x1]
    %v1069 = vperm.slane %v1067, 0
    %v1079 = vunpack.c.l.b16 %v1059
    %v1080 = vunpack.c.l.b16 %v1060
    %v1081 = vunpack.c.l.b16 %v1061
    %v1082 = vunpack.c.l.b16 %v1062
    %v1083 = vunpack.c.l.b16 %v1063
    %v1084 = vunpack.c.l.b16 %v1064
    %v1085 = vunpack.c.l.b16 %v1065
    %v1086 = vunpack.c.l.b16 %v1066
    %v1087 = vpack.c.b16 %v1080, %v1079
    %v1088 = vpack.c.b16 %v1082, %v1081
    %v1089 = vpack.c.b16 %v1084, %v1083
    %v1090 = vpack.c.b16 %v1086, %v1085
    %v1096 = vsel %vm427, %v1058, 0
    %1098 = vmatpush.bf16.msra.mxu0 0
    %1099 = vmatpush.bf16.msra.mxu0 0
    %1100 = vmatpush.bf16.msra.mxu0 0
    %1101 = vmatpush.bf16.msra.mxu0 0
    %1102 = vmatpush.bf16.msra.mxu0 %v1090
    %1103 = vmatpush.bf16.msra.mxu0 %v1089
    %1104 = vmatpush.bf16.msra.mxu0 %v1088
    %1105 = vmatpush.bf16.msra.mxu0 %v1087
    %1106 = vmatmul.bf16.gmra.mxu0 %v1096
    %v1107 = vpop.f32.mrf.mxu0
    %v1108 = vadd.f32 %v1069, %v1107
    %v1109 = vpop.f32.mrf.mxu0
    %1110 = vdwg.mxu0
    %v1111 = vmax.f32 %v1108, 0.0
    %v1112 = vpack.c.bf16 %v1111, %v1111
    %v1113 = vld [vmem:[%s11] sm:$0xf]
    %v1114 = vld [vmem:[%s11 + $0x4] sm:$0xf]
    %v1115 = vld [vmem:[%s11 + $0x8] sm:$0xf]
    %v1116 = vld [vmem:[%s11 + $0xc] sm:$0xf]
    %v1117 = vld [vmem:[%s12] sm:$0x1]
    %v1119 = vperm.slane %v1117, 0
    %v1125 = vunpack.c.l.b16 %v1113
    %v1126 = vunpack.c.l.b16 %v1114
    %v1127 = vunpack.c.l.b16 %v1115
    %v1128 = vunpack.c.l.b16 %v1116
    %v1129 = vpack.c.b16 %v1126, %v1125
    %v1130 = vpack.c.b16 %v1128, %v1127
    %v1134 = vsel %vm733, %v1112, 0
    %1136 = vmatpush.bf16.msra.mxu0 0
    %1137 = vmatpush.bf16.msra.mxu0 0
    %1138 = vmatpush.bf16.msra.mxu0 0
    %1139 = vmatpush.bf16.msra.mxu0 0
    %1140 = vmatpush.bf16.msra.mxu0 0
    %1141 = vmatpush.bf16.msra.mxu0 0
    %1142 = vmatpush.bf16.msra.mxu0 %v1130
    %1143 = vmatpush.bf16.msra.mxu0 %v1129
    %1144 = vmatmul.bf16.gmra.mxu0 %v1134
    %v1145 = vpop.f32.mrf.mxu0
    %v1146 = vadd.f32 %v1119, %v1145
    %v1147 = vpop.f32.mrf.mxu0
    %1148 = vdwg.mxu0
    %1149 = vst [vmem:[#allocation17 + $0x8] sm:$0xff] %v1146
    %v1150 = vld [vmem:[#allocation6] sm:$0xff]
    %v1151 = vld [vmem:[#allocation6 + $0x8] sm:$0xf]
    %v1152 = vld [vmem:[#allocation6 + $0xc] sm:$0xff]
    %v1153 = vld [vmem:[#allocation6 + $0x14] sm:$0xf]
    %v1154 = vld [vmem:[#allocation6 + $0x18] sm:$0xff]
    %v1155 = vld [vmem:[#allocation6 + $0x20] sm:$0xf]
    %v1156 = vld [vmem:[#allocation6 + $0x24] sm:$0xff]
    %v1157 = vld [vmem:[#allocation6 + $0x2c] sm:$0xf]
    %v1158 = vld [vmem:[#allocation6 + $0x30] sm:$0xff]
    %v1159 = vld [vmem:[#allocation6 + $0x38] sm:$0xf]
    %v1160 = vld [vmem:[#allocation6 + $0x3c] sm:$0xff]
    %v1161 = vld [vmem:[#allocation6 + $0x44] sm:$0xf]
    %v1162 = vld [vmem:[#allocation6 + $0x48] sm:$0xff]
    %v1163 = vld [vmem:[#allocation6 + $0x50] sm:$0xf]
    %v1164 = vld [vmem:[#allocation6 + $0x54] sm:$0xff]
    %v1165 = vld [vmem:[#allocation6 + $0x5c] sm:$0xf]
    %v1182 = vunpack.c.l.b16 %v1150
    %v1183 = vunpack.c.h.b16 %v1150
    %v1184 = vunpack.c.l.b16 %v1151
    %v1185 = vunpack.c.l.b16 %v1152
    %v1186 = vunpack.c.h.b16 %v1152
    %v1187 = vunpack.c.l.b16 %v1153
    %v1188 = vunpack.c.l.b16 %v1154
    %v1189 = vunpack.c.h.b16 %v1154
    %v1190 = vunpack.c.l.b16 %v1155
    %v1191 = vunpack.c.l.b16 %v1156
    %v1192 = vunpack.c.h.b16 %v1156
    %v1193 = vunpack.c.l.b16 %v1157
    %v1194 = vunpack.c.l.b16 %v1158
    %v1195 = vunpack.c.h.b16 %v1158
    %v1196 = vunpack.c.l.b16 %v1159
    %v1197 = vunpack.c.l.b16 %v1160
    %v1198 = vunpack.c.h.b16 %v1160
    %v1199 = vunpack.c.l.b16 %v1161
    %v1200 = vunpack.c.l.b16 %v1162
    %v1201 = vunpack.c.h.b16 %v1162
    %v1202 = vunpack.c.l.b16 %v1163
    %v1203 = vunpack.c.l.b16 %v1164
    %v1204 = vunpack.c.h.b16 %v1164
    %v1205 = vunpack.c.l.b16 %v1165
    %v1206 = vpack.c.b16 %v1185, %v1182
    %v1207 = vpack.c.b16 %v1186, %v1183
    %v1208 = vpack.c.b16 %v1187, %v1184
    %v1209 = vpack.c.b16 %v1191, %v1188
    %v1210 = vpack.c.b16 %v1192, %v1189
    %v1211 = vpack.c.b16 %v1193, %v1190
    %v1212 = vpack.c.b16 %v1197, %v1194
    %v1213 = vpack.c.b16 %v1198, %v1195
    %v1214 = vpack.c.b16 %v1199, %v1196
    %v1215 = vpack.c.b16 %v1203, %v1200
    %v1216 = vpack.c.b16 %v1204, %v1201
    %v1217 = vpack.c.b16 %v1205, %v1202
    %1230 = vmatpush.bf16.msra.mxu0 0
    %1231 = vmatpush.bf16.msra.mxu0 0
    %1232 = vmatpush.bf16.msra.mxu0 0
    %1233 = vmatpush.bf16.msra.mxu0 0
    %1234 = vmatpush.bf16.msra.mxu0 %v1215
    %1235 = vmatpush.bf16.msra.mxu0 %v1212
    %1236 = vmatpush.bf16.msra.mxu0 %v1209
    %1237 = vmatpush.bf16.msra.mxu0 %v1206
    %1238 = vmatmul.bf16.gmra.mxu0 %v959
    %v1239 = vpop.f32.mrf.mxu0
    %v1240 = vadd.f32 0.0, %v1239
    %v1241 = vpop.f32.mrf.mxu0
    %1242 = vdwg.mxu0
    %1243 = vmatpush.bf16.msra.mxu0 0
    %1244 = vmatpush.bf16.msra.mxu0 0
    %1245 = vmatpush.bf16.msra.mxu0 0
    %1246 = vmatpush.bf16.msra.mxu0 0
    %1247 = vmatpush.bf16.msra.mxu0 %v1216
    %1248 = vmatpush.bf16.msra.mxu0 %v1213
    %1249 = vmatpush.bf16.msra.mxu0 %v1210
    %1250 = vmatpush.bf16.msra.mxu0 %v1207
    %1251 = vmatmul.bf16.gmra.mxu0 %v959
    %v1252 = vpop.f32.mrf.mxu0
    %v1253 = vadd.f32 0.0, %v1252
    %v1254 = vpop.f32.mrf.mxu0
    %1255 = vdwg.mxu0
    %1256 = vmatpush.bf16.msra.mxu0 0
    %1257 = vmatpush.bf16.msra.mxu0 0
    %1258 = vmatpush.bf16.msra.mxu0 0
    %1259 = vmatpush.bf16.msra.mxu0 0
    %1260 = vmatpush.bf16.msra.mxu0 %v1217
    %1261 = vmatpush.bf16.msra.mxu0 %v1214
    %1262 = vmatpush.bf16.msra.mxu0 %v1211
    %1263 = vmatpush.bf16.msra.mxu0 %v1208
    %1264 = vmatmul.bf16.gmra.mxu0 %v959
    %v1265 = vpop.f32.mrf.mxu0
    %v1266 = vadd.f32 0.0, %v1265
    %v1267 = vpop.f32.mrf.mxu0
    %1268 = vdwg.mxu0
    %v1269 = vld [vmem:[#allocation2 + $0x30] sm:$0xff]
    %v1270 = vld [vmem:[#allocation2 + $0x38] sm:$0xff]
    %v1271 = vld [vmem:[#allocation2 + $0x40] sm:$0xff]
    %v1272 = vadd.f32 %v1269, %v1240
    %v1273 = vxor.u32 %v1272, 2147483648
    %v1274 = vmul.f32 %v1273, 1.442695
    %v1275 = vpow.pop %v1274
    %v1276 = vadd.f32 %v1275, 1.0
    %v1277 = vrcp.pop %v1276
    %v1278 = vmul.f32 %v1276, %v1277
    %v1279 = vsub.f32 1.0, %v1278
    %v1280 = vmul.f32 %v1277, %v1279
    %v1281 = vadd.f32 %v1277, %v1280
    %vm1282 = vweird.f32 %v1276
    %vm1283 = vweird.f32 %v1277
    %vm1284 = vmor %vm1282, %vm1283
    %v1285 = vsel %vm1284, %v1277, %v1281
    %v1286 = vand.u32 2147483647, %v1276
    %vm1287 = vcmp.eq.f32.partialorder %v1286, 8.507059e+37
    %v1288 = vand.u32 %v1276, 2147483648
    %v1289 = vor.u32 1.1754944e-38, %v1288
    %v1290 = vsel %vm1287, %v1289, %v1285
    %v1291 = vmul.f32 1.0, %v1290
    %v1292 = vadd.f32 %v1270, %v1253
    %v1293 = vxor.u32 %v1292, 2147483648
    %v1294 = vmul.f32 %v1293, 1.442695
    %v1295 = vpow.pop %v1294
    %v1296 = vadd.f32 %v1295, 1.0
    %v1297 = vrcp.pop %v1296
    %v1298 = vmul.f32 %v1296, %v1297
    %v1299 = vsub.f32 1.0, %v1298
    %v1300 = vmul.f32 %v1297, %v1299
    %v1301 = vadd.f32 %v1297, %v1300
    %vm1302 = vweird.f32 %v1296
    %vm1303 = vweird.f32 %v1297
    %vm1304 = vmor %vm1302, %vm1303
    %v1305 = vsel %vm1304, %v1297, %v1301
    %v1306 = vand.u32 2147483647, %v1296
    %vm1307 = vcmp.eq.f32.partialorder %v1306, 8.507059e+37
    %v1308 = vand.u32 %v1296, 2147483648
    %v1309 = vor.u32 1.1754944e-38, %v1308
    %v1310 = vsel %vm1307, %v1309, %v1305
    %v1311 = vmul.f32 1.0, %v1310
    %v1312 = vadd.f32 %v1266, %v345
    %v1313 = vmul.f32 %v1291, %v1312
    %v1314 = vadd.f32 %v1271, %v1313
    %v1315 = vtanh.pop %v1314
    %v1316 = vsub.f32 1.0, %v1311
    %v1317 = vmul.f32 %v1316, %v1315
    %v1318 = vmul.f32 %v1311, %v920
    %v1319 = vadd.f32 %v1317, %v1318
    %v1320 = vpack.c.bf16 %v1319, %v1319
    %v1321 = vld [vmem:[%s5] sm:$0xf]
    %v1322 = vld [vmem:[%s5 + $0x4] sm:$0xf]
    %v1323 = vld [vmem:[%s5 + $0x8] sm:$0xf]
    %v1324 = vld [vmem:[%s5 + $0xc] sm:$0xf]
    %v1325 = vld [vmem:[%s5 + $0x10] sm:$0xf]
    %v1326 = vld [vmem:[%s5 + $0x14] sm:$0xf]
    %v1327 = vld [vmem:[%s5 + $0x18] sm:$0xf]
    %v1328 = vld [vmem:[%s5 + $0x1c] sm:$0xf]
    %v1329 = vld [vmem:[#allocation11] sm:$0x1]
    %v1331 = vperm.slane %v1329, 0
    %v1341 = vunpack.c.l.b16 %v1321
    %v1342 = vunpack.c.l.b16 %v1322
    %v1343 = vunpack.c.l.b16 %v1323
    %v1344 = vunpack.c.l.b16 %v1324
    %v1345 = vunpack.c.l.b16 %v1325
    %v1346 = vunpack.c.l.b16 %v1326
    %v1347 = vunpack.c.l.b16 %v1327
    %v1348 = vunpack.c.l.b16 %v1328
    %v1349 = vpack.c.b16 %v1342, %v1341
    %v1350 = vpack.c.b16 %v1344, %v1343
    %v1351 = vpack.c.b16 %v1346, %v1345
    %v1352 = vpack.c.b16 %v1348, %v1347
    %v1358 = vsel %vm427, %v1320, 0
    %1360 = vmatpush.bf16.msra.mxu0 0
    %1361 = vmatpush.bf16.msra.mxu0 0
    %1362 = vmatpush.bf16.msra.mxu0 0
    %1363 = vmatpush.bf16.msra.mxu0 0
    %1364 = vmatpush.bf16.msra.mxu0 %v1352
    %1365 = vmatpush.bf16.msra.mxu0 %v1351
    %1366 = vmatpush.bf16.msra.mxu0 %v1350
    %1367 = vmatpush.bf16.msra.mxu0 %v1349
    %1368 = vmatmul.bf16.gmra.mxu0 %v1358
    %v1369 = vpop.f32.mrf.mxu0
    %v1370 = vadd.f32 %v1331, %v1369
    %v1371 = vpop.f32.mrf.mxu0
    %1372 = vdwg.mxu0
    %v1373 = vmax.f32 %v1370, 0.0
    %v1374 = vpack.c.bf16 %v1373, %v1373
    %v1375 = vld [vmem:[#allocation12] sm:$0xf]
    %v1376 = vld [vmem:[#allocation12 + $0x4] sm:$0xf]
    %v1377 = vld [vmem:[#allocation12 + $0x8] sm:$0xf]
    %v1378 = vld [vmem:[#allocation12 + $0xc] sm:$0xf]
    %v1379 = vld [vmem:[#allocation12 + $0x10] sm:$0xf]
    %v1380 = vld [vmem:[#allocation12 + $0x14] sm:$0xf]
    %v1381 = vld [vmem:[#allocation12 + $0x18] sm:$0xf]
    %v1382 = vld [vmem:[#allocation12 + $0x1c] sm:$0xf]
    %v1383 = vld [vmem:[#allocation12 + $0x20] sm:$0xf]
    %v1384 = vld [vmem:[#allocation12 + $0x24] sm:$0xf]
    %v1385 = vld [vmem:[#allocation12 + $0x28] sm:$0xf]
    %v1386 = vld [vmem:[#allocation12 + $0x2c] sm:$0xf]
    %v1387 = vld [vmem:[#allocation12 + $0x30] sm:$0xf]
    %v1388 = vld [vmem:[#allocation12 + $0x34] sm:$0xf]
    %v1389 = vld [vmem:[#allocation12 + $0x38] sm:$0xf]
    %v1390 = vld [vmem:[#allocation12 + $0x3c] sm:$0xf]
    %v1391 = vld [vmem:[#allocation14] sm:$0x1]
    %v1393 = vperm.slane %v1391, 0
    %v1411 = vunpack.c.l.b16 %v1375
    %v1412 = vunpack.c.l.b16 %v1376
    %v1413 = vunpack.c.l.b16 %v1377
    %v1414 = vunpack.c.l.b16 %v1378
    %v1415 = vunpack.c.l.b16 %v1379
    %v1416 = vunpack.c.l.b16 %v1380
    %v1417 = vunpack.c.l.b16 %v1381
    %v1418 = vunpack.c.l.b16 %v1382
    %v1419 = vunpack.c.l.b16 %v1383
    %v1420 = vunpack.c.l.b16 %v1384
    %v1421 = vunpack.c.l.b16 %v1385
    %v1422 = vunpack.c.l.b16 %v1386
    %v1423 = vunpack.c.l.b16 %v1387
    %v1424 = vunpack.c.l.b16 %v1388
    %v1425 = vunpack.c.l.b16 %v1389
    %v1426 = vunpack.c.l.b16 %v1390
    %v1427 = vpack.c.b16 %v1412, %v1411
    %v1428 = vpack.c.b16 %v1414, %v1413
    %v1429 = vpack.c.b16 %v1416, %v1415
    %v1430 = vpack.c.b16 %v1418, %v1417
    %v1431 = vpack.c.b16 %v1420, %v1419
    %v1432 = vpack.c.b16 %v1422, %v1421
    %v1433 = vpack.c.b16 %v1424, %v1423
    %v1434 = vpack.c.b16 %v1426, %v1425
    %1443 = vmatpush.bf16.msra.mxu0 %v1434
    %1444 = vmatpush.bf16.msra.mxu0 %v1433
    %1445 = vmatpush.bf16.msra.mxu0 %v1432
    %1446 = vmatpush.bf16.msra.mxu0 %v1431
    %1447 = vmatpush.bf16.msra.mxu0 %v1430
    %1448 = vmatpush.bf16.msra.mxu0 %v1429
    %1449 = vmatpush.bf16.msra.mxu0 %v1428
    %1450 = vmatpush.bf16.msra.mxu0 %v1427
    %1451 = vmatmul.bf16.gmra.mxu0 %v1374
    %v1452 = vpop.f32.mrf.mxu0
    %v1453 = vadd.f32 %v1393, %v1452
    %v1454 = vpop.f32.mrf.mxu0
    %1455 = vdwg.mxu0
    %v1456 = vmax.f32 %v1453, 0.0
    %v1457 = vpack.c.bf16 %v1456, %v1456
    %v1458 = vld [vmem:[#allocation15] sm:$0xf]
    %v1459 = vld [vmem:[#allocation15 + $0x4] sm:$0xf]
    %v1460 = vld [vmem:[#allocation15 + $0x8] sm:$0xf]
    %v1461 = vld [vmem:[#allocation15 + $0xc] sm:$0xf]
    %v1462 = vld [vmem:[#allocation15 + $0x10] sm:$0xf]
    %v1463 = vld [vmem:[#allocation15 + $0x14] sm:$0xf]
    %v1464 = vld [vmem:[#allocation15 + $0x18] sm:$0xf]
    %v1465 = vld [vmem:[#allocation15 + $0x1c] sm:$0xf]
    %v1466 = vld [vmem:[%s10] sm:$0x1]
    %v1468 = vperm.slane %v1466, 0
    %v1478 = vunpack.c.l.b16 %v1458
    %v1479 = vunpack.c.l.b16 %v1459
    %v1480 = vunpack.c.l.b16 %v1460
    %v1481 = vunpack.c.l.b16 %v1461
    %v1482 = vunpack.c.l.b16 %v1462
    %v1483 = vunpack.c.l.b16 %v1463
    %v1484 = vunpack.c.l.b16 %v1464
    %v1485 = vunpack.c.l.b16 %v1465
    %v1486 = vpack.c.b16 %v1479, %v1478
    %v1487 = vpack.c.b16 %v1481, %v1480
    %v1488 = vpack.c.b16 %v1483, %v1482
    %v1489 = vpack.c.b16 %v1485, %v1484
    %v1495 = vsel %vm427, %v1457, 0
    %1497 = vmatpush.bf16.msra.mxu0 0
    %1498 = vmatpush.bf16.msra.mxu0 0
    %1499 = vmatpush.bf16.msra.mxu0 0
    %1500 = vmatpush.bf16.msra.mxu0 0
    %1501 = vmatpush.bf16.msra.mxu0 %v1489
    %1502 = vmatpush.bf16.msra.mxu0 %v1488
    %1503 = vmatpush.bf16.msra.mxu0 %v1487
    %1504 = vmatpush.bf16.msra.mxu0 %v1486
    %1505 = vmatmul.bf16.gmra.mxu0 %v1495
    %v1506 = vpop.f32.mrf.mxu0
    %v1507 = vadd.f32 %v1468, %v1506
    %v1508 = vpop.f32.mrf.mxu0
    %1509 = vdwg.mxu0
    %v1510 = vmax.f32 %v1507, 0.0
    %v1511 = vpack.c.bf16 %v1510, %v1510
    %v1512 = vld [vmem:[%s11] sm:$0xf]
    %v1513 = vld [vmem:[%s11 + $0x4] sm:$0xf]
    %v1514 = vld [vmem:[%s11 + $0x8] sm:$0xf]
    %v1515 = vld [vmem:[%s11 + $0xc] sm:$0xf]
    %v1516 = vld [vmem:[%s12] sm:$0x1]
    %v1518 = vperm.slane %v1516, 0
    %v1524 = vunpack.c.l.b16 %v1512
    %v1525 = vunpack.c.l.b16 %v1513
    %v1526 = vunpack.c.l.b16 %v1514
    %v1527 = vunpack.c.l.b16 %v1515
    %v1528 = vpack.c.b16 %v1525, %v1524
    %v1529 = vpack.c.b16 %v1527, %v1526
    %v1533 = vsel %vm733, %v1511, 0
    %1535 = vmatpush.bf16.msra.mxu0 0
    %1536 = vmatpush.bf16.msra.mxu0 0
    %1537 = vmatpush.bf16.msra.mxu0 0
    %1538 = vmatpush.bf16.msra.mxu0 0
    %1539 = vmatpush.bf16.msra.mxu0 0
    %1540 = vmatpush.bf16.msra.mxu0 0
    %1541 = vmatpush.bf16.msra.mxu0 %v1529
    %1542 = vmatpush.bf16.msra.mxu0 %v1528
    %1543 = vmatmul.bf16.gmra.mxu0 %v1533
    %v1544 = vpop.f32.mrf.mxu0
    %v1545 = vadd.f32 %v1518, %v1544
    %v1546 = vpop.f32.mrf.mxu0
    %1547 = vdwg.mxu0
    %1548 = vst [vmem:[#allocation17 + $0x10] sm:$0xff] %v1545
    %v1549 = vld [vmem:[#allocation6] sm:$0xff]
    %v1550 = vld [vmem:[#allocation6 + $0x8] sm:$0xf]
    %v1551 = vld [vmem:[#allocation6 + $0xc] sm:$0xff]
    %v1552 = vld [vmem:[#allocation6 + $0x14] sm:$0xf]
    %v1553 = vld [vmem:[#allocation6 + $0x18] sm:$0xff]
    %v1554 = vld [vmem:[#allocation6 + $0x20] sm:$0xf]
    %v1555 = vld [vmem:[#allocation6 + $0x24] sm:$0xff]
    %v1556 = vld [vmem:[#allocation6 + $0x2c] sm:$0xf]
    %v1557 = vld [vmem:[#allocation6 + $0x30] sm:$0xff]
    %v1558 = vld [vmem:[#allocation6 + $0x38] sm:$0xf]
    %v1559 = vld [vmem:[#allocation6 + $0x3c] sm:$0xff]
    %v1560 = vld [vmem:[#allocation6 + $0x44] sm:$0xf]
    %v1561 = vld [vmem:[#allocation6 + $0x48] sm:$0xff]
    %v1562 = vld [vmem:[#allocation6 + $0x50] sm:$0xf]
    %v1563 = vld [vmem:[#allocation6 + $0x54] sm:$0xff]
    %v1564 = vld [vmem:[#allocation6 + $0x5c] sm:$0xf]
    %v1581 = vunpack.c.l.b16 %v1549
    %v1582 = vunpack.c.h.b16 %v1549
    %v1583 = vunpack.c.l.b16 %v1550
    %v1584 = vunpack.c.l.b16 %v1551
    %v1585 = vunpack.c.h.b16 %v1551
    %v1586 = vunpack.c.l.b16 %v1552
    %v1587 = vunpack.c.l.b16 %v1553
    %v1588 = vunpack.c.h.b16 %v1553
    %v1589 = vunpack.c.l.b16 %v1554
    %v1590 = vunpack.c.l.b16 %v1555
    %v1591 = vunpack.c.h.b16 %v1555
    %v1592 = vunpack.c.l.b16 %v1556
    %v1593 = vunpack.c.l.b16 %v1557
    %v1594 = vunpack.c.h.b16 %v1557
    %v1595 = vunpack.c.l.b16 %v1558
    %v1596 = vunpack.c.l.b16 %v1559
    %v1597 = vunpack.c.h.b16 %v1559
    %v1598 = vunpack.c.l.b16 %v1560
    %v1599 = vunpack.c.l.b16 %v1561
    %v1600 = vunpack.c.h.b16 %v1561
    %v1601 = vunpack.c.l.b16 %v1562
    %v1602 = vunpack.c.l.b16 %v1563
    %v1603 = vunpack.c.h.b16 %v1563
    %v1604 = vunpack.c.l.b16 %v1564
    %v1605 = vpack.c.b16 %v1584, %v1581
    %v1606 = vpack.c.b16 %v1585, %v1582
    %v1607 = vpack.c.b16 %v1586, %v1583
    %v1608 = vpack.c.b16 %v1590, %v1587
    %v1609 = vpack.c.b16 %v1591, %v1588
    %v1610 = vpack.c.b16 %v1592, %v1589
    %v1611 = vpack.c.b16 %v1596, %v1593
    %v1612 = vpack.c.b16 %v1597, %v1594
    %v1613 = vpack.c.b16 %v1598, %v1595
    %v1614 = vpack.c.b16 %v1602, %v1599
    %v1615 = vpack.c.b16 %v1603, %v1600
    %v1616 = vpack.c.b16 %v1604, %v1601
    %1629 = vmatpush.bf16.msra.mxu0 0
    %1630 = vmatpush.bf16.msra.mxu0 0
    %1631 = vmatpush.bf16.msra.mxu0 0
    %1632 = vmatpush.bf16.msra.mxu0 0
    %1633 = vmatpush.bf16.msra.mxu0 %v1614
    %1634 = vmatpush.bf16.msra.mxu0 %v1611
    %1635 = vmatpush.bf16.msra.mxu0 %v1608
    %1636 = vmatpush.bf16.msra.mxu0 %v1605
    %1637 = vmatmul.bf16.gmra.mxu0 %v1358
    %v1638 = vpop.f32.mrf.mxu0
    %v1639 = vadd.f32 0.0, %v1638
    %v1640 = vpop.f32.mrf.mxu0
    %1641 = vdwg.mxu0
    %1642 = vmatpush.bf16.msra.mxu0 0
    %1643 = vmatpush.bf16.msra.mxu0 0
    %1644 = vmatpush.bf16.msra.mxu0 0
    %1645 = vmatpush.bf16.msra.mxu0 0
    %1646 = vmatpush.bf16.msra.mxu0 %v1615
    %1647 = vmatpush.bf16.msra.mxu0 %v1612
    %1648 = vmatpush.bf16.msra.mxu0 %v1609
    %1649 = vmatpush.bf16.msra.mxu0 %v1606
    %1650 = vmatmul.bf16.gmra.mxu0 %v1358
    %v1651 = vpop.f32.mrf.mxu0
    %v1652 = vadd.f32 0.0, %v1651
    %v1653 = vpop.f32.mrf.mxu0
    %1654 = vdwg.mxu0
    %1655 = vmatpush.bf16.msra.mxu0 0
    %1656 = vmatpush.bf16.msra.mxu0 0
    %1657 = vmatpush.bf16.msra.mxu0 0
    %1658 = vmatpush.bf16.msra.mxu0 0
    %1659 = vmatpush.bf16.msra.mxu0 %v1616
    %1660 = vmatpush.bf16.msra.mxu0 %v1613
    %1661 = vmatpush.bf16.msra.mxu0 %v1610
    %1662 = vmatpush.bf16.msra.mxu0 %v1607
    %1663 = vmatmul.bf16.gmra.mxu0 %v1358
    %v1664 = vpop.f32.mrf.mxu0
    %v1665 = vadd.f32 0.0, %v1664
    %v1666 = vpop.f32.mrf.mxu0
    %1667 = vdwg.mxu0
    %v1668 = vld [vmem:[#allocation2 + $0x48] sm:$0xff]
    %v1669 = vld [vmem:[#allocation2 + $0x50] sm:$0xff]
    %v1670 = vld [vmem:[#allocation2 + $0x58] sm:$0xff]
    %v1671 = vadd.f32 %v1668, %v1639
    %v1672 = vxor.u32 %v1671, 2147483648
    %v1673 = vmul.f32 %v1672, 1.442695
    %v1674 = vpow.pop %v1673
    %v1675 = vadd.f32 %v1674, 1.0
    %v1676 = vrcp.pop %v1675
    %v1677 = vmul.f32 %v1675, %v1676
    %v1678 = vsub.f32 1.0, %v1677
    %v1679 = vmul.f32 %v1676, %v1678
    %v1680 = vadd.f32 %v1676, %v1679
    %vm1681 = vweird.f32 %v1675
    %vm1682 = vweird.f32 %v1676
    %vm1683 = vmor %vm1681, %vm1682
    %v1684 = vsel %vm1683, %v1676, %v1680
    %v1685 = vand.u32 2147483647, %v1675
    %vm1686 = vcmp.eq.f32.partialorder %v1685, 8.507059e+37
    %v1687 = vand.u32 %v1675, 2147483648
    %v1688 = vor.u32 1.1754944e-38, %v1687
    %v1689 = vsel %vm1686, %v1688, %v1684
    %v1690 = vmul.f32 1.0, %v1689
    %v1691 = vadd.f32 %v1669, %v1652
    %v1692 = vxor.u32 %v1691, 2147483648
    %v1693 = vmul.f32 %v1692, 1.442695
    %v1694 = vpow.pop %v1693
    %v1695 = vadd.f32 %v1694, 1.0
    %v1696 = vrcp.pop %v1695
    %v1697 = vmul.f32 %v1695, %v1696
    %v1698 = vsub.f32 1.0, %v1697
    %v1699 = vmul.f32 %v1696, %v1698
    %v1700 = vadd.f32 %v1696, %v1699
    %vm1701 = vweird.f32 %v1695
    %vm1702 = vweird.f32 %v1696
    %vm1703 = vmor %vm1701, %vm1702
    %v1704 = vsel %vm1703, %v1696, %v1700
    %v1705 = vand.u32 2147483647, %v1695
    %vm1706 = vcmp.eq.f32.partialorder %v1705, 8.507059e+37
    %v1707 = vand.u32 %v1695, 2147483648
    %v1708 = vor.u32 1.1754944e-38, %v1707
    %v1709 = vsel %vm1706, %v1708, %v1704
    %v1710 = vmul.f32 1.0, %v1709
    %v1711 = vadd.f32 %v1665, %v345
    %v1712 = vmul.f32 %v1690, %v1711
    %v1713 = vadd.f32 %v1670, %v1712
    %v1714 = vtanh.pop %v1713
    %v1715 = vsub.f32 1.0, %v1710
    %v1716 = vmul.f32 %v1715, %v1714
    %v1717 = vmul.f32 %v1710, %v1319
    %v1718 = vadd.f32 %v1716, %v1717
    %v1719 = vpack.c.bf16 %v1718, %v1718
    %v1720 = vld [vmem:[%s5] sm:$0xf]
    %v1721 = vld [vmem:[%s5 + $0x4] sm:$0xf]
    %v1722 = vld [vmem:[%s5 + $0x8] sm:$0xf]
    %v1723 = vld [vmem:[%s5 + $0xc] sm:$0xf]
    %v1724 = vld [vmem:[%s5 + $0x10] sm:$0xf]
    %v1725 = vld [vmem:[%s5 + $0x14] sm:$0xf]
    %v1726 = vld [vmem:[%s5 + $0x18] sm:$0xf]
    %v1727 = vld [vmem:[%s5 + $0x1c] sm:$0xf]
    %v1728 = vld [vmem:[#allocation11] sm:$0x1]
    %v1730 = vperm.slane %v1728, 0
    %v1740 = vunpack.c.l.b16 %v1720
    %v1741 = vunpack.c.l.b16 %v1721
    %v1742 = vunpack.c.l.b16 %v1722
    %v1743 = vunpack.c.l.b16 %v1723
    %v1744 = vunpack.c.l.b16 %v1724
    %v1745 = vunpack.c.l.b16 %v1725
    %v1746 = vunpack.c.l.b16 %v1726
    %v1747 = vunpack.c.l.b16 %v1727
    %v1748 = vpack.c.b16 %v1741, %v1740
    %v1749 = vpack.c.b16 %v1743, %v1742
    %v1750 = vpack.c.b16 %v1745, %v1744
    %v1751 = vpack.c.b16 %v1747, %v1746
    %v1757 = vsel %vm427, %v1719, 0
    %1759 = vmatpush.bf16.msra.mxu0 0
    %1760 = vmatpush.bf16.msra.mxu0 0
    %1761 = vmatpush.bf16.msra.mxu0 0
    %1762 = vmatpush.bf16.msra.mxu0 0
    %1763 = vmatpush.bf16.msra.mxu0 %v1751
    %1764 = vmatpush.bf16.msra.mxu0 %v1750
    %1765 = vmatpush.bf16.msra.mxu0 %v1749
    %1766 = vmatpush.bf16.msra.mxu0 %v1748
    %1767 = vmatmul.bf16.gmra.mxu0 %v1757
    %v1768 = vpop.f32.mrf.mxu0
    %v1769 = vadd.f32 %v1730, %v1768
    %v1770 = vpop.f32.mrf.mxu0
    %1771 = vdwg.mxu0
    %v1772 = vmax.f32 %v1769, 0.0
    %v1773 = vpack.c.bf16 %v1772, %v1772
    %v1774 = vld [vmem:[#allocation12] sm:$0xf]
    %v1775 = vld [vmem:[#allocation12 + $0x4] sm:$0xf]
    %v1776 = vld [vmem:[#allocation12 + $0x8] sm:$0xf]
    %v1777 = vld [vmem:[#allocation12 + $0xc] sm:$0xf]
    %v1778 = vld [vmem:[#allocation12 + $0x10] sm:$0xf]
    %v1779 = vld [vmem:[#allocation12 + $0x14] sm:$0xf]
    %v1780 = vld [vmem:[#allocation12 + $0x18] sm:$0xf]
    %v1781 = vld [vmem:[#allocation12 + $0x1c] sm:$0xf]
    %v1782 = vld [vmem:[#allocation12 + $0x20] sm:$0xf]
    %v1783 = vld [vmem:[#allocation12 + $0x24] sm:$0xf]
    %v1784 = vld [vmem:[#allocation12 + $0x28] sm:$0xf]
    %v1785 = vld [vmem:[#allocation12 + $0x2c] sm:$0xf]
    %v1786 = vld [vmem:[#allocation12 + $0x30] sm:$0xf]
    %v1787 = vld [vmem:[#allocation12 + $0x34] sm:$0xf]
    %v1788 = vld [vmem:[#allocation12 + $0x38] sm:$0xf]
    %v1789 = vld [vmem:[#allocation12 + $0x3c] sm:$0xf]
    %v1790 = vld [vmem:[#allocation14] sm:$0x1]
    %v1792 = vperm.slane %v1790, 0
    %v1810 = vunpack.c.l.b16 %v1774
    %v1811 = vunpack.c.l.b16 %v1775
    %v1812 = vunpack.c.l.b16 %v1776
    %v1813 = vunpack.c.l.b16 %v1777
    %v1814 = vunpack.c.l.b16 %v1778
    %v1815 = vunpack.c.l.b16 %v1779
    %v1816 = vunpack.c.l.b16 %v1780
    %v1817 = vunpack.c.l.b16 %v1781
    %v1818 = vunpack.c.l.b16 %v1782
    %v1819 = vunpack.c.l.b16 %v1783
    %v1820 = vunpack.c.l.b16 %v1784
    %v1821 = vunpack.c.l.b16 %v1785
    %v1822 = vunpack.c.l.b16 %v1786
    %v1823 = vunpack.c.l.b16 %v1787
    %v1824 = vunpack.c.l.b16 %v1788
    %v1825 = vunpack.c.l.b16 %v1789
    %v1826 = vpack.c.b16 %v1811, %v1810
    %v1827 = vpack.c.b16 %v1813, %v1812
    %v1828 = vpack.c.b16 %v1815, %v1814
    %v1829 = vpack.c.b16 %v1817, %v1816
    %v1830 = vpack.c.b16 %v1819, %v1818
    %v1831 = vpack.c.b16 %v1821, %v1820
    %v1832 = vpack.c.b16 %v1823, %v1822
    %v1833 = vpack.c.b16 %v1825, %v1824
    %1842 = vmatpush.bf16.msra.mxu0 %v1833
    %1843 = vmatpush.bf16.msra.mxu0 %v1832
    %1844 = vmatpush.bf16.msra.mxu0 %v1831
    %1845 = vmatpush.bf16.msra.mxu0 %v1830
    %1846 = vmatpush.bf16.msra.mxu0 %v1829
    %1847 = vmatpush.bf16.msra.mxu0 %v1828
    %1848 = vmatpush.bf16.msra.mxu0 %v1827
    %1849 = vmatpush.bf16.msra.mxu0 %v1826
    %1850 = vmatmul.bf16.gmra.mxu0 %v1773
    %v1851 = vpop.f32.mrf.mxu0
    %v1852 = vadd.f32 %v1792, %v1851
    %v1853 = vpop.f32.mrf.mxu0
    %1854 = vdwg.mxu0
    %v1855 = vmax.f32 %v1852, 0.0
    %v1856 = vpack.c.bf16 %v1855, %v1855
    %v1857 = vld [vmem:[#allocation15] sm:$0xf]
    %v1858 = vld [vmem:[#allocation15 + $0x4] sm:$0xf]
    %v1859 = vld [vmem:[#allocation15 + $0x8] sm:$0xf]
    %v1860 = vld [vmem:[#allocation15 + $0xc] sm:$0xf]
    %v1861 = vld [vmem:[#allocation15 + $0x10] sm:$0xf]
    %v1862 = vld [vmem:[#allocation15 + $0x14] sm:$0xf]
    %v1863 = vld [vmem:[#allocation15 + $0x18] sm:$0xf]
    %v1864 = vld [vmem:[#allocation15 + $0x1c] sm:$0xf]
    %v1865 = vld [vmem:[%s10] sm:$0x1]
    %v1867 = vperm.slane %v1865, 0
    %v1877 = vunpack.c.l.b16 %v1857
    %v1878 = vunpack.c.l.b16 %v1858
    %v1879 = vunpack.c.l.b16 %v1859
    %v1880 = vunpack.c.l.b16 %v1860
    %v1881 = vunpack.c.l.b16 %v1861
    %v1882 = vunpack.c.l.b16 %v1862
    %v1883 = vunpack.c.l.b16 %v1863
    %v1884 = vunpack.c.l.b16 %v1864
    %v1885 = vpack.c.b16 %v1878, %v1877
    %v1886 = vpack.c.b16 %v1880, %v1879
    %v1887 = vpack.c.b16 %v1882, %v1881
    %v1888 = vpack.c.b16 %v1884, %v1883
    %v1894 = vsel %vm427, %v1856, 0
    %1896 = vmatpush.bf16.msra.mxu0 0
    %1897 = vmatpush.bf16.msra.mxu0 0
    %1898 = vmatpush.bf16.msra.mxu0 0
    %1899 = vmatpush.bf16.msra.mxu0 0
    %1900 = vmatpush.bf16.msra.mxu0 %v1888
    %1901 = vmatpush.bf16.msra.mxu0 %v1887
    %1902 = vmatpush.bf16.msra.mxu0 %v1886
    %1903 = vmatpush.bf16.msra.mxu0 %v1885
    %1904 = vmatmul.bf16.gmra.mxu0 %v1894
    %v1905 = vpop.f32.mrf.mxu0
    %v1906 = vadd.f32 %v1867, %v1905
    %v1907 = vpop.f32.mrf.mxu0
    %1908 = vdwg.mxu0
    %v1909 = vmax.f32 %v1906, 0.0
    %v1910 = vpack.c.bf16 %v1909, %v1909
    %v1911 = vld [vmem:[%s11] sm:$0xf]
    %v1912 = vld [vmem:[%s11 + $0x4] sm:$0xf]
    %v1913 = vld [vmem:[%s11 + $0x8] sm:$0xf]
    %v1914 = vld [vmem:[%s11 + $0xc] sm:$0xf]
    %v1915 = vld [vmem:[%s12] sm:$0x1]
    %v1917 = vperm.slane %v1915, 0
    %v1923 = vunpack.c.l.b16 %v1911
    %v1924 = vunpack.c.l.b16 %v1912
    %v1925 = vunpack.c.l.b16 %v1913
    %v1926 = vunpack.c.l.b16 %v1914
    %v1927 = vpack.c.b16 %v1924, %v1923
    %v1928 = vpack.c.b16 %v1926, %v1925
    %v1932 = vsel %vm733, %v1910, 0
    %1934 = vmatpush.bf16.msra.mxu0 0
    %1935 = vmatpush.bf16.msra.mxu0 0
    %1936 = vmatpush.bf16.msra.mxu0 0
    %1937 = vmatpush.bf16.msra.mxu0 0
    %1938 = vmatpush.bf16.msra.mxu0 0
    %1939 = vmatpush.bf16.msra.mxu0 0
    %1940 = vmatpush.bf16.msra.mxu0 %v1928
    %1941 = vmatpush.bf16.msra.mxu0 %v1927
    %1942 = vmatmul.bf16.gmra.mxu0 %v1932
    %v1943 = vpop.f32.mrf.mxu0
    %v1944 = vadd.f32 %v1917, %v1943
    %v1945 = vpop.f32.mrf.mxu0
    %1946 = vdwg.mxu0
    %1947 = vst [vmem:[#allocation17 + $0x18] sm:$0xff] %v1944
    %v1948 = vld [vmem:[#allocation6] sm:$0xff]
    %v1949 = vld [vmem:[#allocation6 + $0x8] sm:$0xf]
    %v1950 = vld [vmem:[#allocation6 + $0xc] sm:$0xff]
    %v1951 = vld [vmem:[#allocation6 + $0x14] sm:$0xf]
    %v1952 = vld [vmem:[#allocation6 + $0x18] sm:$0xff]
    %v1953 = vld [vmem:[#allocation6 + $0x20] sm:$0xf]
    %v1954 = vld [vmem:[#allocation6 + $0x24] sm:$0xff]
    %v1955 = vld [vmem:[#allocation6 + $0x2c] sm:$0xf]
    %v1956 = vld [vmem:[#allocation6 + $0x30] sm:$0xff]
    %v1957 = vld [vmem:[#allocation6 + $0x38] sm:$0xf]
    %v1958 = vld [vmem:[#allocation6 + $0x3c] sm:$0xff]
    %v1959 = vld [vmem:[#allocation6 + $0x44] sm:$0xf]
    %v1960 = vld [vmem:[#allocation6 + $0x48] sm:$0xff]
    %v1961 = vld [vmem:[#allocation6 + $0x50] sm:$0xf]
    %v1962 = vld [vmem:[#allocation6 + $0x54] sm:$0xff]
    %v1963 = vld [vmem:[#allocation6 + $0x5c] sm:$0xf]
    %v1980 = vunpack.c.l.b16 %v1948
    %v1981 = vunpack.c.h.b16 %v1948
    %v1982 = vunpack.c.l.b16 %v1949
    %v1983 = vunpack.c.l.b16 %v1950
    %v1984 = vunpack.c.h.b16 %v1950
    %v1985 = vunpack.c.l.b16 %v1951
    %v1986 = vunpack.c.l.b16 %v1952
    %v1987 = vunpack.c.h.b16 %v1952
    %v1988 = vunpack.c.l.b16 %v1953
    %v1989 = vunpack.c.l.b16 %v1954
    %v1990 = vunpack.c.h.b16 %v1954
    %v1991 = vunpack.c.l.b16 %v1955
    %v1992 = vunpack.c.l.b16 %v1956
    %v1993 = vunpack.c.h.b16 %v1956
    %v1994 = vunpack.c.l.b16 %v1957
    %v1995 = vunpack.c.l.b16 %v1958
    %v1996 = vunpack.c.h.b16 %v1958
    %v1997 = vunpack.c.l.b16 %v1959
    %v1998 = vunpack.c.l.b16 %v1960
    %v1999 = vunpack.c.h.b16 %v1960
    %v2000 = vunpack.c.l.b16 %v1961
    %v2001 = vunpack.c.l.b16 %v1962
    %v2002 = vunpack.c.h.b16 %v1962
    %v2003 = vunpack.c.l.b16 %v1963
    %v2004 = vpack.c.b16 %v1983, %v1980
    %v2005 = vpack.c.b16 %v1984, %v1981
    %v2006 = vpack.c.b16 %v1985, %v1982
    %v2007 = vpack.c.b16 %v1989, %v1986
    %v2008 = vpack.c.b16 %v1990, %v1987
    %v2009 = vpack.c.b16 %v1991, %v1988
    %v2010 = vpack.c.b16 %v1995, %v1992
    %v2011 = vpack.c.b16 %v1996, %v1993
    %v2012 = vpack.c.b16 %v1997, %v1994
    %v2013 = vpack.c.b16 %v2001, %v1998
    %v2014 = vpack.c.b16 %v2002, %v1999
    %v2015 = vpack.c.b16 %v2003, %v2000
    %2028 = vmatpush.bf16.msra.mxu0 0
    %2029 = vmatpush.bf16.msra.mxu0 0
    %2030 = vmatpush.bf16.msra.mxu0 0
    %2031 = vmatpush.bf16.msra.mxu0 0
    %2032 = vmatpush.bf16.msra.mxu0 %v2013
    %2033 = vmatpush.bf16.msra.mxu0 %v2010
    %2034 = vmatpush.bf16.msra.mxu0 %v2007
    %2035 = vmatpush.bf16.msra.mxu0 %v2004
    %2036 = vmatmul.bf16.gmra.mxu0 %v1757
    %v2037 = vpop.f32.mrf.mxu0
    %v2038 = vadd.f32 0.0, %v2037
    %v2039 = vpop.f32.mrf.mxu0
    %2040 = vdwg.mxu0
    %2041 = vmatpush.bf16.msra.mxu0 0
    %2042 = vmatpush.bf16.msra.mxu0 0
    %2043 = vmatpush.bf16.msra.mxu0 0
    %2044 = vmatpush.bf16.msra.mxu0 0
    %2045 = vmatpush.bf16.msra.mxu0 %v2014
    %2046 = vmatpush.bf16.msra.mxu0 %v2011
    %2047 = vmatpush.bf16.msra.mxu0 %v2008
    %2048 = vmatpush.bf16.msra.mxu0 %v2005
    %2049 = vmatmul.bf16.gmra.mxu0 %v1757
    %v2050 = vpop.f32.mrf.mxu0
    %v2051 = vadd.f32 0.0, %v2050
    %v2052 = vpop.f32.mrf.mxu0
    %2053 = vdwg.mxu0
    %2054 = vmatpush.bf16.msra.mxu0 0
    %2055 = vmatpush.bf16.msra.mxu0 0
    %2056 = vmatpush.bf16.msra.mxu0 0
    %2057 = vmatpush.bf16.msra.mxu0 0
    %2058 = vmatpush.bf16.msra.mxu0 %v2015
    %2059 = vmatpush.bf16.msra.mxu0 %v2012
    %2060 = vmatpush.bf16.msra.mxu0 %v2009
    %2061 = vmatpush.bf16.msra.mxu0 %v2006
    %2062 = vmatmul.bf16.gmra.mxu0 %v1757
    %v2063 = vpop.f32.mrf.mxu0
    %v2064 = vadd.f32 0.0, %v2063
    %v2065 = vpop.f32.mrf.mxu0
    %2066 = vdwg.mxu0
    %v2067 = vld [vmem:[#allocation2 + $0x60] sm:$0xff]
    %v2068 = vld [vmem:[#allocation2 + $0x68] sm:$0xff]
    %v2069 = vld [vmem:[#allocation2 + $0x70] sm:$0xff]
    %v2070 = vadd.f32 %v2067, %v2038
    %v2071 = vxor.u32 %v2070, 2147483648
    %v2072 = vmul.f32 %v2071, 1.442695
    %v2073 = vpow.pop %v2072
    %v2074 = vadd.f32 %v2073, 1.0
    %v2075 = vrcp.pop %v2074
    %v2076 = vmul.f32 %v2074, %v2075
    %v2077 = vsub.f32 1.0, %v2076
    %v2078 = vmul.f32 %v2075, %v2077
    %v2079 = vadd.f32 %v2075, %v2078
    %vm2080 = vweird.f32 %v2074
    %vm2081 = vweird.f32 %v2075
    %vm2082 = vmor %vm2080, %vm2081
    %v2083 = vsel %vm2082, %v2075, %v2079
    %v2084 = vand.u32 2147483647, %v2074
    %vm2085 = vcmp.eq.f32.partialorder %v2084, 8.507059e+37
    %v2086 = vand.u32 %v2074, 2147483648
    %v2087 = vor.u32 1.1754944e-38, %v2086
    %v2088 = vsel %vm2085, %v2087, %v2083
    %v2089 = vmul.f32 1.0, %v2088
    %v2090 = vadd.f32 %v2068, %v2051
    %v2091 = vxor.u32 %v2090, 2147483648
    %v2092 = vmul.f32 %v2091, 1.442695
    %v2093 = vpow.pop %v2092
    %v2094 = vadd.f32 %v2093, 1.0
    %v2095 = vrcp.pop %v2094
    %v2096 = vmul.f32 %v2094, %v2095
    %v2097 = vsub.f32 1.0, %v2096
    %v2098 = vmul.f32 %v2095, %v2097
    %v2099 = vadd.f32 %v2095, %v2098
    %vm2100 = vweird.f32 %v2094
    %vm2101 = vweird.f32 %v2095
    %vm2102 = vmor %vm2100, %vm2101
    %v2103 = vsel %vm2102, %v2095, %v2099
    %v2104 = vand.u32 2147483647, %v2094
    %vm2105 = vcmp.eq.f32.partialorder %v2104, 8.507059e+37
    %v2106 = vand.u32 %v2094, 2147483648
    %v2107 = vor.u32 1.1754944e-38, %v2106
    %v2108 = vsel %vm2105, %v2107, %v2103
    %v2109 = vmul.f32 1.0, %v2108
    %v2110 = vadd.f32 %v2064, %v345
    %v2111 = vmul.f32 %v2089, %v2110
    %v2112 = vadd.f32 %v2069, %v2111
    %v2113 = vtanh.pop %v2112
    %v2114 = vsub.f32 1.0, %v2109
    %v2115 = vmul.f32 %v2114, %v2113
    %v2116 = vmul.f32 %v2109, %v1718
    %v2117 = vadd.f32 %v2115, %v2116
    %v2118 = vpack.c.bf16 %v2117, %v2117
    %v2119 = vld [vmem:[%s5] sm:$0xf]
    %v2120 = vld [vmem:[%s5 + $0x4] sm:$0xf]
    %v2121 = vld [vmem:[%s5 + $0x8] sm:$0xf]
    %v2122 = vld [vmem:[%s5 + $0xc] sm:$0xf]
    %v2123 = vld [vmem:[%s5 + $0x10] sm:$0xf]
    %v2124 = vld [vmem:[%s5 + $0x14] sm:$0xf]
    %v2125 = vld [vmem:[%s5 + $0x18] sm:$0xf]
    %v2126 = vld [vmem:[%s5 + $0x1c] sm:$0xf]
    %v2127 = vld [vmem:[#allocation11] sm:$0x1]
    %v2129 = vperm.slane %v2127, 0
    %v2139 = vunpack.c.l.b16 %v2119
    %v2140 = vunpack.c.l.b16 %v2120
    %v2141 = vunpack.c.l.b16 %v2121
    %v2142 = vunpack.c.l.b16 %v2122
    %v2143 = vunpack.c.l.b16 %v2123
    %v2144 = vunpack.c.l.b16 %v2124
    %v2145 = vunpack.c.l.b16 %v2125
    %v2146 = vunpack.c.l.b16 %v2126
    %v2147 = vpack.c.b16 %v2140, %v2139
    %v2148 = vpack.c.b16 %v2142, %v2141
    %v2149 = vpack.c.b16 %v2144, %v2143
    %v2150 = vpack.c.b16 %v2146, %v2145
    %v2156 = vsel %vm427, %v2118, 0
    %2158 = vmatpush.bf16.msra.mxu0 0
    %2159 = vmatpush.bf16.msra.mxu0 0
    %2160 = vmatpush.bf16.msra.mxu0 0
    %2161 = vmatpush.bf16.msra.mxu0 0
    %2162 = vmatpush.bf16.msra.mxu0 %v2150
    %2163 = vmatpush.bf16.msra.mxu0 %v2149
    %2164 = vmatpush.bf16.msra.mxu0 %v2148
    %2165 = vmatpush.bf16.msra.mxu0 %v2147
    %2166 = vmatmul.bf16.gmra.mxu0 %v2156
    %v2167 = vpop.f32.mrf.mxu0
    %v2168 = vadd.f32 %v2129, %v2167
    %v2169 = vpop.f32.mrf.mxu0
    %2170 = vdwg.mxu0
    %v2171 = vmax.f32 %v2168, 0.0
    %v2172 = vpack.c.bf16 %v2171, %v2171
    %v2173 = vld [vmem:[#allocation12] sm:$0xf]
    %v2174 = vld [vmem:[#allocation12 + $0x4] sm:$0xf]
    %v2175 = vld [vmem:[#allocation12 + $0x8] sm:$0xf]
    %v2176 = vld [vmem:[#allocation12 + $0xc] sm:$0xf]
    %v2177 = vld [vmem:[#allocation12 + $0x10] sm:$0xf]
    %v2178 = vld [vmem:[#allocation12 + $0x14] sm:$0xf]
    %v2179 = vld [vmem:[#allocation12 + $0x18] sm:$0xf]
    %v2180 = vld [vmem:[#allocation12 + $0x1c] sm:$0xf]
    %v2181 = vld [vmem:[#allocation12 + $0x20] sm:$0xf]
    %v2182 = vld [vmem:[#allocation12 + $0x24] sm:$0xf]
    %v2183 = vld [vmem:[#allocation12 + $0x28] sm:$0xf]
    %v2184 = vld [vmem:[#allocation12 + $0x2c] sm:$0xf]
    %v2185 = vld [vmem:[#allocation12 + $0x30] sm:$0xf]
    %v2186 = vld [vmem:[#allocation12 + $0x34] sm:$0xf]
    %v2187 = vld [vmem:[#allocation12 + $0x38] sm:$0xf]
    %v2188 = vld [vmem:[#allocation12 + $0x3c] sm:$0xf]
    %v2189 = vld [vmem:[#allocation14] sm:$0x1]
    %v2191 = vperm.slane %v2189, 0
    %v2209 = vunpack.c.l.b16 %v2173
    %v2210 = vunpack.c.l.b16 %v2174
    %v2211 = vunpack.c.l.b16 %v2175
    %v2212 = vunpack.c.l.b16 %v2176
    %v2213 = vunpack.c.l.b16 %v2177
    %v2214 = vunpack.c.l.b16 %v2178
    %v2215 = vunpack.c.l.b16 %v2179
    %v2216 = vunpack.c.l.b16 %v2180
    %v2217 = vunpack.c.l.b16 %v2181
    %v2218 = vunpack.c.l.b16 %v2182
    %v2219 = vunpack.c.l.b16 %v2183
    %v2220 = vunpack.c.l.b16 %v2184
    %v2221 = vunpack.c.l.b16 %v2185
    %v2222 = vunpack.c.l.b16 %v2186
    %v2223 = vunpack.c.l.b16 %v2187
    %v2224 = vunpack.c.l.b16 %v2188
    %v2225 = vpack.c.b16 %v2210, %v2209
    %v2226 = vpack.c.b16 %v2212, %v2211
    %v2227 = vpack.c.b16 %v2214, %v2213
    %v2228 = vpack.c.b16 %v2216, %v2215
    %v2229 = vpack.c.b16 %v2218, %v2217
    %v2230 = vpack.c.b16 %v2220, %v2219
    %v2231 = vpack.c.b16 %v2222, %v2221
    %v2232 = vpack.c.b16 %v2224, %v2223
    %2241 = vmatpush.bf16.msra.mxu0 %v2232
    %2242 = vmatpush.bf16.msra.mxu0 %v2231
    %2243 = vmatpush.bf16.msra.mxu0 %v2230
    %2244 = vmatpush.bf16.msra.mxu0 %v2229
    %2245 = vmatpush.bf16.msra.mxu0 %v2228
    %2246 = vmatpush.bf16.msra.mxu0 %v2227
    %2247 = vmatpush.bf16.msra.mxu0 %v2226
    %2248 = vmatpush.bf16.msra.mxu0 %v2225
    %2249 = vmatmul.bf16.gmra.mxu0 %v2172
    %v2250 = vpop.f32.mrf.mxu0
    %v2251 = vadd.f32 %v2191, %v2250
    %v2252 = vpop.f32.mrf.mxu0
    %2253 = vdwg.mxu0
    %v2254 = vmax.f32 %v2251, 0.0
    %v2255 = vpack.c.bf16 %v2254, %v2254
    %v2256 = vld [vmem:[#allocation15] sm:$0xf]
    %v2257 = vld [vmem:[#allocation15 + $0x4] sm:$0xf]
    %v2258 = vld [vmem:[#allocation15 + $0x8] sm:$0xf]
    %v2259 = vld [vmem:[#allocation15 + $0xc] sm:$0xf]
    %v2260 = vld [vmem:[#allocation15 + $0x10] sm:$0xf]
    %v2261 = vld [vmem:[#allocation15 + $0x14] sm:$0xf]
    %v2262 = vld [vmem:[#allocation15 + $0x18] sm:$0xf]
    %v2263 = vld [vmem:[#allocation15 + $0x1c] sm:$0xf]
    %v2264 = vld [vmem:[%s10] sm:$0x1]
    %v2266 = vperm.slane %v2264, 0
    %v2276 = vunpack.c.l.b16 %v2256
    %v2277 = vunpack.c.l.b16 %v2257
    %v2278 = vunpack.c.l.b16 %v2258
    %v2279 = vunpack.c.l.b16 %v2259
    %v2280 = vunpack.c.l.b16 %v2260
    %v2281 = vunpack.c.l.b16 %v2261
    %v2282 = vunpack.c.l.b16 %v2262
    %v2283 = vunpack.c.l.b16 %v2263
    %v2284 = vpack.c.b16 %v2277, %v2276
    %v2285 = vpack.c.b16 %v2279, %v2278
    %v2286 = vpack.c.b16 %v2281, %v2280
    %v2287 = vpack.c.b16 %v2283, %v2282
    %v2293 = vsel %vm427, %v2255, 0
    %2295 = vmatpush.bf16.msra.mxu0 0
    %2296 = vmatpush.bf16.msra.mxu0 0
    %2297 = vmatpush.bf16.msra.mxu0 0
    %2298 = vmatpush.bf16.msra.mxu0 0
    %2299 = vmatpush.bf16.msra.mxu0 %v2287
    %2300 = vmatpush.bf16.msra.mxu0 %v2286
    %2301 = vmatpush.bf16.msra.mxu0 %v2285
    %2302 = vmatpush.bf16.msra.mxu0 %v2284
    %2303 = vmatmul.bf16.gmra.mxu0 %v2293
    %v2304 = vpop.f32.mrf.mxu0
    %v2305 = vadd.f32 %v2266, %v2304
    %v2306 = vpop.f32.mrf.mxu0
    %2307 = vdwg.mxu0
    %v2308 = vmax.f32 %v2305, 0.0
    %v2309 = vpack.c.bf16 %v2308, %v2308
    %v2310 = vld [vmem:[%s11] sm:$0xf]
    %v2311 = vld [vmem:[%s11 + $0x4] sm:$0xf]
    %v2312 = vld [vmem:[%s11 + $0x8] sm:$0xf]
    %v2313 = vld [vmem:[%s11 + $0xc] sm:$0xf]
    %v2314 = vld [vmem:[%s12] sm:$0x1]
    %v2316 = vperm.slane %v2314, 0
    %v2322 = vunpack.c.l.b16 %v2310
    %v2323 = vunpack.c.l.b16 %v2311
    %v2324 = vunpack.c.l.b16 %v2312
    %v2325 = vunpack.c.l.b16 %v2313
    %v2326 = vpack.c.b16 %v2323, %v2322
    %v2327 = vpack.c.b16 %v2325, %v2324
    %v2331 = vsel %vm733, %v2309, 0
    %2333 = vmatpush.bf16.msra.mxu0 0
    %2334 = vmatpush.bf16.msra.mxu0 0
    %2335 = vmatpush.bf16.msra.mxu0 0
    %2336 = vmatpush.bf16.msra.mxu0 0
    %2337 = vmatpush.bf16.msra.mxu0 0
    %2338 = vmatpush.bf16.msra.mxu0 0
    %2339 = vmatpush.bf16.msra.mxu0 %v2327
    %2340 = vmatpush.bf16.msra.mxu0 %v2326
    %2341 = vmatmul.bf16.gmra.mxu0 %v2331
    %v2342 = vpop.f32.mrf.mxu0
    %v2343 = vadd.f32 %v2316, %v2342
    %v2344 = vpop.f32.mrf.mxu0
    %2345 = vdwg.mxu0
    %2346 = vst [vmem:[#allocation17 + $0x20] sm:$0xff] %v2343
    %v2347 = vld [vmem:[#allocation6] sm:$0xff]
    %v2348 = vld [vmem:[#allocation6 + $0x8] sm:$0xf]
    %v2349 = vld [vmem:[#allocation6 + $0xc] sm:$0xff]
    %v2350 = vld [vmem:[#allocation6 + $0x14] sm:$0xf]
    %v2351 = vld [vmem:[#allocation6 + $0x18] sm:$0xff]
    %v2352 = vld [vmem:[#allocation6 + $0x20] sm:$0xf]
    %v2353 = vld [vmem:[#allocation6 + $0x24] sm:$0xff]
    %v2354 = vld [vmem:[#allocation6 + $0x2c] sm:$0xf]
    %v2355 = vld [vmem:[#allocation6 + $0x30] sm:$0xff]
    %v2356 = vld [vmem:[#allocation6 + $0x38] sm:$0xf]
    %v2357 = vld [vmem:[#allocation6 + $0x3c] sm:$0xff]
    %v2358 = vld [vmem:[#allocation6 + $0x44] sm:$0xf]
    %v2359 = vld [vmem:[#allocation6 + $0x48] sm:$0xff]
    %v2360 = vld [vmem:[#allocation6 + $0x50] sm:$0xf]
    %v2361 = vld [vmem:[#allocation6 + $0x54] sm:$0xff]
    %v2362 = vld [vmem:[#allocation6 + $0x5c] sm:$0xf]
    %v2379 = vunpack.c.l.b16 %v2347
    %v2380 = vunpack.c.h.b16 %v2347
    %v2381 = vunpack.c.l.b16 %v2348
    %v2382 = vunpack.c.l.b16 %v2349
    %v2383 = vunpack.c.h.b16 %v2349
    %v2384 = vunpack.c.l.b16 %v2350
    %v2385 = vunpack.c.l.b16 %v2351
    %v2386 = vunpack.c.h.b16 %v2351
    %v2387 = vunpack.c.l.b16 %v2352
    %v2388 = vunpack.c.l.b16 %v2353
    %v2389 = vunpack.c.h.b16 %v2353
    %v2390 = vunpack.c.l.b16 %v2354
    %v2391 = vunpack.c.l.b16 %v2355
    %v2392 = vunpack.c.h.b16 %v2355
    %v2393 = vunpack.c.l.b16 %v2356
    %v2394 = vunpack.c.l.b16 %v2357
    %v2395 = vunpack.c.h.b16 %v2357
    %v2396 = vunpack.c.l.b16 %v2358
    %v2397 = vunpack.c.l.b16 %v2359
    %v2398 = vunpack.c.h.b16 %v2359
    %v2399 = vunpack.c.l.b16 %v2360
    %v2400 = vunpack.c.l.b16 %v2361
    %v2401 = vunpack.c.h.b16 %v2361
    %v2402 = vunpack.c.l.b16 %v2362
    %v2403 = vpack.c.b16 %v2382, %v2379
    %v2404 = vpack.c.b16 %v2383, %v2380
    %v2405 = vpack.c.b16 %v2384, %v2381
    %v2406 = vpack.c.b16 %v2388, %v2385
    %v2407 = vpack.c.b16 %v2389, %v2386
    %v2408 = vpack.c.b16 %v2390, %v2387
    %v2409 = vpack.c.b16 %v2394, %v2391
    %v2410 = vpack.c.b16 %v2395, %v2392
    %v2411 = vpack.c.b16 %v2396, %v2393
    %v2412 = vpack.c.b16 %v2400, %v2397
    %v2413 = vpack.c.b16 %v2401, %v2398
    %v2414 = vpack.c.b16 %v2402, %v2399
    %2427 = vmatpush.bf16.msra.mxu0 0
    %2428 = vmatpush.bf16.msra.mxu0 0
    %2429 = vmatpush.bf16.msra.mxu0 0
    %2430 = vmatpush.bf16.msra.mxu0 0
    %2431 = vmatpush.bf16.msra.mxu0 %v2412
    %2432 = vmatpush.bf16.msra.mxu0 %v2409
    %2433 = vmatpush.bf16.msra.mxu0 %v2406
    %2434 = vmatpush.bf16.msra.mxu0 %v2403
    %2435 = vmatmul.bf16.gmra.mxu0 %v2156
    %v2436 = vpop.f32.mrf.mxu0
    %v2437 = vadd.f32 0.0, %v2436
    %v2438 = vpop.f32.mrf.mxu0
    %2439 = vdwg.mxu0
    %2440 = vmatpush.bf16.msra.mxu0 0
    %2441 = vmatpush.bf16.msra.mxu0 0
    %2442 = vmatpush.bf16.msra.mxu0 0
    %2443 = vmatpush.bf16.msra.mxu0 0
    %2444 = vmatpush.bf16.msra.mxu0 %v2413
    %2445 = vmatpush.bf16.msra.mxu0 %v2410
    %2446 = vmatpush.bf16.msra.mxu0 %v2407
    %2447 = vmatpush.bf16.msra.mxu0 %v2404
    %2448 = vmatmul.bf16.gmra.mxu0 %v2156
    %v2449 = vpop.f32.mrf.mxu0
    %v2450 = vadd.f32 0.0, %v2449
    %v2451 = vpop.f32.mrf.mxu0
    %2452 = vdwg.mxu0
    %2453 = vmatpush.bf16.msra.mxu0 0
    %2454 = vmatpush.bf16.msra.mxu0 0
    %2455 = vmatpush.bf16.msra.mxu0 0
    %2456 = vmatpush.bf16.msra.mxu0 0
    %2457 = vmatpush.bf16.msra.mxu0 %v2414
    %2458 = vmatpush.bf16.msra.mxu0 %v2411
    %2459 = vmatpush.bf16.msra.mxu0 %v2408
    %2460 = vmatpush.bf16.msra.mxu0 %v2405
    %2461 = vmatmul.bf16.gmra.mxu0 %v2156
    %v2462 = vpop.f32.mrf.mxu0
    %v2463 = vadd.f32 0.0, %v2462
    %v2464 = vpop.f32.mrf.mxu0
    %2465 = vdwg.mxu0
    %v2466 = vld [vmem:[#allocation2 + $0x78] sm:$0xff]
    %v2467 = vld [vmem:[#allocation2 + $0x80] sm:$0xff]
    %v2468 = vld [vmem:[#allocation2 + $0x88] sm:$0xff]
    %v2469 = vadd.f32 %v2466, %v2437
    %v2470 = vxor.u32 %v2469, 2147483648
    %v2471 = vmul.f32 %v2470, 1.442695
    %v2472 = vpow.pop %v2471
    %v2473 = vadd.f32 %v2472, 1.0
    %v2474 = vrcp.pop %v2473
    %v2475 = vmul.f32 %v2473, %v2474
    %v2476 = vsub.f32 1.0, %v2475
    %v2477 = vmul.f32 %v2474, %v2476
    %v2478 = vadd.f32 %v2474, %v2477
    %vm2479 = vweird.f32 %v2473
    %vm2480 = vweird.f32 %v2474
    %vm2481 = vmor %vm2479, %vm2480
    %v2482 = vsel %vm2481, %v2474, %v2478
    %v2483 = vand.u32 2147483647, %v2473
    %vm2484 = vcmp.eq.f32.partialorder %v2483, 8.507059e+37
    %v2485 = vand.u32 %v2473, 2147483648
    %v2486 = vor.u32 1.1754944e-38, %v2485
    %v2487 = vsel %vm2484, %v2486, %v2482
    %v2488 = vmul.f32 1.0, %v2487
    %v2489 = vadd.f32 %v2467, %v2450
    %v2490 = vxor.u32 %v2489, 2147483648
    %v2491 = vmul.f32 %v2490, 1.442695
    %v2492 = vpow.pop %v2491
    %v2493 = vadd.f32 %v2492, 1.0
    %v2494 = vrcp.pop %v2493
    %v2495 = vmul.f32 %v2493, %v2494
    %v2496 = vsub.f32 1.0, %v2495
    %v2497 = vmul.f32 %v2494, %v2496
    %v2498 = vadd.f32 %v2494, %v2497
    %vm2499 = vweird.f32 %v2493
    %vm2500 = vweird.f32 %v2494
    %vm2501 = vmor %vm2499, %vm2500
    %v2502 = vsel %vm2501, %v2494, %v2498
    %v2503 = vand.u32 2147483647, %v2493
    %vm2504 = vcmp.eq.f32.partialorder %v2503, 8.507059e+37
    %v2505 = vand.u32 %v2493, 2147483648
    %v2506 = vor.u32 1.1754944e-38, %v2505
    %v2507 = vsel %vm2504, %v2506, %v2502
    %v2508 = vmul.f32 1.0, %v2507
    %v2509 = vadd.f32 %v2463, %v345
    %v2510 = vmul.f32 %v2488, %v2509
    %v2511 = vadd.f32 %v2468, %v2510
    %v2512 = vtanh.pop %v2511
    %v2513 = vsub.f32 1.0, %v2508
    %v2514 = vmul.f32 %v2513, %v2512
    %v2515 = vmul.f32 %v2508, %v2117
    %v2516 = vadd.f32 %v2514, %v2515
    %v2517 = vpack.c.bf16 %v2516, %v2516
    %v2518 = vld [vmem:[%s5] sm:$0xf]
    %v2519 = vld [vmem:[%s5 + $0x4] sm:$0xf]
    %v2520 = vld [vmem:[%s5 + $0x8] sm:$0xf]
    %v2521 = vld [vmem:[%s5 + $0xc] sm:$0xf]
    %v2522 = vld [vmem:[%s5 + $0x10] sm:$0xf]
    %v2523 = vld [vmem:[%s5 + $0x14] sm:$0xf]
    %v2524 = vld [vmem:[%s5 + $0x18] sm:$0xf]
    %v2525 = vld [vmem:[%s5 + $0x1c] sm:$0xf]
    %v2526 = vld [vmem:[#allocation11] sm:$0x1]
    %v2528 = vperm.slane %v2526, 0
    %v2538 = vunpack.c.l.b16 %v2518
    %v2539 = vunpack.c.l.b16 %v2519
    %v2540 = vunpack.c.l.b16 %v2520
    %v2541 = vunpack.c.l.b16 %v2521
    %v2542 = vunpack.c.l.b16 %v2522
    %v2543 = vunpack.c.l.b16 %v2523
    %v2544 = vunpack.c.l.b16 %v2524
    %v2545 = vunpack.c.l.b16 %v2525
    %v2546 = vpack.c.b16 %v2539, %v2538
    %v2547 = vpack.c.b16 %v2541, %v2540
    %v2548 = vpack.c.b16 %v2543, %v2542
    %v2549 = vpack.c.b16 %v2545, %v2544
    %v2555 = vsel %vm427, %v2517, 0
    %2557 = vmatpush.bf16.msra.mxu0 0
    %2558 = vmatpush.bf16.msra.mxu0 0
    %2559 = vmatpush.bf16.msra.mxu0 0
    %2560 = vmatpush.bf16.msra.mxu0 0
    %2561 = vmatpush.bf16.msra.mxu0 %v2549
    %2562 = vmatpush.bf16.msra.mxu0 %v2548
    %2563 = vmatpush.bf16.msra.mxu0 %v2547
    %2564 = vmatpush.bf16.msra.mxu0 %v2546
    %2565 = vmatmul.bf16.gmra.mxu0 %v2555
    %v2566 = vpop.f32.mrf.mxu0
    %v2567 = vadd.f32 %v2528, %v2566
    %v2568 = vpop.f32.mrf.mxu0
    %2569 = vdwg.mxu0
    %v2570 = vmax.f32 %v2567, 0.0
    %v2571 = vpack.c.bf16 %v2570, %v2570
    %v2572 = vld [vmem:[#allocation12] sm:$0xf]
    %v2573 = vld [vmem:[#allocation12 + $0x4] sm:$0xf]
    %v2574 = vld [vmem:[#allocation12 + $0x8] sm:$0xf]
    %v2575 = vld [vmem:[#allocation12 + $0xc] sm:$0xf]
    %v2576 = vld [vmem:[#allocation12 + $0x10] sm:$0xf]
    %v2577 = vld [vmem:[#allocation12 + $0x14] sm:$0xf]
    %v2578 = vld [vmem:[#allocation12 + $0x18] sm:$0xf]
    %v2579 = vld [vmem:[#allocation12 + $0x1c] sm:$0xf]
    %v2580 = vld [vmem:[#allocation12 + $0x20] sm:$0xf]
    %v2581 = vld [vmem:[#allocation12 + $0x24] sm:$0xf]
    %v2582 = vld [vmem:[#allocation12 + $0x28] sm:$0xf]
    %v2583 = vld [vmem:[#allocation12 + $0x2c] sm:$0xf]
    %v2584 = vld [vmem:[#allocation12 + $0x30] sm:$0xf]
    %v2585 = vld [vmem:[#allocation12 + $0x34] sm:$0xf]
    %v2586 = vld [vmem:[#allocation12 + $0x38] sm:$0xf]
    %v2587 = vld [vmem:[#allocation12 + $0x3c] sm:$0xf]
    %v2588 = vld [vmem:[#allocation14] sm:$0x1]
    %v2590 = vperm.slane %v2588, 0
    %v2608 = vunpack.c.l.b16 %v2572
    %v2609 = vunpack.c.l.b16 %v2573
    %v2610 = vunpack.c.l.b16 %v2574
    %v2611 = vunpack.c.l.b16 %v2575
    %v2612 = vunpack.c.l.b16 %v2576
    %v2613 = vunpack.c.l.b16 %v2577
    %v2614 = vunpack.c.l.b16 %v2578
    %v2615 = vunpack.c.l.b16 %v2579
    %v2616 = vunpack.c.l.b16 %v2580
    %v2617 = vunpack.c.l.b16 %v2581
    %v2618 = vunpack.c.l.b16 %v2582
    %v2619 = vunpack.c.l.b16 %v2583
    %v2620 = vunpack.c.l.b16 %v2584
    %v2621 = vunpack.c.l.b16 %v2585
    %v2622 = vunpack.c.l.b16 %v2586
    %v2623 = vunpack.c.l.b16 %v2587
    %v2624 = vpack.c.b16 %v2609, %v2608
    %v2625 = vpack.c.b16 %v2611, %v2610
    %v2626 = vpack.c.b16 %v2613, %v2612
    %v2627 = vpack.c.b16 %v2615, %v2614
    %v2628 = vpack.c.b16 %v2617, %v2616
    %v2629 = vpack.c.b16 %v2619, %v2618
    %v2630 = vpack.c.b16 %v2621, %v2620
    %v2631 = vpack.c.b16 %v2623, %v2622
    %2640 = vmatpush.bf16.msra.mxu0 %v2631
    %2641 = vmatpush.bf16.msra.mxu0 %v2630
    %2642 = vmatpush.bf16.msra.mxu0 %v2629
    %2643 = vmatpush.bf16.msra.mxu0 %v2628
    %2644 = vmatpush.bf16.msra.mxu0 %v2627
    %2645 = vmatpush.bf16.msra.mxu0 %v2626
    %2646 = vmatpush.bf16.msra.mxu0 %v2625
    %2647 = vmatpush.bf16.msra.mxu0 %v2624
    %2648 = vmatmul.bf16.gmra.mxu0 %v2571
    %v2649 = vpop.f32.mrf.mxu0
    %v2650 = vadd.f32 %v2590, %v2649
    %v2651 = vpop.f32.mrf.mxu0
    %2652 = vdwg.mxu0
    %v2653 = vmax.f32 %v2650, 0.0
    %v2654 = vpack.c.bf16 %v2653, %v2653
    %v2655 = vld [vmem:[#allocation15] sm:$0xf]
    %v2656 = vld [vmem:[#allocation15 + $0x4] sm:$0xf]
    %v2657 = vld [vmem:[#allocation15 + $0x8] sm:$0xf]
    %v2658 = vld [vmem:[#allocation15 + $0xc] sm:$0xf]
    %v2659 = vld [vmem:[#allocation15 + $0x10] sm:$0xf]
    %v2660 = vld [vmem:[#allocation15 + $0x14] sm:$0xf]
    %v2661 = vld [vmem:[#allocation15 + $0x18] sm:$0xf]
    %v2662 = vld [vmem:[#allocation15 + $0x1c] sm:$0xf]
    %v2663 = vld [vmem:[%s10] sm:$0x1]
    %v2665 = vperm.slane %v2663, 0
    %v2675 = vunpack.c.l.b16 %v2655
    %v2676 = vunpack.c.l.b16 %v2656
    %v2677 = vunpack.c.l.b16 %v2657
    %v2678 = vunpack.c.l.b16 %v2658
    %v2679 = vunpack.c.l.b16 %v2659
    %v2680 = vunpack.c.l.b16 %v2660
    %v2681 = vunpack.c.l.b16 %v2661
    %v2682 = vunpack.c.l.b16 %v2662
    %v2683 = vpack.c.b16 %v2676, %v2675
    %v2684 = vpack.c.b16 %v2678, %v2677
    %v2685 = vpack.c.b16 %v2680, %v2679
    %v2686 = vpack.c.b16 %v2682, %v2681
    %v2692 = vsel %vm427, %v2654, 0
    %2694 = vmatpush.bf16.msra.mxu0 0
    %2695 = vmatpush.bf16.msra.mxu0 0
    %2696 = vmatpush.bf16.msra.mxu0 0
    %2697 = vmatpush.bf16.msra.mxu0 0
    %2698 = vmatpush.bf16.msra.mxu0 %v2686
    %2699 = vmatpush.bf16.msra.mxu0 %v2685
    %2700 = vmatpush.bf16.msra.mxu0 %v2684
    %2701 = vmatpush.bf16.msra.mxu0 %v2683
    %2702 = vmatmul.bf16.gmra.mxu0 %v2692
    %v2703 = vpop.f32.mrf.mxu0
    %v2704 = vadd.f32 %v2665, %v2703
    %v2705 = vpop.f32.mrf.mxu0
    %2706 = vdwg.mxu0
    %v2707 = vmax.f32 %v2704, 0.0
    %v2708 = vpack.c.bf16 %v2707, %v2707
    %v2709 = vld [vmem:[%s11] sm:$0xf]
    %v2710 = vld [vmem:[%s11 + $0x4] sm:$0xf]
    %v2711 = vld [vmem:[%s11 + $0x8] sm:$0xf]
    %v2712 = vld [vmem:[%s11 + $0xc] sm:$0xf]
    %v2713 = vld [vmem:[%s12] sm:$0x1]
    %v2715 = vperm.slane %v2713, 0
    %v2721 = vunpack.c.l.b16 %v2709
    %v2722 = vunpack.c.l.b16 %v2710
    %v2723 = vunpack.c.l.b16 %v2711
    %v2724 = vunpack.c.l.b16 %v2712
    %v2725 = vpack.c.b16 %v2722, %v2721
    %v2726 = vpack.c.b16 %v2724, %v2723
    %v2730 = vsel %vm733, %v2708, 0
    %2732 = vmatpush.bf16.msra.mxu0 0
    %2733 = vmatpush.bf16.msra.mxu0 0
    %2734 = vmatpush.bf16.msra.mxu0 0
    %2735 = vmatpush.bf16.msra.mxu0 0
    %2736 = vmatpush.bf16.msra.mxu0 0
    %2737 = vmatpush.bf16.msra.mxu0 0
    %2738 = vmatpush.bf16.msra.mxu0 %v2726
    %2739 = vmatpush.bf16.msra.mxu0 %v2725
    %2740 = vmatmul.bf16.gmra.mxu0 %v2730
    %v2741 = vpop.f32.mrf.mxu0
    %v2742 = vadd.f32 %v2715, %v2741
    %v2743 = vpop.f32.mrf.mxu0
    %2744 = vdwg.mxu0
    %2745 = vst [vmem:[#allocation17 + $0x28] sm:$0xff] %v2742
    %v2746 = vld [vmem:[#allocation6] sm:$0xff]
    %v2747 = vld [vmem:[#allocation6 + $0x8] sm:$0xf]
    %v2748 = vld [vmem:[#allocation6 + $0xc] sm:$0xff]
    %v2749 = vld [vmem:[#allocation6 + $0x14] sm:$0xf]
    %v2750 = vld [vmem:[#allocation6 + $0x18] sm:$0xff]
    %v2751 = vld [vmem:[#allocation6 + $0x20] sm:$0xf]
    %v2752 = vld [vmem:[#allocation6 + $0x24] sm:$0xff]
    %v2753 = vld [vmem:[#allocation6 + $0x2c] sm:$0xf]
    %v2754 = vld [vmem:[#allocation6 + $0x30] sm:$0xff]
    %v2755 = vld [vmem:[#allocation6 + $0x38] sm:$0xf]
    %v2756 = vld [vmem:[#allocation6 + $0x3c] sm:$0xff]
    %v2757 = vld [vmem:[#allocation6 + $0x44] sm:$0xf]
    %v2758 = vld [vmem:[#allocation6 + $0x48] sm:$0xff]
    %v2759 = vld [vmem:[#allocation6 + $0x50] sm:$0xf]
    %v2760 = vld [vmem:[#allocation6 + $0x54] sm:$0xff]
    %v2761 = vld [vmem:[#allocation6 + $0x5c] sm:$0xf]
    %v2778 = vunpack.c.l.b16 %v2746
    %v2779 = vunpack.c.h.b16 %v2746
    %v2780 = vunpack.c.l.b16 %v2747
    %v2781 = vunpack.c.l.b16 %v2748
    %v2782 = vunpack.c.h.b16 %v2748
    %v2783 = vunpack.c.l.b16 %v2749
    %v2784 = vunpack.c.l.b16 %v2750
    %v2785 = vunpack.c.h.b16 %v2750
    %v2786 = vunpack.c.l.b16 %v2751
    %v2787 = vunpack.c.l.b16 %v2752
    %v2788 = vunpack.c.h.b16 %v2752
    %v2789 = vunpack.c.l.b16 %v2753
    %v2790 = vunpack.c.l.b16 %v2754
    %v2791 = vunpack.c.h.b16 %v2754
    %v2792 = vunpack.c.l.b16 %v2755
    %v2793 = vunpack.c.l.b16 %v2756
    %v2794 = vunpack.c.h.b16 %v2756
    %v2795 = vunpack.c.l.b16 %v2757
    %v2796 = vunpack.c.l.b16 %v2758
    %v2797 = vunpack.c.h.b16 %v2758
    %v2798 = vunpack.c.l.b16 %v2759
    %v2799 = vunpack.c.l.b16 %v2760
    %v2800 = vunpack.c.h.b16 %v2760
    %v2801 = vunpack.c.l.b16 %v2761
    %v2802 = vpack.c.b16 %v2781, %v2778
    %v2803 = vpack.c.b16 %v2782, %v2779
    %v2804 = vpack.c.b16 %v2783, %v2780
    %v2805 = vpack.c.b16 %v2787, %v2784
    %v2806 = vpack.c.b16 %v2788, %v2785
    %v2807 = vpack.c.b16 %v2789, %v2786
    %v2808 = vpack.c.b16 %v2793, %v2790
    %v2809 = vpack.c.b16 %v2794, %v2791
    %v2810 = vpack.c.b16 %v2795, %v2792
    %v2811 = vpack.c.b16 %v2799, %v2796
    %v2812 = vpack.c.b16 %v2800, %v2797
    %v2813 = vpack.c.b16 %v2801, %v2798
    %2826 = vmatpush.bf16.msra.mxu0 0
    %2827 = vmatpush.bf16.msra.mxu0 0
    %2828 = vmatpush.bf16.msra.mxu0 0
    %2829 = vmatpush.bf16.msra.mxu0 0
    %2830 = vmatpush.bf16.msra.mxu0 %v2811
    %2831 = vmatpush.bf16.msra.mxu0 %v2808
    %2832 = vmatpush.bf16.msra.mxu0 %v2805
    %2833 = vmatpush.bf16.msra.mxu0 %v2802
    %2834 = vmatmul.bf16.gmra.mxu0 %v2555
    %v2835 = vpop.f32.mrf.mxu0
    %v2836 = vadd.f32 0.0, %v2835
    %v2837 = vpop.f32.mrf.mxu0
    %2838 = vdwg.mxu0
    %2839 = vmatpush.bf16.msra.mxu0 0
    %2840 = vmatpush.bf16.msra.mxu0 0
    %2841 = vmatpush.bf16.msra.mxu0 0
    %2842 = vmatpush.bf16.msra.mxu0 0
    %2843 = vmatpush.bf16.msra.mxu0 %v2812
    %2844 = vmatpush.bf16.msra.mxu0 %v2809
    %2845 = vmatpush.bf16.msra.mxu0 %v2806
    %2846 = vmatpush.bf16.msra.mxu0 %v2803
    %2847 = vmatmul.bf16.gmra.mxu0 %v2555
    %v2848 = vpop.f32.mrf.mxu0
    %v2849 = vadd.f32 0.0, %v2848
    %v2850 = vpop.f32.mrf.mxu0
    %2851 = vdwg.mxu0
    %2852 = vmatpush.bf16.msra.mxu0 0
    %2853 = vmatpush.bf16.msra.mxu0 0
    %2854 = vmatpush.bf16.msra.mxu0 0
    %2855 = vmatpush.bf16.msra.mxu0 0
    %2856 = vmatpush.bf16.msra.mxu0 %v2813
    %2857 = vmatpush.bf16.msra.mxu0 %v2810
    %2858 = vmatpush.bf16.msra.mxu0 %v2807
    %2859 = vmatpush.bf16.msra.mxu0 %v2804
    %2860 = vmatmul.bf16.gmra.mxu0 %v2555
    %v2861 = vpop.f32.mrf.mxu0
    %v2862 = vadd.f32 0.0, %v2861
    %v2863 = vpop.f32.mrf.mxu0
    %2864 = vdwg.mxu0
    %v2865 = vld [vmem:[#allocation2 + $0x90] sm:$0xff]
    %v2866 = vld [vmem:[#allocation2 + $0x98] sm:$0xff]
    %v2867 = vld [vmem:[#allocation2 + $0xa0] sm:$0xff]
    %v2868 = vadd.f32 %v2865, %v2836
    %v2869 = vxor.u32 %v2868, 2147483648
    %v2870 = vmul.f32 %v2869, 1.442695
    %v2871 = vpow.pop %v2870
    %v2872 = vadd.f32 %v2871, 1.0
    %v2873 = vrcp.pop %v2872
    %v2874 = vmul.f32 %v2872, %v2873
    %v2875 = vsub.f32 1.0, %v2874
    %v2876 = vmul.f32 %v2873, %v2875
    %v2877 = vadd.f32 %v2873, %v2876
    %vm2878 = vweird.f32 %v2872
    %vm2879 = vweird.f32 %v2873
    %vm2880 = vmor %vm2878, %vm2879
    %v2881 = vsel %vm2880, %v2873, %v2877
    %v2882 = vand.u32 2147483647, %v2872
    %vm2883 = vcmp.eq.f32.partialorder %v2882, 8.507059e+37
    %v2884 = vand.u32 %v2872, 2147483648
    %v2885 = vor.u32 1.1754944e-38, %v2884
    %v2886 = vsel %vm2883, %v2885, %v2881
    %v2887 = vmul.f32 1.0, %v2886
    %v2888 = vadd.f32 %v2866, %v2849
    %v2889 = vxor.u32 %v2888, 2147483648
    %v2890 = vmul.f32 %v2889, 1.442695
    %v2891 = vpow.pop %v2890
    %v2892 = vadd.f32 %v2891, 1.0
    %v2893 = vrcp.pop %v2892
    %v2894 = vmul.f32 %v2892, %v2893
    %v2895 = vsub.f32 1.0, %v2894
    %v2896 = vmul.f32 %v2893, %v2895
    %v2897 = vadd.f32 %v2893, %v2896
    %vm2898 = vweird.f32 %v2892
    %vm2899 = vweird.f32 %v2893
    %vm2900 = vmor %vm2898, %vm2899
    %v2901 = vsel %vm2900, %v2893, %v2897
    %v2902 = vand.u32 2147483647, %v2892
    %vm2903 = vcmp.eq.f32.partialorder %v2902, 8.507059e+37
    %v2904 = vand.u32 %v2892, 2147483648
    %v2905 = vor.u32 1.1754944e-38, %v2904
    %v2906 = vsel %vm2903, %v2905, %v2901
    %v2907 = vmul.f32 1.0, %v2906
    %v2908 = vadd.f32 %v2862, %v345
    %v2909 = vmul.f32 %v2887, %v2908
    %v2910 = vadd.f32 %v2867, %v2909
    %v2911 = vtanh.pop %v2910
    %v2912 = vsub.f32 1.0, %v2907
    %v2913 = vmul.f32 %v2912, %v2911
    %v2914 = vmul.f32 %v2907, %v2516
    %v2915 = vadd.f32 %v2913, %v2914
    %v2916 = vpack.c.bf16 %v2915, %v2915
    %v2917 = vld [vmem:[%s5] sm:$0xf]
    %v2918 = vld [vmem:[%s5 + $0x4] sm:$0xf]
    %v2919 = vld [vmem:[%s5 + $0x8] sm:$0xf]
    %v2920 = vld [vmem:[%s5 + $0xc] sm:$0xf]
    %v2921 = vld [vmem:[%s5 + $0x10] sm:$0xf]
    %v2922 = vld [vmem:[%s5 + $0x14] sm:$0xf]
    %v2923 = vld [vmem:[%s5 + $0x18] sm:$0xf]
    %v2924 = vld [vmem:[%s5 + $0x1c] sm:$0xf]
    %v2925 = vld [vmem:[#allocation11] sm:$0x1]
    %v2927 = vperm.slane %v2925, 0
    %v2937 = vunpack.c.l.b16 %v2917
    %v2938 = vunpack.c.l.b16 %v2918
    %v2939 = vunpack.c.l.b16 %v2919
    %v2940 = vunpack.c.l.b16 %v2920
    %v2941 = vunpack.c.l.b16 %v2921
    %v2942 = vunpack.c.l.b16 %v2922
    %v2943 = vunpack.c.l.b16 %v2923
    %v2944 = vunpack.c.l.b16 %v2924
    %v2945 = vpack.c.b16 %v2938, %v2937
    %v2946 = vpack.c.b16 %v2940, %v2939
    %v2947 = vpack.c.b16 %v2942, %v2941
    %v2948 = vpack.c.b16 %v2944, %v2943
    %v2954 = vsel %vm427, %v2916, 0
    %2956 = vmatpush.bf16.msra.mxu0 0
    %2957 = vmatpush.bf16.msra.mxu0 0
    %2958 = vmatpush.bf16.msra.mxu0 0
    %2959 = vmatpush.bf16.msra.mxu0 0
    %2960 = vmatpush.bf16.msra.mxu0 %v2948
    %2961 = vmatpush.bf16.msra.mxu0 %v2947
    %2962 = vmatpush.bf16.msra.mxu0 %v2946
    %2963 = vmatpush.bf16.msra.mxu0 %v2945
    %2964 = vmatmul.bf16.gmra.mxu0 %v2954
    %v2965 = vpop.f32.mrf.mxu0
    %v2966 = vadd.f32 %v2927, %v2965
    %v2967 = vpop.f32.mrf.mxu0
    %2968 = vdwg.mxu0
    %v2969 = vmax.f32 %v2966, 0.0
    %v2970 = vpack.c.bf16 %v2969, %v2969
    %v2971 = vld [vmem:[#allocation12] sm:$0xf]
    %v2972 = vld [vmem:[#allocation12 + $0x4] sm:$0xf]
    %v2973 = vld [vmem:[#allocation12 + $0x8] sm:$0xf]
    %v2974 = vld [vmem:[#allocation12 + $0xc] sm:$0xf]
    %v2975 = vld [vmem:[#allocation12 + $0x10] sm:$0xf]
    %v2976 = vld [vmem:[#allocation12 + $0x14] sm:$0xf]
    %v2977 = vld [vmem:[#allocation12 + $0x18] sm:$0xf]
    %v2978 = vld [vmem:[#allocation12 + $0x1c] sm:$0xf]
    %v2979 = vld [vmem:[#allocation12 + $0x20] sm:$0xf]
    %v2980 = vld [vmem:[#allocation12 + $0x24] sm:$0xf]
    %v2981 = vld [vmem:[#allocation12 + $0x28] sm:$0xf]
    %v2982 = vld [vmem:[#allocation12 + $0x2c] sm:$0xf]
    %v2983 = vld [vmem:[#allocation12 + $0x30] sm:$0xf]
    %v2984 = vld [vmem:[#allocation12 + $0x34] sm:$0xf]
    %v2985 = vld [vmem:[#allocation12 + $0x38] sm:$0xf]
    %v2986 = vld [vmem:[#allocation12 + $0x3c] sm:$0xf]
    %v2987 = vld [vmem:[#allocation14] sm:$0x1]
    %v2989 = vperm.slane %v2987, 0
    %v3007 = vunpack.c.l.b16 %v2971
    %v3008 = vunpack.c.l.b16 %v2972
    %v3009 = vunpack.c.l.b16 %v2973
    %v3010 = vunpack.c.l.b16 %v2974
    %v3011 = vunpack.c.l.b16 %v2975
    %v3012 = vunpack.c.l.b16 %v2976
    %v3013 = vunpack.c.l.b16 %v2977
    %v3014 = vunpack.c.l.b16 %v2978
    %v3015 = vunpack.c.l.b16 %v2979
    %v3016 = vunpack.c.l.b16 %v2980
    %v3017 = vunpack.c.l.b16 %v2981
    %v3018 = vunpack.c.l.b16 %v2982
    %v3019 = vunpack.c.l.b16 %v2983
    %v3020 = vunpack.c.l.b16 %v2984
    %v3021 = vunpack.c.l.b16 %v2985
    %v3022 = vunpack.c.l.b16 %v2986
    %v3023 = vpack.c.b16 %v3008, %v3007
    %v3024 = vpack.c.b16 %v3010, %v3009
    %v3025 = vpack.c.b16 %v3012, %v3011
    %v3026 = vpack.c.b16 %v3014, %v3013
    %v3027 = vpack.c.b16 %v3016, %v3015
    %v3028 = vpack.c.b16 %v3018, %v3017
    %v3029 = vpack.c.b16 %v3020, %v3019
    %v3030 = vpack.c.b16 %v3022, %v3021
    %3039 = vmatpush.bf16.msra.mxu0 %v3030
    %3040 = vmatpush.bf16.msra.mxu0 %v3029
    %3041 = vmatpush.bf16.msra.mxu0 %v3028
    %3042 = vmatpush.bf16.msra.mxu0 %v3027
    %3043 = vmatpush.bf16.msra.mxu0 %v3026
    %3044 = vmatpush.bf16.msra.mxu0 %v3025
    %3045 = vmatpush.bf16.msra.mxu0 %v3024
    %3046 = vmatpush.bf16.msra.mxu0 %v3023
    %3047 = vmatmul.bf16.gmra.mxu0 %v2970
    %v3048 = vpop.f32.mrf.mxu0
    %v3049 = vadd.f32 %v2989, %v3048
    %v3050 = vpop.f32.mrf.mxu0
    %3051 = vdwg.mxu0
    %v3052 = vmax.f32 %v3049, 0.0
    %v3053 = vpack.c.bf16 %v3052, %v3052
    %v3054 = vld [vmem:[#allocation15] sm:$0xf]
    %v3055 = vld [vmem:[#allocation15 + $0x4] sm:$0xf]
    %v3056 = vld [vmem:[#allocation15 + $0x8] sm:$0xf]
    %v3057 = vld [vmem:[#allocation15 + $0xc] sm:$0xf]
    %v3058 = vld [vmem:[#allocation15 + $0x10] sm:$0xf]
    %v3059 = vld [vmem:[#allocation15 + $0x14] sm:$0xf]
    %v3060 = vld [vmem:[#allocation15 + $0x18] sm:$0xf]
    %v3061 = vld [vmem:[#allocation15 + $0x1c] sm:$0xf]
    %v3062 = vld [vmem:[%s10] sm:$0x1]
    %v3064 = vperm.slane %v3062, 0
    %v3074 = vunpack.c.l.b16 %v3054
    %v3075 = vunpack.c.l.b16 %v3055
    %v3076 = vunpack.c.l.b16 %v3056
    %v3077 = vunpack.c.l.b16 %v3057
    %v3078 = vunpack.c.l.b16 %v3058
    %v3079 = vunpack.c.l.b16 %v3059
    %v3080 = vunpack.c.l.b16 %v3060
    %v3081 = vunpack.c.l.b16 %v3061
    %v3082 = vpack.c.b16 %v3075, %v3074
    %v3083 = vpack.c.b16 %v3077, %v3076
    %v3084 = vpack.c.b16 %v3079, %v3078
    %v3085 = vpack.c.b16 %v3081, %v3080
    %v3091 = vsel %vm427, %v3053, 0
    %3093 = vmatpush.bf16.msra.mxu0 0
    %3094 = vmatpush.bf16.msra.mxu0 0
    %3095 = vmatpush.bf16.msra.mxu0 0
    %3096 = vmatpush.bf16.msra.mxu0 0
    %3097 = vmatpush.bf16.msra.mxu0 %v3085
    %3098 = vmatpush.bf16.msra.mxu0 %v3084
    %3099 = vmatpush.bf16.msra.mxu0 %v3083
    %3100 = vmatpush.bf16.msra.mxu0 %v3082
    %3101 = vmatmul.bf16.gmra.mxu0 %v3091
    %v3102 = vpop.f32.mrf.mxu0
    %v3103 = vadd.f32 %v3064, %v3102
    %v3104 = vpop.f32.mrf.mxu0
    %3105 = vdwg.mxu0
    %v3106 = vmax.f32 %v3103, 0.0
    %v3107 = vpack.c.bf16 %v3106, %v3106
    %v3108 = vld [vmem:[%s11] sm:$0xf]
    %v3109 = vld [vmem:[%s11 + $0x4] sm:$0xf]
    %v3110 = vld [vmem:[%s11 + $0x8] sm:$0xf]
    %v3111 = vld [vmem:[%s11 + $0xc] sm:$0xf]
    %v3112 = vld [vmem:[%s12] sm:$0x1]
    %v3114 = vperm.slane %v3112, 0
    %v3120 = vunpack.c.l.b16 %v3108
    %v3121 = vunpack.c.l.b16 %v3109
    %v3122 = vunpack.c.l.b16 %v3110
    %v3123 = vunpack.c.l.b16 %v3111
    %v3124 = vpack.c.b16 %v3121, %v3120
    %v3125 = vpack.c.b16 %v3123, %v3122
    %v3129 = vsel %vm733, %v3107, 0
    %3131 = vmatpush.bf16.msra.mxu0 0
    %3132 = vmatpush.bf16.msra.mxu0 0
    %3133 = vmatpush.bf16.msra.mxu0 0
    %3134 = vmatpush.bf16.msra.mxu0 0
    %3135 = vmatpush.bf16.msra.mxu0 0
    %3136 = vmatpush.bf16.msra.mxu0 0
    %3137 = vmatpush.bf16.msra.mxu0 %v3125
    %3138 = vmatpush.bf16.msra.mxu0 %v3124
    %3139 = vmatmul.bf16.gmra.mxu0 %v3129
    %v3140 = vpop.f32.mrf.mxu0
    %v3141 = vadd.f32 %v3114, %v3140
    %v3142 = vpop.f32.mrf.mxu0
    %3143 = vdwg.mxu0
    %3144 = vst [vmem:[#allocation17 + $0x30] sm:$0xff] %v3141
    %v3145 = vld [vmem:[#allocation6] sm:$0xff]
    %v3146 = vld [vmem:[#allocation6 + $0x8] sm:$0xf]
    %v3147 = vld [vmem:[#allocation6 + $0xc] sm:$0xff]
    %v3148 = vld [vmem:[#allocation6 + $0x14] sm:$0xf]
    %v3149 = vld [vmem:[#allocation6 + $0x18] sm:$0xff]
    %v3150 = vld [vmem:[#allocation6 + $0x20] sm:$0xf]
    %v3151 = vld [vmem:[#allocation6 + $0x24] sm:$0xff]
    %v3152 = vld [vmem:[#allocation6 + $0x2c] sm:$0xf]
    %v3153 = vld [vmem:[#allocation6 + $0x30] sm:$0xff]
    %v3154 = vld [vmem:[#allocation6 + $0x38] sm:$0xf]
    %v3155 = vld [vmem:[#allocation6 + $0x3c] sm:$0xff]
    %v3156 = vld [vmem:[#allocation6 + $0x44] sm:$0xf]
    %v3157 = vld [vmem:[#allocation6 + $0x48] sm:$0xff]
    %v3158 = vld [vmem:[#allocation6 + $0x50] sm:$0xf]
    %v3159 = vld [vmem:[#allocation6 + $0x54] sm:$0xff]
    %v3160 = vld [vmem:[#allocation6 + $0x5c] sm:$0xf]
    %v3177 = vunpack.c.l.b16 %v3145
    %v3178 = vunpack.c.h.b16 %v3145
    %v3179 = vunpack.c.l.b16 %v3146
    %v3180 = vunpack.c.l.b16 %v3147
    %v3181 = vunpack.c.h.b16 %v3147
    %v3182 = vunpack.c.l.b16 %v3148
    %v3183 = vunpack.c.l.b16 %v3149
    %v3184 = vunpack.c.h.b16 %v3149
    %v3185 = vunpack.c.l.b16 %v3150
    %v3186 = vunpack.c.l.b16 %v3151
    %v3187 = vunpack.c.h.b16 %v3151
    %v3188 = vunpack.c.l.b16 %v3152
    %v3189 = vunpack.c.l.b16 %v3153
    %v3190 = vunpack.c.h.b16 %v3153
    %v3191 = vunpack.c.l.b16 %v3154
    %v3192 = vunpack.c.l.b16 %v3155
    %v3193 = vunpack.c.h.b16 %v3155
    %v3194 = vunpack.c.l.b16 %v3156
    %v3195 = vunpack.c.l.b16 %v3157
    %v3196 = vunpack.c.h.b16 %v3157
    %v3197 = vunpack.c.l.b16 %v3158
    %v3198 = vunpack.c.l.b16 %v3159
    %v3199 = vunpack.c.h.b16 %v3159
    %v3200 = vunpack.c.l.b16 %v3160
    %v3201 = vpack.c.b16 %v3180, %v3177
    %v3202 = vpack.c.b16 %v3181, %v3178
    %v3203 = vpack.c.b16 %v3182, %v3179
    %v3204 = vpack.c.b16 %v3186, %v3183
    %v3205 = vpack.c.b16 %v3187, %v3184
    %v3206 = vpack.c.b16 %v3188, %v3185
    %v3207 = vpack.c.b16 %v3192, %v3189
    %v3208 = vpack.c.b16 %v3193, %v3190
    %v3209 = vpack.c.b16 %v3194, %v3191
    %v3210 = vpack.c.b16 %v3198, %v3195
    %v3211 = vpack.c.b16 %v3199, %v3196
    %v3212 = vpack.c.b16 %v3200, %v3197
    %3225 = vmatpush.bf16.msra.mxu0 0
    %3226 = vmatpush.bf16.msra.mxu0 0
    %3227 = vmatpush.bf16.msra.mxu0 0
    %3228 = vmatpush.bf16.msra.mxu0 0
    %3229 = vmatpush.bf16.msra.mxu0 %v3210
    %3230 = vmatpush.bf16.msra.mxu0 %v3207
    %3231 = vmatpush.bf16.msra.mxu0 %v3204
    %3232 = vmatpush.bf16.msra.mxu0 %v3201
    %3233 = vmatmul.bf16.gmra.mxu0 %v2954
    %v3234 = vpop.f32.mrf.mxu0
    %v3235 = vadd.f32 0.0, %v3234
    %v3236 = vpop.f32.mrf.mxu0
    %3237 = vdwg.mxu0
    %3238 = vmatpush.bf16.msra.mxu0 0
    %3239 = vmatpush.bf16.msra.mxu0 0
    %3240 = vmatpush.bf16.msra.mxu0 0
    %3241 = vmatpush.bf16.msra.mxu0 0
    %3242 = vmatpush.bf16.msra.mxu0 %v3211
    %3243 = vmatpush.bf16.msra.mxu0 %v3208
    %3244 = vmatpush.bf16.msra.mxu0 %v3205
    %3245 = vmatpush.bf16.msra.mxu0 %v3202
    %3246 = vmatmul.bf16.gmra.mxu0 %v2954
    %v3247 = vpop.f32.mrf.mxu0
    %v3248 = vadd.f32 0.0, %v3247
    %v3249 = vpop.f32.mrf.mxu0
    %3250 = vdwg.mxu0
    %3251 = vmatpush.bf16.msra.mxu0 0
    %3252 = vmatpush.bf16.msra.mxu0 0
    %3253 = vmatpush.bf16.msra.mxu0 0
    %3254 = vmatpush.bf16.msra.mxu0 0
    %3255 = vmatpush.bf16.msra.mxu0 %v3212
    %3256 = vmatpush.bf16.msra.mxu0 %v3209
    %3257 = vmatpush.bf16.msra.mxu0 %v3206
    %3258 = vmatpush.bf16.msra.mxu0 %v3203
    %3259 = vmatmul.bf16.gmra.mxu0 %v2954
    %v3260 = vpop.f32.mrf.mxu0
    %v3261 = vadd.f32 0.0, %v3260
    %v3262 = vpop.f32.mrf.mxu0
    %3263 = vdwg.mxu0
    %v3264 = vld [vmem:[#allocation2 + $0xa8] sm:$0xff]
    %v3265 = vld [vmem:[#allocation2 + $0xb0] sm:$0xff]
    %v3266 = vld [vmem:[#allocation2 + $0xb8] sm:$0xff]
    %v3267 = vadd.f32 %v3264, %v3235
    %v3268 = vxor.u32 %v3267, 2147483648
    %v3269 = vmul.f32 %v3268, 1.442695
    %v3270 = vpow.pop %v3269
    %v3271 = vadd.f32 %v3270, 1.0
    %v3272 = vrcp.pop %v3271
    %v3273 = vmul.f32 %v3271, %v3272
    %v3274 = vsub.f32 1.0, %v3273
    %v3275 = vmul.f32 %v3272, %v3274
    %v3276 = vadd.f32 %v3272, %v3275
    %vm3277 = vweird.f32 %v3271
    %vm3278 = vweird.f32 %v3272
    %vm3279 = vmor %vm3277, %vm3278
    %v3280 = vsel %vm3279, %v3272, %v3276
    %v3281 = vand.u32 2147483647, %v3271
    %vm3282 = vcmp.eq.f32.partialorder %v3281, 8.507059e+37
    %v3283 = vand.u32 %v3271, 2147483648
    %v3284 = vor.u32 1.1754944e-38, %v3283
    %v3285 = vsel %vm3282, %v3284, %v3280
    %v3286 = vmul.f32 1.0, %v3285
    %v3287 = vadd.f32 %v3265, %v3248
    %v3288 = vxor.u32 %v3287, 2147483648
    %v3289 = vmul.f32 %v3288, 1.442695
    %v3290 = vpow.pop %v3289
    %v3291 = vadd.f32 %v3290, 1.0
    %v3292 = vrcp.pop %v3291
    %v3293 = vmul.f32 %v3291, %v3292
    %v3294 = vsub.f32 1.0, %v3293
    %v3295 = vmul.f32 %v3292, %v3294
    %v3296 = vadd.f32 %v3292, %v3295
    %vm3297 = vweird.f32 %v3291
    %vm3298 = vweird.f32 %v3292
    %vm3299 = vmor %vm3297, %vm3298
    %v3300 = vsel %vm3299, %v3292, %v3296
    %v3301 = vand.u32 2147483647, %v3291
    %vm3302 = vcmp.eq.f32.partialorder %v3301, 8.507059e+37
    %v3303 = vand.u32 %v3291, 2147483648
    %v3304 = vor.u32 1.1754944e-38, %v3303
    %v3305 = vsel %vm3302, %v3304, %v3300
    %v3306 = vmul.f32 1.0, %v3305
    %v3307 = vadd.f32 %v3261, %v345
    %v3308 = vmul.f32 %v3286, %v3307
    %v3309 = vadd.f32 %v3266, %v3308
    %v3310 = vtanh.pop %v3309
    %v3311 = vsub.f32 1.0, %v3306
    %v3312 = vmul.f32 %v3311, %v3310
    %v3313 = vmul.f32 %v3306, %v2915
    %v3314 = vadd.f32 %v3312, %v3313
    %v3315 = vpack.c.bf16 %v3314, %v3314
    %v3316 = vld [vmem:[%s5] sm:$0xf]
    %v3317 = vld [vmem:[%s5 + $0x4] sm:$0xf]
    %v3318 = vld [vmem:[%s5 + $0x8] sm:$0xf]
    %v3319 = vld [vmem:[%s5 + $0xc] sm:$0xf]
    %v3320 = vld [vmem:[%s5 + $0x10] sm:$0xf]
    %v3321 = vld [vmem:[%s5 + $0x14] sm:$0xf]
    %v3322 = vld [vmem:[%s5 + $0x18] sm:$0xf]
    %v3323 = vld [vmem:[%s5 + $0x1c] sm:$0xf]
    %v3324 = vld [vmem:[#allocation11] sm:$0x1]
    %v3326 = vperm.slane %v3324, 0
    %v3336 = vunpack.c.l.b16 %v3316
    %v3337 = vunpack.c.l.b16 %v3317
    %v3338 = vunpack.c.l.b16 %v3318
    %v3339 = vunpack.c.l.b16 %v3319
    %v3340 = vunpack.c.l.b16 %v3320
    %v3341 = vunpack.c.l.b16 %v3321
    %v3342 = vunpack.c.l.b16 %v3322
    %v3343 = vunpack.c.l.b16 %v3323
    %v3344 = vpack.c.b16 %v3337, %v3336
    %v3345 = vpack.c.b16 %v3339, %v3338
    %v3346 = vpack.c.b16 %v3341, %v3340
    %v3347 = vpack.c.b16 %v3343, %v3342
    %v3353 = vsel %vm427, %v3315, 0
    %3355 = vmatpush.bf16.msra.mxu0 0
    %3356 = vmatpush.bf16.msra.mxu0 0
    %3357 = vmatpush.bf16.msra.mxu0 0
    %3358 = vmatpush.bf16.msra.mxu0 0
    %3359 = vmatpush.bf16.msra.mxu0 %v3347
    %3360 = vmatpush.bf16.msra.mxu0 %v3346
    %3361 = vmatpush.bf16.msra.mxu0 %v3345
    %3362 = vmatpush.bf16.msra.mxu0 %v3344
    %3363 = vmatmul.bf16.gmra.mxu0 %v3353
    %v3364 = vpop.f32.mrf.mxu0
    %v3365 = vadd.f32 %v3326, %v3364
    %v3366 = vpop.f32.mrf.mxu0
    %3367 = vdwg.mxu0
    %v3368 = vmax.f32 %v3365, 0.0
    %v3369 = vpack.c.bf16 %v3368, %v3368
    %v3370 = vld [vmem:[#allocation12] sm:$0xf]
    %v3371 = vld [vmem:[#allocation12 + $0x4] sm:$0xf]
    %v3372 = vld [vmem:[#allocation12 + $0x8] sm:$0xf]
    %v3373 = vld [vmem:[#allocation12 + $0xc] sm:$0xf]
    %v3374 = vld [vmem:[#allocation12 + $0x10] sm:$0xf]
    %v3375 = vld [vmem:[#allocation12 + $0x14] sm:$0xf]
    %v3376 = vld [vmem:[#allocation12 + $0x18] sm:$0xf]
    %v3377 = vld [vmem:[#allocation12 + $0x1c] sm:$0xf]
    %v3378 = vld [vmem:[#allocation12 + $0x20] sm:$0xf]
    %v3379 = vld [vmem:[#allocation12 + $0x24] sm:$0xf]
    %v3380 = vld [vmem:[#allocation12 + $0x28] sm:$0xf]
    %v3381 = vld [vmem:[#allocation12 + $0x2c] sm:$0xf]
    %v3382 = vld [vmem:[#allocation12 + $0x30] sm:$0xf]
    %v3383 = vld [vmem:[#allocation12 + $0x34] sm:$0xf]
    %v3384 = vld [vmem:[#allocation12 + $0x38] sm:$0xf]
    %v3385 = vld [vmem:[#allocation12 + $0x3c] sm:$0xf]
    %v3386 = vld [vmem:[#allocation14] sm:$0x1]
    %v3388 = vperm.slane %v3386, 0
    %v3406 = vunpack.c.l.b16 %v3370
    %v3407 = vunpack.c.l.b16 %v3371
    %v3408 = vunpack.c.l.b16 %v3372
    %v3409 = vunpack.c.l.b16 %v3373
    %v3410 = vunpack.c.l.b16 %v3374
    %v3411 = vunpack.c.l.b16 %v3375
    %v3412 = vunpack.c.l.b16 %v3376
    %v3413 = vunpack.c.l.b16 %v3377
    %v3414 = vunpack.c.l.b16 %v3378
    %v3415 = vunpack.c.l.b16 %v3379
    %v3416 = vunpack.c.l.b16 %v3380
    %v3417 = vunpack.c.l.b16 %v3381
    %v3418 = vunpack.c.l.b16 %v3382
    %v3419 = vunpack.c.l.b16 %v3383
    %v3420 = vunpack.c.l.b16 %v3384
    %v3421 = vunpack.c.l.b16 %v3385
    %v3422 = vpack.c.b16 %v3407, %v3406
    %v3423 = vpack.c.b16 %v3409, %v3408
    %v3424 = vpack.c.b16 %v3411, %v3410
    %v3425 = vpack.c.b16 %v3413, %v3412
    %v3426 = vpack.c.b16 %v3415, %v3414
    %v3427 = vpack.c.b16 %v3417, %v3416
    %v3428 = vpack.c.b16 %v3419, %v3418
    %v3429 = vpack.c.b16 %v3421, %v3420
    %3438 = vmatpush.bf16.msra.mxu0 %v3429
    %3439 = vmatpush.bf16.msra.mxu0 %v3428
    %3440 = vmatpush.bf16.msra.mxu0 %v3427
    %3441 = vmatpush.bf16.msra.mxu0 %v3426
    %3442 = vmatpush.bf16.msra.mxu0 %v3425
    %3443 = vmatpush.bf16.msra.mxu0 %v3424
    %3444 = vmatpush.bf16.msra.mxu0 %v3423
    %3445 = vmatpush.bf16.msra.mxu0 %v3422
    %3446 = vmatmul.bf16.gmra.mxu0 %v3369
    %v3447 = vpop.f32.mrf.mxu0
    %v3448 = vadd.f32 %v3388, %v3447
    %v3449 = vpop.f32.mrf.mxu0
    %3450 = vdwg.mxu0
    %v3451 = vmax.f32 %v3448, 0.0
    %v3452 = vpack.c.bf16 %v3451, %v3451
    %v3453 = vld [vmem:[#allocation15] sm:$0xf]
    %v3454 = vld [vmem:[#allocation15 + $0x4] sm:$0xf]
    %v3455 = vld [vmem:[#allocation15 + $0x8] sm:$0xf]
    %v3456 = vld [vmem:[#allocation15 + $0xc] sm:$0xf]
    %v3457 = vld [vmem:[#allocation15 + $0x10] sm:$0xf]
    %v3458 = vld [vmem:[#allocation15 + $0x14] sm:$0xf]
    %v3459 = vld [vmem:[#allocation15 + $0x18] sm:$0xf]
    %v3460 = vld [vmem:[#allocation15 + $0x1c] sm:$0xf]
    %v3461 = vld [vmem:[%s10] sm:$0x1]
    %v3463 = vperm.slane %v3461, 0
    %v3473 = vunpack.c.l.b16 %v3453
    %v3474 = vunpack.c.l.b16 %v3454
    %v3475 = vunpack.c.l.b16 %v3455
    %v3476 = vunpack.c.l.b16 %v3456
    %v3477 = vunpack.c.l.b16 %v3457
    %v3478 = vunpack.c.l.b16 %v3458
    %v3479 = vunpack.c.l.b16 %v3459
    %v3480 = vunpack.c.l.b16 %v3460
    %v3481 = vpack.c.b16 %v3474, %v3473
    %v3482 = vpack.c.b16 %v3476, %v3475
    %v3483 = vpack.c.b16 %v3478, %v3477
    %v3484 = vpack.c.b16 %v3480, %v3479
    %v3490 = vsel %vm427, %v3452, 0
    %3492 = vmatpush.bf16.msra.mxu0 0
    %3493 = vmatpush.bf16.msra.mxu0 0
    %3494 = vmatpush.bf16.msra.mxu0 0
    %3495 = vmatpush.bf16.msra.mxu0 0
    %3496 = vmatpush.bf16.msra.mxu0 %v3484
    %3497 = vmatpush.bf16.msra.mxu0 %v3483
    %3498 = vmatpush.bf16.msra.mxu0 %v3482
    %3499 = vmatpush.bf16.msra.mxu0 %v3481
    %3500 = vmatmul.bf16.gmra.mxu0 %v3490
    %v3501 = vpop.f32.mrf.mxu0
    %v3502 = vadd.f32 %v3463, %v3501
    %v3503 = vpop.f32.mrf.mxu0
    %3504 = vdwg.mxu0
    %v3505 = vmax.f32 %v3502, 0.0
    %v3506 = vpack.c.bf16 %v3505, %v3505
    %v3507 = vld [vmem:[%s11] sm:$0xf]
    %v3508 = vld [vmem:[%s11 + $0x4] sm:$0xf]
    %v3509 = vld [vmem:[%s11 + $0x8] sm:$0xf]
    %v3510 = vld [vmem:[%s11 + $0xc] sm:$0xf]
    %v3511 = vld [vmem:[%s12] sm:$0x1]
    %v3513 = vperm.slane %v3511, 0
    %v3519 = vunpack.c.l.b16 %v3507
    %v3520 = vunpack.c.l.b16 %v3508
    %v3521 = vunpack.c.l.b16 %v3509
    %v3522 = vunpack.c.l.b16 %v3510
    %v3523 = vpack.c.b16 %v3520, %v3519
    %v3524 = vpack.c.b16 %v3522, %v3521
    %v3528 = vsel %vm733, %v3506, 0
    %3530 = vmatpush.bf16.msra.mxu0 0
    %3531 = vmatpush.bf16.msra.mxu0 0
    %3532 = vmatpush.bf16.msra.mxu0 0
    %3533 = vmatpush.bf16.msra.mxu0 0
    %3534 = vmatpush.bf16.msra.mxu0 0
    %3535 = vmatpush.bf16.msra.mxu0 0
    %3536 = vmatpush.bf16.msra.mxu0 %v3524
    %3537 = vmatpush.bf16.msra.mxu0 %v3523
    %3538 = vmatmul.bf16.gmra.mxu0 %v3528
    %v3539 = vpop.f32.mrf.mxu0
    %v3540 = vadd.f32 %v3513, %v3539
    %v3541 = vpop.f32.mrf.mxu0
    %3542 = vdwg.mxu0
    %3543 = vst [vmem:[#allocation17 + $0x38] sm:$0xff] %v3540
    // Predicated region
    $region86: #{tpu_custom_call.1} parent=1 // pred_check
      _
    $region87: #{tpu_custom_call.1} parent=1 // pred_check_branch
      %3545 = sbr.rel (0) target = $region89
    $region88: #{tpu_custom_call.1} parent=1 // pred_region
      %3547 = vsyncadd [#allocation5], 0
      %s3548 = sshll.u32 [#allocation17], 4
      %s3549 = int_to_ptr.vmem [resolvable:$true] %s3548
      %s3550 = sshll.u32 %s13, 4
      %s3551 = int_to_ptr.hbm [resolvable:$true] %s3550
      %3556 = dma.vmem_to_hbm [thread:$0]  %s3549, 1024, %s3551, [#allocation5], 128, 128, 8
    $region89: #{tpu_custom_call.1} parent=1 // pred_fallthru
      _
    // Predicated region
    $region90: #{tpu_custom_call.1} parent=1 // pred_check
      _
    $region91: #{tpu_custom_call.1} parent=1 // pred_check_branch
      %3558 = sbr.rel (0) target = $region93
    $region92: #{tpu_custom_call.1} parent=1 // pred_region
      %3560 = dma.done [#allocation5], 1024
    $region93: #{tpu_custom_call.1} parent=1 // pred_fallthru
      _
    %3561 = vsyncpa [#allocation4], 1
    %3562 = vsyncpa [#allocation7], 1
    %3563 = vsyncpa [#allocation10], 1
    %3564 = vsyncpa [#allocation13], 1
    %3565 = vsyncpa [#allocation16], 1
    %3566 = vsyncpa [#allocation5], 1

</llo_original>
